<compile_context>
chip_gen: v7x
topology: tpu7x:2x2x1
jax: 0.10.0
libtpu: 0.0.40
codegen_flags: <defaults>
</compile_context>

<pallas_src>
import functools
import math

import jax
import jax.numpy as jnp
from jax import lax
from jax.experimental import pallas as pl
from jax.experimental.pallas import tpu as pltpu


# ---------------------------------------------------------------------------
# Fused kernel: LSTM encoder + time-embed MLP + MLP head, all VMEM-resident.
# ---------------------------------------------------------------------------
def _noisepred_kernel(
    # LSTM encoder inputs (time-major, batch already padded to Bp)
    xs_ref,                       # (T*Bp, Din)  flattened encoder input sequence
    wih0_ref, whh0_ref, b0_ref,   # (Din,4H) (H,4H) (1,4H)  layer 0, gates (i,f,o,g)
    wih1_ref, whh1_ref, b1_ref,   # (H,4H)  (H,4H) (1,4H)   layer 1
    # head inputs
    x_ref,                        # (Bp, Din)    noised input
    tsin_ref,                     # (Bp, Tch)    sinusoidal timestep embedding
    wt1_ref, bt1_ref,             # (Tch, E) (1, E)   time_embed Linear 1
    wt2_ref, bt2_ref,             # (E, E)   (1, E)   time_embed Linear 2
    w1x_ref, w1t_ref, w1c_ref, bb1_ref,   # mlp1 split by concat segment, BN1 folded
    w2_ref, bb2_ref,              # mlp2, BN2 folded
    w3_ref, b3_ref,               # mlp3
    # outputs
    pred_ref,                     # (Bp, out_dim)
    cond_ref,                     # (Bp, H)
    *,
    T, B,
):
    f32 = jnp.float32
    H = whh0_ref.shape[0]

    def lstm_layer(xproj, whh):
        """One LSTM layer over the pre-projected sequence.

        xproj: (T*B, 4H) value = x_t @ W_ih + (b_ih + b_hh), gate order (i,f,o,g)
        whh:   (H, 4H)   hidden->gates weights (transposed)
        """
        h = jnp.zeros((B, H), f32)
        c = jnp.zeros((B, H), f32)
        hs = []
        for t in range(T):                                   # fully unrolled (T static)
            gates = xproj[t * B:(t + 1) * B, :] + jnp.dot(
                h, whh, preferred_element_type=f32)          # (B, 4H)
            sig = jax.nn.sigmoid(gates[:, :3 * H])           # i | f | o : one slice
            g_g = jnp.tanh(gates[:, 3 * H:])                 # g         : one slice
            i_g = sig[:, 0:H]
            f_g = sig[:, H:2 * H]
            o_g = sig[:, 2 * H:3 * H]
            c = f_g * c + i_g * g_g
            h = o_g * jnp.tanh(c)
            hs.append(h)
        return h, hs

    # ---- LSTM encoder: both layers fused, hidden sequence stays on-chip -----
    whh0 = whh0_ref[...]
    whh1 = whh1_ref[...]
    # whole-sequence input projection: one batched matmul off the serial path
    xp0 = jnp.dot(xs_ref[...], wih0_ref[...],
                  preferred_element_type=f32) + b0_ref[...]           # (T*B, 4H)
    _, hs0 = lstm_layer(xp0, whh0)
    hseq = jnp.concatenate(hs0, axis=0)                               # (T*B, H)
    xp1 = jnp.dot(hseq, wih1_ref[...],
                  preferred_element_type=f32) + b1_ref[...]           # (T*B, 4H)
    cond, _ = lstm_layer(xp1, whh1)                                   # (B, H) == h[:, -1, :]
    cond_ref[...] = cond

    # ---- TimeStyleSeperateEmbed.time_embed: Linear -> SiLU -> Linear --------
    te = jnp.dot(tsin_ref[...], wt1_ref[...],
                 preferred_element_type=f32) + bt1_ref[...]
    te = te * jax.nn.sigmoid(te)                                      # SiLU
    te = jnp.dot(te, wt2_ref[...],
                 preferred_element_type=f32) + bt2_ref[...]           # (B, E)

    # ---- head: concat([x, time_emb, cond]) realised as split matmuls --------
    h = (jnp.dot(x_ref[...], w1x_ref[...], preferred_element_type=f32)
         + jnp.dot(te, w1t_ref[...], preferred_element_type=f32)
         + jnp.dot(cond, w1c_ref[...], preferred_element_type=f32)
         + bb1_ref[...])
    h = jnp.maximum(h, 0.0)                                           # BN1 folded + ReLU
    h = jnp.dot(h, w2_ref[...], preferred_element_type=f32) + bb2_ref[...]
    h = jnp.maximum(h, 0.0)                                           # BN2 folded + ReLU
    pred_ref[...] = jnp.dot(h, w3_ref[...],
                            preferred_element_type=f32) + b3_ref[...]


# ---------------------------------------------------------------------------
# Wrapper-side weight preparation (layout plumbing only, done once per call).
# ---------------------------------------------------------------------------
def _reorder_gate_rows(w):
    """PyTorch LSTM gate blocks (i,f,g,o) -> (i,f,o,g) along the leading axis."""
    H = w.shape[0] // 4
    return jnp.concatenate([w[0:H], w[H:2 * H], w[3 * H:4 * H], w[2 * H:3 * H]], axis=0)


def _fold_bn(w_t, b, gamma, beta, mean, var, eps=1e-5):
    """Fold eval-mode BatchNorm1d into the preceding Linear (W already transposed)."""
    scale = gamma / jnp.sqrt(var + eps)
    return w_t * scale[None, :], (b - mean) * scale + beta


def timestep_embedding(t, dim, max_period=10000):
    # TODO(synk): utils.timestep_embedding source is not given; standard diffusion
    # sinusoidal embedding with dim = time_embed_channels is assumed.
    half = dim // 2
    freqs = jnp.exp(-math.log(max_period) *
                    jnp.arange(half, dtype=jnp.float32) / half)
    args = t.astype(jnp.float32)[:, None] * freqs[None, :]
    emb = jnp.concatenate([jnp.cos(args), jnp.sin(args)], axis=-1)
    if dim % 2:
        emb = jnp.concatenate([emb, jnp.zeros_like(emb[:, :1])], axis=-1)
    return emb


def noisepred_forward(x, t, x_start, params):
    """Pallas NoisePredModel.forward (eval mode). Returns (pred, cond)."""
    x = x.astype(jnp.float32)
    if x_start.ndim == 2:                       # matches the PyTorch unsqueeze(1)
        x_start = x_start[:, None, :]
    x_start = x_start.astype(jnp.float32)

    B, Din = x.shape
    T = x_start.shape[1]
    H = params["lstm"][0][1].shape[1]           # latent_dim
    E, Tch = params["time_w1"].shape            # embed_channels, time_embed_channels
    out_dim = params["w3"].shape[0]

    # pad batch to a multiple of 8 (sublane width); padded rows are discarded
    Bp = ((B + 7) // 8) * 8
    pad = Bp - B
    xp = jnp.pad(x, ((0, pad), (0, 0)))
    xsp = jnp.pad(x_start, ((0, pad), (0, 0), (0, 0)))
    t_sin = jnp.pad(timestep_embedding(t, Tch), ((0, pad), (0, 0)))

    # encoder input: batch-first -> time-major -> flattened (T*Bp, Din)
    xs2d = jnp.transpose(xsp, (1, 0, 2)).reshape(T * Bp, Din)

    # LSTM weights: reorder gates (i,f,g,o)->(i,f,o,g), transpose, fuse biases
    lstm_prepped = []
    for (w_ih, w_hh, b_ih, b_hh) in params["lstm"]:
        lstm_prepped.append((
            jnp.transpose(_reorder_gate_rows(w_ih)),                   # (Din_l, 4H)
            jnp.transpose(_reorder_gate_rows(w_hh)),                   # (H, 4H)
            _reorder_gate_rows(b_ih + b_hh).reshape(1, -1),            # (1, 4H)
        ))
    (wih0, whh0, b0), (wih1, whh1, b1) = lstm_prepped

    # time-embed MLP weights (transpose to (in, out), biases as (1, out))
    wt1 = jnp.transpose(params["time_w1"]); bt1 = params["time_b1"].reshape(1, -1)
    wt2 = jnp.transpose(params["time_w2"]); bt2 = params["time_b2"].reshape(1, -1)

    # mlp1: transpose, fold BN1, split by concat segment [x | time_emb | cond]
    w1_t = jnp.transpose(params["w1"])                                 # (Din+E+H, Hd)
    g1, be1, m1, v1 = params["bn1"]
    w1_t, b1f = _fold_bn(w1_t, params["b1"], g1, be1, m1, v1)
    w1x = w1_t[:Din]
    w1t = w1_t[Din:Din + E]
    w1c = w1_t[Din + E:]
    bb1 = b1f.reshape(1, -1)

    # mlp2 (+BN2 fold), mlp3
    w2_t = jnp.transpose(params["w2"])
    g2, be2, m2, v2 = params["bn2"]
    w2_t, b2f = _fold_bn(w2_t, params["b2"], g2, be2, m2, v2)
    bb2 = b2f.reshape(1, -1)
    w3_t = jnp.transpose(params["w3"])
    b3 = params["b3"].reshape(1, -1)

    vmem = pl.BlockSpec(memory_space=pltpu.MemorySpace.VMEM)
    kernel = functools.partial(_noisepred_kernel, T=T, B=Bp)
    pred_pad, cond_pad = pl.pallas_call(
        kernel,
        out_shape=(
            jax.ShapeDtypeStruct((Bp, out_dim), jnp.float32),
            jax.ShapeDtypeStruct((Bp, H), jnp.float32),
        ),
        in_specs=[vmem] * 21,
        out_specs=(vmem, vmem),
    )(xs2d, wih0, whh0, b0, wih1, whh1, b1,
      xp, t_sin, wt1, bt1, wt2, bt2,
      w1x, w1t, w1c, bb1, w2_t, bb2, w3_t, b3)

    return pred_pad[:B], cond_pad[:B]


# ---------------------------------------------------------------------------
# Pure-JAX reference (eval-mode PyTorch semantics) and parameter init.
# ---------------------------------------------------------------------------
def noisepred_reference(x, t, x_start, params):
    hp = functools.partial(jnp.dot, precision=lax.Precision.HIGHEST)
    x = x.astype(jnp.float32)
    if x_start.ndim == 2:
        x_start = x_start[:, None, :]
    xseq = jnp.transpose(x_start.astype(jnp.float32), (1, 0, 2))       # (T, B, D)
    B = xseq.shape[1]
    for (w_ih, w_hh, b_ih, b_hh) in params["lstm"]:
        H = w_hh.shape[1]

        def step(carry, x_t, w_ih=w_ih, w_hh=w_hh, b_ih=b_ih, b_hh=b_hh, H=H):
            h, c = carry
            gates = hp(x_t, w_ih.T) + hp(h, w_hh.T) + b_ih + b_hh
            i_g = jax.nn.sigmoid(gates[:, 0:H])
            f_g = jax.nn.sigmoid(gates[:, H:2 * H])
            g_g = jnp.tanh(gates[:, 2 * H:3 * H])
            o_g = jax.nn.sigmoid(gates[:, 3 * H:4 * H])
            c = f_g * c + i_g * g_g
            h = o_g * jnp.tanh(c)
            return (h, c), h

        init = (jnp.zeros((B, H), jnp.float32), jnp.zeros((B, H), jnp.float32))
        _, xseq = lax.scan(step, init, xseq)
    cond = xseq[-1]

    Tch = params["time_w1"].shape[1]
    te = hp(timestep_embedding(t, Tch), params["time_w1"].T) + params["time_b1"]
    te = te * jax.nn.sigmoid(te)
    te = hp(te, params["time_w2"].T) + params["time_b2"]

    def bn(v, p, eps=1e-5):
        gamma, beta, mean, var = p
        return (v - mean) / jnp.sqrt(var + eps) * gamma + beta

    h = jnp.concatenate([x, te, cond], axis=1)
    h = jax.nn.relu(bn(hp(h, params["w1"].T) + params["b1"], params["bn1"]))
    h = jax.nn.relu(bn(hp(h, params["w2"].T) + params["b2"], params["bn2"]))
    pred = hp(h, params["w3"].T) + params["b3"]
    return pred, cond


def init_params(key, cfg):
    Din, out_dim, Hd, L = cfg["input_dim"], cfg["out_dim"], cfg["hidden_dim"], cfg["latent_dim"]
    Tch, E, NL = cfg["time_embed_channels"], cfg["embed_channels"], cfg["num_layers"]

    def uniform(k, shape, bound):
        return jax.random.uniform(k, shape, jnp.float32, -bound, bound)

    params = {"lstm": []}
    kH = 1.0 / math.sqrt(L)
    for layer in range(NL):
        d_in = Din if layer == 0 else L
        key, k1, k2, k3, k4 = jax.random.split(key, 5)
        params["lstm"].append((
            uniform(k1, (4 * L, d_in), kH),
            uniform(k2, (4 * L, L), kH),
            uniform(k3, (4 * L,), kH),
            uniform(k4, (4 * L,), kH),
        ))

    def linear(key, out_f, in_f):
        key, kw, kb = jax.random.split(key, 3)
        bound = 1.0 / math.sqrt(in_f)
        return key, uniform(kw, (out_f, in_f), bound), uniform(kb, (out_f,), bound)

    key, params["time_w1"], params["time_b1"] = linear(key, E, Tch)
    key, params["time_w2"], params["time_b2"] = linear(key, E, E)
    key, params["w1"], params["b1"] = linear(key, Hd, Din + E + L)
    key, params["w2"], params["b2"] = linear(key, Hd, Hd)
    key, params["w3"], params["b3"] = linear(key, out_dim, Hd)

    def bn_params(key, n):
        key, k1, k2, k3, k4 = jax.random.split(key, 5)
        gamma = jax.random.uniform(k1, (n,), jnp.float32, 0.5, 1.5)
        beta = jax.random.uniform(k2, (n,), jnp.float32, -0.5, 0.5)
        mean = jax.random.uniform(k3, (n,), jnp.float32, -0.5, 0.5)
        var = jax.random.uniform(k4, (n,), jnp.float32, 0.5, 1.5)
        return key, (gamma, beta, mean, var)

    key, params["bn1"] = bn_params(key, Hd)
    key, params["bn2"] = bn_params(key, Hd)
    return params


if __name__ == "__main__":
    # NoisePredModelConfig(input_dim=16, out_dim=16, hidden_dim=32, latent_dim=32,
    #                      time_embed_channels=64, embed_channels=64, num_layers=2)
    cfg = dict(input_dim=16, out_dim=16, hidden_dim=32, latent_dim=32,
               time_embed_channels=64, embed_channels=64, num_layers=2)
    B, T = 4, 8

    key = jax.random.PRNGKey(0)
    key, kx, kt, ks, kp = jax.random.split(key, 5)
    x = jax.random.normal(kx, (B, cfg["input_dim"]), jnp.float32)         # noised input
    t = jax.random.randint(kt, (B,), 0, 1000)                             # timesteps
    x_start = jax.random.normal(ks, (B, T, cfg["input_dim"]), jnp.float32)  # encoder input
    params = init_params(kp, cfg)

    pred, cond = noisepred_forward(x, t, x_start, params)
    pred = jax.block_until_ready(pred)
    cond = jax.block_until_ready(cond)

    pred_ref, cond_ref = noisepred_reference(x, t, x_start, params)
    pred_ref = jax.block_until_ready(pred_ref)
    cond_ref = jax.block_until_ready(cond_ref)

    assert pred.shape == (B, cfg["out_dim"])
    assert cond.shape == (B, cfg["latent_dim"])
    assert float(jnp.max(jnp.abs(cond - cond_ref))) < 1e-3
    assert float(jnp.max(jnp.abs(pred - pred_ref))) < 1e-3
    print("KERNEL_OK")
</pallas_src>

<mosaic_0001>
module attributes {stable_mosaic.version = 11 : i64} {
  func.func @_noisepred_kernel(%arg0: memref<64x16xf32, #tpu.memory_space<vmem>>, %arg1: memref<16x128xf32, #tpu.memory_space<vmem>>, %arg2: memref<32x128xf32, #tpu.memory_space<vmem>>, %arg3: memref<1x128xf32, #tpu.memory_space<vmem>>, %arg4: memref<32x128xf32, #tpu.memory_space<vmem>>, %arg5: memref<32x128xf32, #tpu.memory_space<vmem>>, %arg6: memref<1x128xf32, #tpu.memory_space<vmem>>, %arg7: memref<8x16xf32, #tpu.memory_space<vmem>>, %arg8: memref<8x64xf32, #tpu.memory_space<vmem>>, %arg9: memref<64x64xf32, #tpu.memory_space<vmem>>, %arg10: memref<1x64xf32, #tpu.memory_space<vmem>>, %arg11: memref<64x64xf32, #tpu.memory_space<vmem>>, %arg12: memref<1x64xf32, #tpu.memory_space<vmem>>, %arg13: memref<16x32xf32, #tpu.memory_space<vmem>>, %arg14: memref<64x32xf32, #tpu.memory_space<vmem>>, %arg15: memref<32x32xf32, #tpu.memory_space<vmem>>, %arg16: memref<1x32xf32, #tpu.memory_space<vmem>>, %arg17: memref<32x32xf32, #tpu.memory_space<vmem>>, %arg18: memref<1x32xf32, #tpu.memory_space<vmem>>, %arg19: memref<32x16xf32, #tpu.memory_space<vmem>>, %arg20: memref<1x16xf32, #tpu.memory_space<vmem>>, %arg21: memref<8x16xf32, #tpu.memory_space<vmem>>, %arg22: memref<8x32xf32, #tpu.memory_space<vmem>>) attributes {dimension_semantics = [], scalar_prefetch = 0 : i64, scratch_operands = 0 : i64, tpu.core_type = #tpu.core_type<tc>} {
    %c0 = arith.constant 0 : index
    %c0_0 = arith.constant 0 : index
    %0 = vector.load %arg2[%c0, %c0_0] : memref<32x128xf32, #tpu.memory_space<vmem>>, vector<32x128xf32>
    %c0_1 = arith.constant 0 : index
    %c0_2 = arith.constant 0 : index
    %1 = vector.load %arg5[%c0_1, %c0_2] : memref<32x128xf32, #tpu.memory_space<vmem>>, vector<32x128xf32>
    %c0_3 = arith.constant 0 : index
    %c0_4 = arith.constant 0 : index
    %2 = vector.load %arg0[%c0_3, %c0_4] : memref<64x16xf32, #tpu.memory_space<vmem>>, vector<64x16xf32>
    %c0_5 = arith.constant 0 : index
    %c0_6 = arith.constant 0 : index
    %3 = vector.load %arg1[%c0_5, %c0_6] : memref<16x128xf32, #tpu.memory_space<vmem>>, vector<16x128xf32>
    %cst = arith.constant dense<0.000000e+00> : vector<64x128xf32>
    %4 = tpu.matmul %2, %3, %cst {dimension_numbers = #tpu.dot_dimension_numbers<[1], [0], [0], [1], [0, 0, 1, 1], [], []>} : vector<64x16xf32>, vector<16x128xf32>, vector<64x128xf32> -> vector<64x128xf32>
    %c0_7 = arith.constant 0 : index
    %c0_8 = arith.constant 0 : index
    %5 = vector.load %arg3[%c0_7, %c0_8] : memref<1x128xf32, #tpu.memory_space<vmem>>, vector<1x128xf32>
    %6 = vector.broadcast %5 : vector<1x128xf32> to vector<64x128xf32>
    %7 = arith.addf %4, %6 : vector<64x128xf32>
    %cst_9 = arith.constant 0.000000e+00 : f32
    %8 = vector.broadcast %cst_9 : f32 to vector<8x32xf32>
    %cst_10 = arith.constant 0.000000e+00 : f32
    %9 = vector.broadcast %cst_10 : f32 to vector<8x32xf32>
    %10 = vector.extract_strided_slice %7 {offsets = [0, 0], sizes = [8, 128], strides = [1, 1]} : vector<64x128xf32> to vector<8x128xf32>
    %cst_11 = arith.constant dense<0.000000e+00> : vector<8x128xf32>
    %11 = tpu.matmul %8, %0, %cst_11 {dimension_numbers = #tpu.dot_dimension_numbers<[1], [0], [0], [1], [0, 0, 1, 1], [], []>} : vector<8x32xf32>, vector<32x128xf32>, vector<8x128xf32> -> vector<8x128xf32>
    %12 = arith.addf %10, %11 : vector<8x128xf32>
    %13 = vector.extract_strided_slice %12 {offsets = [0, 0], sizes = [8, 96], strides = [1, 1]} : vector<8x128xf32> to vector<8x96xf32>
    %14 = arith.negf %13 : vector<8x96xf32>
    %15 = math.exp %14 : vector<8x96xf32>
    %cst_12 = arith.constant 1.000000e+00 : f32
    %16 = vector.broadcast %cst_12 : f32 to vector<8x96xf32>
    %17 = arith.addf %16, %15 : vector<8x96xf32>
    %18 = arith.divf %16, %17 : vector<8x96xf32>
    %19 = vector.extract_strided_slice %12 {offsets = [0, 96], sizes = [8, 32], strides = [1, 1]} : vector<8x128xf32> to vector<8x32xf32>
    %20 = math.tanh %19 : vector<8x32xf32>
    %21 = vector.extract_strided_slice %18 {offsets = [0, 0], sizes = [8, 32], strides = [1, 1]} : vector<8x96xf32> to vector<8x32xf32>
    %22 = vector.extract_strided_slice %18 {offsets = [0, 32], sizes = [8, 32], strides = [1, 1]} : vector<8x96xf32> to vector<8x32xf32>
    %23 = vector.extract_strided_slice %18 {offsets = [0, 64], sizes = [8, 32], strides = [1, 1]} : vector<8x96xf32> to vector<8x32xf32>
    %24 = arith.mulf %22, %9 : vector<8x32xf32>
    %25 = arith.mulf %21, %20 : vector<8x32xf32>
    %26 = arith.addf %24, %25 : vector<8x32xf32>
    %27 = math.tanh %26 : vector<8x32xf32>
    %28 = arith.mulf %23, %27 : vector<8x32xf32>
    %29 = vector.extract_strided_slice %7 {offsets = [8, 0], sizes = [8, 128], strides = [1, 1]} : vector<64x128xf32> to vector<8x128xf32>
    %cst_13 = arith.constant dense<0.000000e+00> : vector<8x128xf32>
    %30 = tpu.matmul %28, %0, %cst_13 {dimension_numbers = #tpu.dot_dimension_numbers<[1], [0], [0], [1], [0, 0, 1, 1], [], []>} : vector<8x32xf32>, vector<32x128xf32>, vector<8x128xf32> -> vector<8x128xf32>
    %31 = arith.addf %29, %30 : vector<8x128xf32>
    %32 = vector.extract_strided_slice %31 {offsets = [0, 0], sizes = [8, 96], strides = [1, 1]} : vector<8x128xf32> to vector<8x96xf32>
    %33 = arith.negf %32 : vector<8x96xf32>
    %34 = math.exp %33 : vector<8x96xf32>
    %cst_14 = arith.constant 1.000000e+00 : f32
    %35 = vector.broadcast %cst_14 : f32 to vector<8x96xf32>
    %36 = arith.addf %35, %34 : vector<8x96xf32>
    %37 = arith.divf %35, %36 : vector<8x96xf32>
    %38 = vector.extract_strided_slice %31 {offsets = [0, 96], sizes = [8, 32], strides = [1, 1]} : vector<8x128xf32> to vector<8x32xf32>
    %39 = math.tanh %38 : vector<8x32xf32>
    %40 = vector.extract_strided_slice %37 {offsets = [0, 0], sizes = [8, 32], strides = [1, 1]} : vector<8x96xf32> to vector<8x32xf32>
    %41 = vector.extract_strided_slice %37 {offsets = [0, 32], sizes = [8, 32], strides = [1, 1]} : vector<8x96xf32> to vector<8x32xf32>
    %42 = vector.extract_strided_slice %37 {offsets = [0, 64], sizes = [8, 32], strides = [1, 1]} : vector<8x96xf32> to vector<8x32xf32>
    %43 = arith.mulf %41, %26 : vector<8x32xf32>
    %44 = arith.mulf %40, %39 : vector<8x32xf32>
    %45 = arith.addf %43, %44 : vector<8x32xf32>
    %46 = math.tanh %45 : vector<8x32xf32>
    %47 = arith.mulf %42, %46 : vector<8x32xf32>
    %48 = vector.extract_strided_slice %7 {offsets = [16, 0], sizes = [8, 128], strides = [1, 1]} : vector<64x128xf32> to vector<8x128xf32>
    %cst_15 = arith.constant dense<0.000000e+00> : vector<8x128xf32>
    %49 = tpu.matmul %47, %0, %cst_15 {dimension_numbers = #tpu.dot_dimension_numbers<[1], [0], [0], [1], [0, 0, 1, 1], [], []>} : vector<8x32xf32>, vector<32x128xf32>, vector<8x128xf32> -> vector<8x128xf32>
    %50 = arith.addf %48, %49 : vector<8x128xf32>
    %51 = vector.extract_strided_slice %50 {offsets = [0, 0], sizes = [8, 96], strides = [1, 1]} : vector<8x128xf32> to vector<8x96xf32>
    %52 = arith.negf %51 : vector<8x96xf32>
    %53 = math.exp %52 : vector<8x96xf32>
    %cst_16 = arith.constant 1.000000e+00 : f32
    %54 = vector.broadcast %cst_16 : f32 to vector<8x96xf32>
    %55 = arith.addf %54, %53 : vector<8x96xf32>
    %56 = arith.divf %54, %55 : vector<8x96xf32>
    %57 = vector.extract_strided_slice %50 {offsets = [0, 96], sizes = [8, 32], strides = [1, 1]} : vector<8x128xf32> to vector<8x32xf32>
    %58 = math.tanh %57 : vector<8x32xf32>
    %59 = vector.extract_strided_slice %56 {offsets = [0, 0], sizes = [8, 32], strides = [1, 1]} : vector<8x96xf32> to vector<8x32xf32>
    %60 = vector.extract_strided_slice %56 {offsets = [0, 32], sizes = [8, 32], strides = [1, 1]} : vector<8x96xf32> to vector<8x32xf32>
    %61 = vector.extract_strided_slice %56 {offsets = [0, 64], sizes = [8, 32], strides = [1, 1]} : vector<8x96xf32> to vector<8x32xf32>
    %62 = arith.mulf %60, %45 : vector<8x32xf32>
    %63 = arith.mulf %59, %58 : vector<8x32xf32>
    %64 = arith.addf %62, %63 : vector<8x32xf32>
    %65 = math.tanh %64 : vector<8x32xf32>
    %66 = arith.mulf %61, %65 : vector<8x32xf32>
    %67 = vector.extract_strided_slice %7 {offsets = [24, 0], sizes = [8, 128], strides = [1, 1]} : vector<64x128xf32> to vector<8x128xf32>
    %cst_17 = arith.constant dense<0.000000e+00> : vector<8x128xf32>
    %68 = tpu.matmul %66, %0, %cst_17 {dimension_numbers = #tpu.dot_dimension_numbers<[1], [0], [0], [1], [0, 0, 1, 1], [], []>} : vector<8x32xf32>, vector<32x128xf32>, vector<8x128xf32> -> vector<8x128xf32>
    %69 = arith.addf %67, %68 : vector<8x128xf32>
    %70 = vector.extract_strided_slice %69 {offsets = [0, 0], sizes = [8, 96], strides = [1, 1]} : vector<8x128xf32> to vector<8x96xf32>
    %71 = arith.negf %70 : vector<8x96xf32>
    %72 = math.exp %71 : vector<8x96xf32>
    %cst_18 = arith.constant 1.000000e+00 : f32
    %73 = vector.broadcast %cst_18 : f32 to vector<8x96xf32>
    %74 = arith.addf %73, %72 : vector<8x96xf32>
    %75 = arith.divf %73, %74 : vector<8x96xf32>
    %76 = vector.extract_strided_slice %69 {offsets = [0, 96], sizes = [8, 32], strides = [1, 1]} : vector<8x128xf32> to vector<8x32xf32>
    %77 = math.tanh %76 : vector<8x32xf32>
    %78 = vector.extract_strided_slice %75 {offsets = [0, 0], sizes = [8, 32], strides = [1, 1]} : vector<8x96xf32> to vector<8x32xf32>
    %79 = vector.extract_strided_slice %75 {offsets = [0, 32], sizes = [8, 32], strides = [1, 1]} : vector<8x96xf32> to vector<8x32xf32>
    %80 = vector.extract_strided_slice %75 {offsets = [0, 64], sizes = [8, 32], strides = [1, 1]} : vector<8x96xf32> to vector<8x32xf32>
    %81 = arith.mulf %79, %64 : vector<8x32xf32>
    %82 = arith.mulf %78, %77 : vector<8x32xf32>
    %83 = arith.addf %81, %82 : vector<8x32xf32>
    %84 = math.tanh %83 : vector<8x32xf32>
    %85 = arith.mulf %80, %84 : vector<8x32xf32>
    %86 = vector.extract_strided_slice %7 {offsets = [32, 0], sizes = [8, 128], strides = [1, 1]} : vector<64x128xf32> to vector<8x128xf32>
    %cst_19 = arith.constant dense<0.000000e+00> : vector<8x128xf32>
    %87 = tpu.matmul %85, %0, %cst_19 {dimension_numbers = #tpu.dot_dimension_numbers<[1], [0], [0], [1], [0, 0, 1, 1], [], []>} : vector<8x32xf32>, vector<32x128xf32>, vector<8x128xf32> -> vector<8x128xf32>
    %88 = arith.addf %86, %87 : vector<8x128xf32>
    %89 = vector.extract_strided_slice %88 {offsets = [0, 0], sizes = [8, 96], strides = [1, 1]} : vector<8x128xf32> to vector<8x96xf32>
    %90 = arith.negf %89 : vector<8x96xf32>
    %91 = math.exp %90 : vector<8x96xf32>
    %cst_20 = arith.constant 1.000000e+00 : f32
    %92 = vector.broadcast %cst_20 : f32 to vector<8x96xf32>
    %93 = arith.addf %92, %91 : vector<8x96xf32>
    %94 = arith.divf %92, %93 : vector<8x96xf32>
    %95 = vector.extract_strided_slice %88 {offsets = [0, 96], sizes = [8, 32], strides = [1, 1]} : vector<8x128xf32> to vector<8x32xf32>
    %96 = math.tanh %95 : vector<8x32xf32>
    %97 = vector.extract_strided_slice %94 {offsets = [0, 0], sizes = [8, 32], strides = [1, 1]} : vector<8x96xf32> to vector<8x32xf32>
    %98 = vector.extract_strided_slice %94 {offsets = [0, 32], sizes = [8, 32], strides = [1, 1]} : vector<8x96xf32> to vector<8x32xf32>
    %99 = vector.extract_strided_slice %94 {offsets = [0, 64], sizes = [8, 32], strides = [1, 1]} : vector<8x96xf32> to vector<8x32xf32>
    %100 = arith.mulf %98, %83 : vector<8x32xf32>
    %101 = arith.mulf %97, %96 : vector<8x32xf32>
    %102 = arith.addf %100, %101 : vector<8x32xf32>
    %103 = math.tanh %102 : vector<8x32xf32>
    %104 = arith.mulf %99, %103 : vector<8x32xf32>
    %105 = vector.extract_strided_slice %7 {offsets = [40, 0], sizes = [8, 128], strides = [1, 1]} : vector<64x128xf32> to vector<8x128xf32>
    %cst_21 = arith.constant dense<0.000000e+00> : vector<8x128xf32>
    %106 = tpu.matmul %104, %0, %cst_21 {dimension_numbers = #tpu.dot_dimension_numbers<[1], [0], [0], [1], [0, 0, 1, 1], [], []>} : vector<8x32xf32>, vector<32x128xf32>, vector<8x128xf32> -> vector<8x128xf32>
    %107 = arith.addf %105, %106 : vector<8x128xf32>
    %108 = vector.extract_strided_slice %107 {offsets = [0, 0], sizes = [8, 96], strides = [1, 1]} : vector<8x128xf32> to vector<8x96xf32>
    %109 = arith.negf %108 : vector<8x96xf32>
    %110 = math.exp %109 : vector<8x96xf32>
    %cst_22 = arith.constant 1.000000e+00 : f32
    %111 = vector.broadcast %cst_22 : f32 to vector<8x96xf32>
    %112 = arith.addf %111, %110 : vector<8x96xf32>
    %113 = arith.divf %111, %112 : vector<8x96xf32>
    %114 = vector.extract_strided_slice %107 {offsets = [0, 96], sizes = [8, 32], strides = [1, 1]} : vector<8x128xf32> to vector<8x32xf32>
    %115 = math.tanh %114 : vector<8x32xf32>
    %116 = vector.extract_strided_slice %113 {offsets = [0, 0], sizes = [8, 32], strides = [1, 1]} : vector<8x96xf32> to vector<8x32xf32>
    %117 = vector.extract_strided_slice %113 {offsets = [0, 32], sizes = [8, 32], strides = [1, 1]} : vector<8x96xf32> to vector<8x32xf32>
    %118 = vector.extract_strided_slice %113 {offsets = [0, 64], sizes = [8, 32], strides = [1, 1]} : vector<8x96xf32> to vector<8x32xf32>
    %119 = arith.mulf %117, %102 : vector<8x32xf32>
    %120 = arith.mulf %116, %115 : vector<8x32xf32>
    %121 = arith.addf %119, %120 : vector<8x32xf32>
    %122 = math.tanh %121 : vector<8x32xf32>
    %123 = arith.mulf %118, %122 : vector<8x32xf32>
    %124 = vector.extract_strided_slice %7 {offsets = [48, 0], sizes = [8, 128], strides = [1, 1]} : vector<64x128xf32> to vector<8x128xf32>
    %cst_23 = arith.constant dense<0.000000e+00> : vector<8x128xf32>
    %125 = tpu.matmul %123, %0, %cst_23 {dimension_numbers = #tpu.dot_dimension_numbers<[1], [0], [0], [1], [0, 0, 1, 1], [], []>} : vector<8x32xf32>, vector<32x128xf32>, vector<8x128xf32> -> vector<8x128xf32>
    %126 = arith.addf %124, %125 : vector<8x128xf32>
    %127 = vector.extract_strided_slice %126 {offsets = [0, 0], sizes = [8, 96], strides = [1, 1]} : vector<8x128xf32> to vector<8x96xf32>
    %128 = arith.negf %127 : vector<8x96xf32>
    %129 = math.exp %128 : vector<8x96xf32>
    %cst_24 = arith.constant 1.000000e+00 : f32
    %130 = vector.broadcast %cst_24 : f32 to vector<8x96xf32>
    %131 = arith.addf %130, %129 : vector<8x96xf32>
    %132 = arith.divf %130, %131 : vector<8x96xf32>
    %133 = vector.extract_strided_slice %126 {offsets = [0, 96], sizes = [8, 32], strides = [1, 1]} : vector<8x128xf32> to vector<8x32xf32>
    %134 = math.tanh %133 : vector<8x32xf32>
    %135 = vector.extract_strided_slice %132 {offsets = [0, 0], sizes = [8, 32], strides = [1, 1]} : vector<8x96xf32> to vector<8x32xf32>
    %136 = vector.extract_strided_slice %132 {offsets = [0, 32], sizes = [8, 32], strides = [1, 1]} : vector<8x96xf32> to vector<8x32xf32>
    %137 = vector.extract_strided_slice %132 {offsets = [0, 64], sizes = [8, 32], strides = [1, 1]} : vector<8x96xf32> to vector<8x32xf32>
    %138 = arith.mulf %136, %121 : vector<8x32xf32>
    %139 = arith.mulf %135, %134 : vector<8x32xf32>
    %140 = arith.addf %138, %139 : vector<8x32xf32>
    %141 = math.tanh %140 : vector<8x32xf32>
    %142 = arith.mulf %137, %141 : vector<8x32xf32>
    %143 = vector.extract_strided_slice %7 {offsets = [56, 0], sizes = [8, 128], strides = [1, 1]} : vector<64x128xf32> to vector<8x128xf32>
    %cst_25 = arith.constant dense<0.000000e+00> : vector<8x128xf32>
    %144 = tpu.matmul %142, %0, %cst_25 {dimension_numbers = #tpu.dot_dimension_numbers<[1], [0], [0], [1], [0, 0, 1, 1], [], []>} : vector<8x32xf32>, vector<32x128xf32>, vector<8x128xf32> -> vector<8x128xf32>
    %145 = arith.addf %143, %144 : vector<8x128xf32>
    %146 = vector.extract_strided_slice %145 {offsets = [0, 0], sizes = [8, 96], strides = [1, 1]} : vector<8x128xf32> to vector<8x96xf32>
    %147 = arith.negf %146 : vector<8x96xf32>
    %148 = math.exp %147 : vector<8x96xf32>
    %cst_26 = arith.constant 1.000000e+00 : f32
    %149 = vector.broadcast %cst_26 : f32 to vector<8x96xf32>
    %150 = arith.addf %149, %148 : vector<8x96xf32>
    %151 = arith.divf %149, %150 : vector<8x96xf32>
    %152 = vector.extract_strided_slice %145 {offsets = [0, 96], sizes = [8, 32], strides = [1, 1]} : vector<8x128xf32> to vector<8x32xf32>
    %153 = math.tanh %152 : vector<8x32xf32>
    %154 = vector.extract_strided_slice %151 {offsets = [0, 0], sizes = [8, 32], strides = [1, 1]} : vector<8x96xf32> to vector<8x32xf32>
    %155 = vector.extract_strided_slice %151 {offsets = [0, 32], sizes = [8, 32], strides = [1, 1]} : vector<8x96xf32> to vector<8x32xf32>
    %156 = vector.extract_strided_slice %151 {offsets = [0, 64], sizes = [8, 32], strides = [1, 1]} : vector<8x96xf32> to vector<8x32xf32>
    %157 = arith.mulf %155, %140 : vector<8x32xf32>
    %158 = arith.mulf %154, %153 : vector<8x32xf32>
    %159 = arith.addf %157, %158 : vector<8x32xf32>
    %160 = math.tanh %159 : vector<8x32xf32>
    %161 = arith.mulf %156, %160 : vector<8x32xf32>
    %162 = tpu.concatenate %28, %47, %66, %85, %104, %123, %142, %161 in 0 : vector<8x32xf32>, vector<8x32xf32>, vector<8x32xf32>, vector<8x32xf32>, vector<8x32xf32>, vector<8x32xf32>, vector<8x32xf32>, vector<8x32xf32> -> vector<64x32xf32>
    %c0_27 = arith.constant 0 : index
    %c0_28 = arith.constant 0 : index
    %163 = vector.load %arg4[%c0_27, %c0_28] : memref<32x128xf32, #tpu.memory_space<vmem>>, vector<32x128xf32>
    %cst_29 = arith.constant dense<0.000000e+00> : vector<64x128xf32>
    %164 = tpu.matmul %162, %163, %cst_29 {dimension_numbers = #tpu.dot_dimension_numbers<[1], [0], [0], [1], [0, 0, 1, 1], [], []>} : vector<64x32xf32>, vector<32x128xf32>, vector<64x128xf32> -> vector<64x128xf32>
    %c0_30 = arith.constant 0 : index
    %c0_31 = arith.constant 0 : index
    %165 = vector.load %arg6[%c0_30, %c0_31] : memref<1x128xf32, #tpu.memory_space<vmem>>, vector<1x128xf32>
    %166 = vector.broadcast %165 : vector<1x128xf32> to vector<64x128xf32>
    %167 = arith.addf %164, %166 : vector<64x128xf32>
    %cst_32 = arith.constant 0.000000e+00 : f32
    %168 = vector.broadcast %cst_32 : f32 to vector<8x32xf32>
    %cst_33 = arith.constant 0.000000e+00 : f32
    %169 = vector.broadcast %cst_33 : f32 to vector<8x32xf32>
    %170 = vector.extract_strided_slice %167 {offsets = [0, 0], sizes = [8, 128], strides = [1, 1]} : vector<64x128xf32> to vector<8x128xf32>
    %cst_34 = arith.constant dense<0.000000e+00> : vector<8x128xf32>
    %171 = tpu.matmul %168, %1, %cst_34 {dimension_numbers = #tpu.dot_dimension_numbers<[1], [0], [0], [1], [0, 0, 1, 1], [], []>} : vector<8x32xf32>, vector<32x128xf32>, vector<8x128xf32> -> vector<8x128xf32>
    %172 = arith.addf %170, %171 : vector<8x128xf32>
    %173 = vector.extract_strided_slice %172 {offsets = [0, 0], sizes = [8, 96], strides = [1, 1]} : vector<8x128xf32> to vector<8x96xf32>
    %174 = arith.negf %173 : vector<8x96xf32>
    %175 = math.exp %174 : vector<8x96xf32>
    %cst_35 = arith.constant 1.000000e+00 : f32
    %176 = vector.broadcast %cst_35 : f32 to vector<8x96xf32>
    %177 = arith.addf %176, %175 : vector<8x96xf32>
    %178 = arith.divf %176, %177 : vector<8x96xf32>
    %179 = vector.extract_strided_slice %172 {offsets = [0, 96], sizes = [8, 32], strides = [1, 1]} : vector<8x128xf32> to vector<8x32xf32>
    %180 = math.tanh %179 : vector<8x32xf32>
    %181 = vector.extract_strided_slice %178 {offsets = [0, 0], sizes = [8, 32], strides = [1, 1]} : vector<8x96xf32> to vector<8x32xf32>
    %182 = vector.extract_strided_slice %178 {offsets = [0, 32], sizes = [8, 32], strides = [1, 1]} : vector<8x96xf32> to vector<8x32xf32>
    %183 = vector.extract_strided_slice %178 {offsets = [0, 64], sizes = [8, 32], strides = [1, 1]} : vector<8x96xf32> to vector<8x32xf32>
    %184 = arith.mulf %182, %169 : vector<8x32xf32>
    %185 = arith.mulf %181, %180 : vector<8x32xf32>
    %186 = arith.addf %184, %185 : vector<8x32xf32>
    %187 = math.tanh %186 : vector<8x32xf32>
    %188 = arith.mulf %183, %187 : vector<8x32xf32>
    %189 = vector.extract_strided_slice %167 {offsets = [8, 0], sizes = [8, 128], strides = [1, 1]} : vector<64x128xf32> to vector<8x128xf32>
    %cst_36 = arith.constant dense<0.000000e+00> : vector<8x128xf32>
    %190 = tpu.matmul %188, %1, %cst_36 {dimension_numbers = #tpu.dot_dimension_numbers<[1], [0], [0], [1], [0, 0, 1, 1], [], []>} : vector<8x32xf32>, vector<32x128xf32>, vector<8x128xf32> -> vector<8x128xf32>
    %191 = arith.addf %189, %190 : vector<8x128xf32>
    %192 = vector.extract_strided_slice %191 {offsets = [0, 0], sizes = [8, 96], strides = [1, 1]} : vector<8x128xf32> to vector<8x96xf32>
    %193 = arith.negf %192 : vector<8x96xf32>
    %194 = math.exp %193 : vector<8x96xf32>
    %cst_37 = arith.constant 1.000000e+00 : f32
    %195 = vector.broadcast %cst_37 : f32 to vector<8x96xf32>
    %196 = arith.addf %195, %194 : vector<8x96xf32>
    %197 = arith.divf %195, %196 : vector<8x96xf32>
    %198 = vector.extract_strided_slice %191 {offsets = [0, 96], sizes = [8, 32], strides = [1, 1]} : vector<8x128xf32> to vector<8x32xf32>
    %199 = math.tanh %198 : vector<8x32xf32>
    %200 = vector.extract_strided_slice %197 {offsets = [0, 0], sizes = [8, 32], strides = [1, 1]} : vector<8x96xf32> to vector<8x32xf32>
    %201 = vector.extract_strided_slice %197 {offsets = [0, 32], sizes = [8, 32], strides = [1, 1]} : vector<8x96xf32> to vector<8x32xf32>
    %202 = vector.extract_strided_slice %197 {offsets = [0, 64], sizes = [8, 32], strides = [1, 1]} : vector<8x96xf32> to vector<8x32xf32>
    %203 = arith.mulf %201, %186 : vector<8x32xf32>
    %204 = arith.mulf %200, %199 : vector<8x32xf32>
    %205 = arith.addf %203, %204 : vector<8x32xf32>
    %206 = math.tanh %205 : vector<8x32xf32>
    %207 = arith.mulf %202, %206 : vector<8x32xf32>
    %208 = vector.extract_strided_slice %167 {offsets = [16, 0], sizes = [8, 128], strides = [1, 1]} : vector<64x128xf32> to vector<8x128xf32>
    %cst_38 = arith.constant dense<0.000000e+00> : vector<8x128xf32>
    %209 = tpu.matmul %207, %1, %cst_38 {dimension_numbers = #tpu.dot_dimension_numbers<[1], [0], [0], [1], [0, 0, 1, 1], [], []>} : vector<8x32xf32>, vector<32x128xf32>, vector<8x128xf32> -> vector<8x128xf32>
    %210 = arith.addf %208, %209 : vector<8x128xf32>
    %211 = vector.extract_strided_slice %210 {offsets = [0, 0], sizes = [8, 96], strides = [1, 1]} : vector<8x128xf32> to vector<8x96xf32>
    %212 = arith.negf %211 : vector<8x96xf32>
    %213 = math.exp %212 : vector<8x96xf32>
    %cst_39 = arith.constant 1.000000e+00 : f32
    %214 = vector.broadcast %cst_39 : f32 to vector<8x96xf32>
    %215 = arith.addf %214, %213 : vector<8x96xf32>
    %216 = arith.divf %214, %215 : vector<8x96xf32>
    %217 = vector.extract_strided_slice %210 {offsets = [0, 96], sizes = [8, 32], strides = [1, 1]} : vector<8x128xf32> to vector<8x32xf32>
    %218 = math.tanh %217 : vector<8x32xf32>
    %219 = vector.extract_strided_slice %216 {offsets = [0, 0], sizes = [8, 32], strides = [1, 1]} : vector<8x96xf32> to vector<8x32xf32>
    %220 = vector.extract_strided_slice %216 {offsets = [0, 32], sizes = [8, 32], strides = [1, 1]} : vector<8x96xf32> to vector<8x32xf32>
    %221 = vector.extract_strided_slice %216 {offsets = [0, 64], sizes = [8, 32], strides = [1, 1]} : vector<8x96xf32> to vector<8x32xf32>
    %222 = arith.mulf %220, %205 : vector<8x32xf32>
    %223 = arith.mulf %219, %218 : vector<8x32xf32>
    %224 = arith.addf %222, %223 : vector<8x32xf32>
    %225 = math.tanh %224 : vector<8x32xf32>
    %226 = arith.mulf %221, %225 : vector<8x32xf32>
    %227 = vector.extract_strided_slice %167 {offsets = [24, 0], sizes = [8, 128], strides = [1, 1]} : vector<64x128xf32> to vector<8x128xf32>
    %cst_40 = arith.constant dense<0.000000e+00> : vector<8x128xf32>
    %228 = tpu.matmul %226, %1, %cst_40 {dimension_numbers = #tpu.dot_dimension_numbers<[1], [0], [0], [1], [0, 0, 1, 1], [], []>} : vector<8x32xf32>, vector<32x128xf32>, vector<8x128xf32> -> vector<8x128xf32>
    %229 = arith.addf %227, %228 : vector<8x128xf32>
    %230 = vector.extract_strided_slice %229 {offsets = [0, 0], sizes = [8, 96], strides = [1, 1]} : vector<8x128xf32> to vector<8x96xf32>
    %231 = arith.negf %230 : vector<8x96xf32>
    %232 = math.exp %231 : vector<8x96xf32>
    %cst_41 = arith.constant 1.000000e+00 : f32
    %233 = vector.broadcast %cst_41 : f32 to vector<8x96xf32>
    %234 = arith.addf %233, %232 : vector<8x96xf32>
    %235 = arith.divf %233, %234 : vector<8x96xf32>
    %236 = vector.extract_strided_slice %229 {offsets = [0, 96], sizes = [8, 32], strides = [1, 1]} : vector<8x128xf32> to vector<8x32xf32>
    %237 = math.tanh %236 : vector<8x32xf32>
    %238 = vector.extract_strided_slice %235 {offsets = [0, 0], sizes = [8, 32], strides = [1, 1]} : vector<8x96xf32> to vector<8x32xf32>
    %239 = vector.extract_strided_slice %235 {offsets = [0, 32], sizes = [8, 32], strides = [1, 1]} : vector<8x96xf32> to vector<8x32xf32>
    %240 = vector.extract_strided_slice %235 {offsets = [0, 64], sizes = [8, 32], strides = [1, 1]} : vector<8x96xf32> to vector<8x32xf32>
    %241 = arith.mulf %239, %224 : vector<8x32xf32>
    %242 = arith.mulf %238, %237 : vector<8x32xf32>
    %243 = arith.addf %241, %242 : vector<8x32xf32>
    %244 = math.tanh %243 : vector<8x32xf32>
    %245 = arith.mulf %240, %244 : vector<8x32xf32>
    %246 = vector.extract_strided_slice %167 {offsets = [32, 0], sizes = [8, 128], strides = [1, 1]} : vector<64x128xf32> to vector<8x128xf32>
    %cst_42 = arith.constant dense<0.000000e+00> : vector<8x128xf32>
    %247 = tpu.matmul %245, %1, %cst_42 {dimension_numbers = #tpu.dot_dimension_numbers<[1], [0], [0], [1], [0, 0, 1, 1], [], []>} : vector<8x32xf32>, vector<32x128xf32>, vector<8x128xf32> -> vector<8x128xf32>
    %248 = arith.addf %246, %247 : vector<8x128xf32>
    %249 = vector.extract_strided_slice %248 {offsets = [0, 0], sizes = [8, 96], strides = [1, 1]} : vector<8x128xf32> to vector<8x96xf32>
    %250 = arith.negf %249 : vector<8x96xf32>
    %251 = math.exp %250 : vector<8x96xf32>
    %cst_43 = arith.constant 1.000000e+00 : f32
    %252 = vector.broadcast %cst_43 : f32 to vector<8x96xf32>
    %253 = arith.addf %252, %251 : vector<8x96xf32>
    %254 = arith.divf %252, %253 : vector<8x96xf32>
    %255 = vector.extract_strided_slice %248 {offsets = [0, 96], sizes = [8, 32], strides = [1, 1]} : vector<8x128xf32> to vector<8x32xf32>
    %256 = math.tanh %255 : vector<8x32xf32>
    %257 = vector.extract_strided_slice %254 {offsets = [0, 0], sizes = [8, 32], strides = [1, 1]} : vector<8x96xf32> to vector<8x32xf32>
    %258 = vector.extract_strided_slice %254 {offsets = [0, 32], sizes = [8, 32], strides = [1, 1]} : vector<8x96xf32> to vector<8x32xf32>
    %259 = vector.extract_strided_slice %254 {offsets = [0, 64], sizes = [8, 32], strides = [1, 1]} : vector<8x96xf32> to vector<8x32xf32>
    %260 = arith.mulf %258, %243 : vector<8x32xf32>
    %261 = arith.mulf %257, %256 : vector<8x32xf32>
    %262 = arith.addf %260, %261 : vector<8x32xf32>
    %263 = math.tanh %262 : vector<8x32xf32>
    %264 = arith.mulf %259, %263 : vector<8x32xf32>
    %265 = vector.extract_strided_slice %167 {offsets = [40, 0], sizes = [8, 128], strides = [1, 1]} : vector<64x128xf32> to vector<8x128xf32>
    %cst_44 = arith.constant dense<0.000000e+00> : vector<8x128xf32>
    %266 = tpu.matmul %264, %1, %cst_44 {dimension_numbers = #tpu.dot_dimension_numbers<[1], [0], [0], [1], [0, 0, 1, 1], [], []>} : vector<8x32xf32>, vector<32x128xf32>, vector<8x128xf32> -> vector<8x128xf32>
    %267 = arith.addf %265, %266 : vector<8x128xf32>
    %268 = vector.extract_strided_slice %267 {offsets = [0, 0], sizes = [8, 96], strides = [1, 1]} : vector<8x128xf32> to vector<8x96xf32>
    %269 = arith.negf %268 : vector<8x96xf32>
    %270 = math.exp %269 : vector<8x96xf32>
    %cst_45 = arith.constant 1.000000e+00 : f32
    %271 = vector.broadcast %cst_45 : f32 to vector<8x96xf32>
    %272 = arith.addf %271, %270 : vector<8x96xf32>
    %273 = arith.divf %271, %272 : vector<8x96xf32>
    %274 = vector.extract_strided_slice %267 {offsets = [0, 96], sizes = [8, 32], strides = [1, 1]} : vector<8x128xf32> to vector<8x32xf32>
    %275 = math.tanh %274 : vector<8x32xf32>
    %276 = vector.extract_strided_slice %273 {offsets = [0, 0], sizes = [8, 32], strides = [1, 1]} : vector<8x96xf32> to vector<8x32xf32>
    %277 = vector.extract_strided_slice %273 {offsets = [0, 32], sizes = [8, 32], strides = [1, 1]} : vector<8x96xf32> to vector<8x32xf32>
    %278 = vector.extract_strided_slice %273 {offsets = [0, 64], sizes = [8, 32], strides = [1, 1]} : vector<8x96xf32> to vector<8x32xf32>
    %279 = arith.mulf %277, %262 : vector<8x32xf32>
    %280 = arith.mulf %276, %275 : vector<8x32xf32>
    %281 = arith.addf %279, %280 : vector<8x32xf32>
    %282 = math.tanh %281 : vector<8x32xf32>
    %283 = arith.mulf %278, %282 : vector<8x32xf32>
    %284 = vector.extract_strided_slice %167 {offsets = [48, 0], sizes = [8, 128], strides = [1, 1]} : vector<64x128xf32> to vector<8x128xf32>
    %cst_46 = arith.constant dense<0.000000e+00> : vector<8x128xf32>
    %285 = tpu.matmul %283, %1, %cst_46 {dimension_numbers = #tpu.dot_dimension_numbers<[1], [0], [0], [1], [0, 0, 1, 1], [], []>} : vector<8x32xf32>, vector<32x128xf32>, vector<8x128xf32> -> vector<8x128xf32>
    %286 = arith.addf %284, %285 : vector<8x128xf32>
    %287 = vector.extract_strided_slice %286 {offsets = [0, 0], sizes = [8, 96], strides = [1, 1]} : vector<8x128xf32> to vector<8x96xf32>
    %288 = arith.negf %287 : vector<8x96xf32>
    %289 = math.exp %288 : vector<8x96xf32>
    %cst_47 = arith.constant 1.000000e+00 : f32
    %290 = vector.broadcast %cst_47 : f32 to vector<8x96xf32>
    %291 = arith.addf %290, %289 : vector<8x96xf32>
    %292 = arith.divf %290, %291 : vector<8x96xf32>
    %293 = vector.extract_strided_slice %286 {offsets = [0, 96], sizes = [8, 32], strides = [1, 1]} : vector<8x128xf32> to vector<8x32xf32>
    %294 = math.tanh %293 : vector<8x32xf32>
    %295 = vector.extract_strided_slice %292 {offsets = [0, 0], sizes = [8, 32], strides = [1, 1]} : vector<8x96xf32> to vector<8x32xf32>
    %296 = vector.extract_strided_slice %292 {offsets = [0, 32], sizes = [8, 32], strides = [1, 1]} : vector<8x96xf32> to vector<8x32xf32>
    %297 = vector.extract_strided_slice %292 {offsets = [0, 64], sizes = [8, 32], strides = [1, 1]} : vector<8x96xf32> to vector<8x32xf32>
    %298 = arith.mulf %296, %281 : vector<8x32xf32>
    %299 = arith.mulf %295, %294 : vector<8x32xf32>
    %300 = arith.addf %298, %299 : vector<8x32xf32>
    %301 = math.tanh %300 : vector<8x32xf32>
    %302 = arith.mulf %297, %301 : vector<8x32xf32>
    %303 = vector.extract_strided_slice %167 {offsets = [56, 0], sizes = [8, 128], strides = [1, 1]} : vector<64x128xf32> to vector<8x128xf32>
    %cst_48 = arith.constant dense<0.000000e+00> : vector<8x128xf32>
    %304 = tpu.matmul %302, %1, %cst_48 {dimension_numbers = #tpu.dot_dimension_numbers<[1], [0], [0], [1], [0, 0, 1, 1], [], []>} : vector<8x32xf32>, vector<32x128xf32>, vector<8x128xf32> -> vector<8x128xf32>
    %305 = arith.addf %303, %304 : vector<8x128xf32>
    %306 = vector.extract_strided_slice %305 {offsets = [0, 0], sizes = [8, 96], strides = [1, 1]} : vector<8x128xf32> to vector<8x96xf32>
    %307 = arith.negf %306 : vector<8x96xf32>
    %308 = math.exp %307 : vector<8x96xf32>
    %cst_49 = arith.constant 1.000000e+00 : f32
    %309 = vector.broadcast %cst_49 : f32 to vector<8x96xf32>
    %310 = arith.addf %309, %308 : vector<8x96xf32>
    %311 = arith.divf %309, %310 : vector<8x96xf32>
    %312 = vector.extract_strided_slice %305 {offsets = [0, 96], sizes = [8, 32], strides = [1, 1]} : vector<8x128xf32> to vector<8x32xf32>
    %313 = math.tanh %312 : vector<8x32xf32>
    %314 = vector.extract_strided_slice %311 {offsets = [0, 0], sizes = [8, 32], strides = [1, 1]} : vector<8x96xf32> to vector<8x32xf32>
    %315 = vector.extract_strided_slice %311 {offsets = [0, 32], sizes = [8, 32], strides = [1, 1]} : vector<8x96xf32> to vector<8x32xf32>
    %316 = vector.extract_strided_slice %311 {offsets = [0, 64], sizes = [8, 32], strides = [1, 1]} : vector<8x96xf32> to vector<8x32xf32>
    %317 = arith.mulf %315, %300 : vector<8x32xf32>
    %318 = arith.mulf %314, %313 : vector<8x32xf32>
    %319 = arith.addf %317, %318 : vector<8x32xf32>
    %320 = math.tanh %319 : vector<8x32xf32>
    %321 = arith.mulf %316, %320 : vector<8x32xf32>
    %c0_50 = arith.constant 0 : index
    %c0_51 = arith.constant 0 : index
    %322 = vector.load %arg22[%c0_50, %c0_51] : memref<8x32xf32, #tpu.memory_space<vmem>>, vector<8x32xf32>
    tpu.vector_store %arg22[%c0_50, %c0_51], %321 {strides = array<i32>} : memref<8x32xf32, #tpu.memory_space<vmem>>, vector<8x32xf32>,
    %c0_52 = arith.constant 0 : index
    %c0_53 = arith.constant 0 : index
    %323 = vector.load %arg8[%c0_52, %c0_53] : memref<8x64xf32, #tpu.memory_space<vmem>>, vector<8x64xf32>
    %c0_54 = arith.constant 0 : index
    %c0_55 = arith.constant 0 : index
    %324 = vector.load %arg9[%c0_54, %c0_55] : memref<64x64xf32, #tpu.memory_space<vmem>>, vector<64x64xf32>
    %cst_56 = arith.constant dense<0.000000e+00> : vector<8x64xf32>
    %325 = tpu.matmul %323, %324, %cst_56 {dimension_numbers = #tpu.dot_dimension_numbers<[1], [0], [0], [1], [0, 0, 1, 1], [], []>} : vector<8x64xf32>, vector<64x64xf32>, vector<8x64xf32> -> vector<8x64xf32>
    %c0_57 = arith.constant 0 : index
    %c0_58 = arith.constant 0 : index
    %326 = vector.load %arg10[%c0_57, %c0_58] : memref<1x64xf32, #tpu.memory_space<vmem>>, vector<1x64xf32>
    %327 = vector.broadcast %326 : vector<1x64xf32> to vector<8x64xf32>
    %328 = arith.addf %325, %327 : vector<8x64xf32>
    %329 = arith.negf %328 : vector<8x64xf32>
    %330 = math.exp %329 : vector<8x64xf32>
    %cst_59 = arith.constant 1.000000e+00 : f32
    %331 = vector.broadcast %cst_59 : f32 to vector<8x64xf32>
    %332 = arith.addf %331, %330 : vector<8x64xf32>
    %333 = arith.divf %331, %332 : vector<8x64xf32>
    %334 = arith.mulf %328, %333 : vector<8x64xf32>
    %c0_60 = arith.constant 0 : index
    %c0_61 = arith.constant 0 : index
    %335 = vector.load %arg11[%c0_60, %c0_61] : memref<64x64xf32, #tpu.memory_space<vmem>>, vector<64x64xf32>
    %cst_62 = arith.constant dense<0.000000e+00> : vector<8x64xf32>
    %336 = tpu.matmul %334, %335, %cst_62 {dimension_numbers = #tpu.dot_dimension_numbers<[1], [0], [0], [1], [0, 0, 1, 1], [], []>} : vector<8x64xf32>, vector<64x64xf32>, vector<8x64xf32> -> vector<8x64xf32>
    %c0_63 = arith.constant 0 : index
    %c0_64 = arith.constant 0 : index
    %337 = vector.load %arg12[%c0_63, %c0_64] : memref<1x64xf32, #tpu.memory_space<vmem>>, vector<1x64xf32>
    %338 = vector.broadcast %337 : vector<1x64xf32> to vector<8x64xf32>
    %339 = arith.addf %336, %338 : vector<8x64xf32>
    %c0_65 = arith.constant 0 : index
    %c0_66 = arith.constant 0 : index
    %340 = vector.load %arg7[%c0_65, %c0_66] : memref<8x16xf32, #tpu.memory_space<vmem>>, vector<8x16xf32>
    %c0_67 = arith.constant 0 : index
    %c0_68 = arith.constant 0 : index
    %341 = vector.load %arg13[%c0_67, %c0_68] : memref<16x32xf32, #tpu.memory_space<vmem>>, vector<16x32xf32>
    %cst_69 = arith.constant dense<0.000000e+00> : vector<8x32xf32>
    %342 = tpu.matmul %340, %341, %cst_69 {dimension_numbers = #tpu.dot_dimension_numbers<[1], [0], [0], [1], [0, 0, 1, 1], [], []>} : vector<8x16xf32>, vector<16x32xf32>, vector<8x32xf32> -> vector<8x32xf32>
    %c0_70 = arith.constant 0 : index
    %c0_71 = arith.constant 0 : index
    %343 = vector.load %arg14[%c0_70, %c0_71] : memref<64x32xf32, #tpu.memory_space<vmem>>, vector<64x32xf32>
    %cst_72 = arith.constant dense<0.000000e+00> : vector<8x32xf32>
    %344 = tpu.matmul %339, %343, %cst_72 {dimension_numbers = #tpu.dot_dimension_numbers<[1], [0], [0], [1], [0, 0, 1, 1], [], []>} : vector<8x64xf32>, vector<64x32xf32>, vector<8x32xf32> -> vector<8x32xf32>
    %345 = arith.addf %342, %344 : vector<8x32xf32>
    %c0_73 = arith.constant 0 : index
    %c0_74 = arith.constant 0 : index
    %346 = vector.load %arg15[%c0_73, %c0_74] : memref<32x32xf32, #tpu.memory_space<vmem>>, vector<32x32xf32>
    %cst_75 = arith.constant dense<0.000000e+00> : vector<8x32xf32>
    %347 = tpu.matmul %321, %346, %cst_75 {dimension_numbers = #tpu.dot_dimension_numbers<[1], [0], [0], [1], [0, 0, 1, 1], [], []>} : vector<8x32xf32>, vector<32x32xf32>, vector<8x32xf32> -> vector<8x32xf32>
    %348 = arith.addf %345, %347 : vector<8x32xf32>
    %c0_76 = arith.constant 0 : index
    %c0_77 = arith.constant 0 : index
    %349 = vector.load %arg16[%c0_76, %c0_77] : memref<1x32xf32, #tpu.memory_space<vmem>>, vector<1x32xf32>
    %350 = vector.broadcast %349 : vector<1x32xf32> to vector<8x32xf32>
    %351 = arith.addf %348, %350 : vector<8x32xf32>
    %cst_78 = arith.constant 0.000000e+00 : f32
    %352 = vector.broadcast %cst_78 : f32 to vector<8x32xf32>
    %353 = arith.maximumf %351, %352 : vector<8x32xf32>
    %c0_79 = arith.constant 0 : index
    %c0_80 = arith.constant 0 : index
    %354 = vector.load %arg17[%c0_79, %c0_80] : memref<32x32xf32, #tpu.memory_space<vmem>>, vector<32x32xf32>
    %cst_81 = arith.constant dense<0.000000e+00> : vector<8x32xf32>
    %355 = tpu.matmul %353, %354, %cst_81 {dimension_numbers = #tpu.dot_dimension_numbers<[1], [0], [0], [1], [0, 0, 1, 1], [], []>} : vector<8x32xf32>, vector<32x32xf32>, vector<8x32xf32> -> vector<8x32xf32>
    %c0_82 = arith.constant 0 : index
    %c0_83 = arith.constant 0 : index
    %356 = vector.load %arg18[%c0_82, %c0_83] : memref<1x32xf32, #tpu.memory_space<vmem>>, vector<1x32xf32>
    %357 = vector.broadcast %356 : vector<1x32xf32> to vector<8x32xf32>
    %358 = arith.addf %355, %357 : vector<8x32xf32>
    %cst_84 = arith.constant 0.000000e+00 : f32
    %359 = vector.broadcast %cst_84 : f32 to vector<8x32xf32>
    %360 = arith.maximumf %358, %359 : vector<8x32xf32>
    %c0_85 = arith.constant 0 : index
    %c0_86 = arith.constant 0 : index
    %361 = vector.load %arg19[%c0_85, %c0_86] : memref<32x16xf32, #tpu.memory_space<vmem>>, vector<32x16xf32>
    %cst_87 = arith.constant dense<0.000000e+00> : vector<8x16xf32>
    %362 = tpu.matmul %360, %361, %cst_87 {dimension_numbers = #tpu.dot_dimension_numbers<[1], [0], [0], [1], [0, 0, 1, 1], [], []>} : vector<8x32xf32>, vector<32x16xf32>, vector<8x16xf32> -> vector<8x16xf32>
    %c0_88 = arith.constant 0 : index
    %c0_89 = arith.constant 0 : index
    %363 = vector.load %arg20[%c0_88, %c0_89] : memref<1x16xf32, #tpu.memory_space<vmem>>, vector<1x16xf32>
    %364 = vector.broadcast %363 : vector<1x16xf32> to vector<8x16xf32>
    %365 = arith.addf %362, %364 : vector<8x16xf32>
    %c0_90 = arith.constant 0 : index
    %c0_91 = arith.constant 0 : index
    %366 = vector.load %arg21[%c0_90, %c0_91] : memref<8x16xf32, #tpu.memory_space<vmem>>, vector<8x16xf32>
    tpu.vector_store %arg21[%c0_90, %c0_91], %365 {strides = array<i32>} : memref<8x16xf32, #tpu.memory_space<vmem>>, vector<8x16xf32>,
    return
  }
}

</mosaic_0001>

<llo_original>
// kernel: tpu_custom_call.1
$region0: #{tpu_custom_call.1}
  #allocation0 [shape = 'u32[]', space=smem, size = 0x4, offset = 0x4, fixed_abs, tag = 'smem constant byte address 0x4 - core index']
  #allocation1 [shape = 'u32[144,128]{1,0:T(1,128)}', space=vmem, size = 0x12000, scoped, tag = 'internal scratch']
  %s0 = inlined_call_operand.vmem [shape: f32[64,16], index: 0, kind: input, shape index: {}]
  %s1 = inlined_call_operand.hbm [shape: f32[16,128], index: 1, kind: input, shape index: {}]
  %s2 = inlined_call_operand.vmem [shape: f32[32,128], index: 2, kind: input, shape index: {}]
  %s3 = inlined_call_operand.hbm [shape: f32[1,128], index: 3, kind: input, shape index: {}]
  %s4 = inlined_call_operand.vmem [shape: f32[32,128], index: 4, kind: input, shape index: {}]
  %s5 = inlined_call_operand.hbm [shape: f32[32,128], index: 5, kind: input, shape index: {}]
  %s6 = inlined_call_operand.hbm [shape: f32[1,128], index: 6, kind: input, shape index: {}]
  %s7 = inlined_call_operand.hbm [shape: f32[8,16], index: 7, kind: input, shape index: {}]
  %s8 = inlined_call_operand.hbm [shape: f32[8,64], index: 8, kind: input, shape index: {}]
  %s9 = inlined_call_operand.vmem [shape: f32[64,64], index: 9, kind: input, shape index: {}]
  %s10 = inlined_call_operand.hbm [shape: f32[1,64], index: 10, kind: input, shape index: {}]
  %s11 = inlined_call_operand.vmem [shape: f32[64,64], index: 11, kind: input, shape index: {}]
  %s12 = inlined_call_operand.hbm [shape: f32[1,64], index: 12, kind: input, shape index: {}]
  %s13 = inlined_call_operand.hbm [shape: f32[16,32], index: 13, kind: input, shape index: {}]
  %s14 = inlined_call_operand.vmem [shape: f32[64,32], index: 14, kind: input, shape index: {}]
  %s15 = inlined_call_operand.vmem [shape: f32[32,32], index: 15, kind: input, shape index: {}]
  %s16 = inlined_call_operand.hbm [shape: f32[1,32], index: 16, kind: input, shape index: {}]
  %s17 = inlined_call_operand.vmem [shape: f32[32,32], index: 17, kind: input, shape index: {}]
  %s18 = inlined_call_operand.vmem [shape: f32[1,32], index: 18, kind: input, shape index: {}]
  %s19 = inlined_call_operand.vmem [shape: f32[32,16], index: 19, kind: input, shape index: {}]
  %s20 = inlined_call_operand.vmem [shape: f32[1,16], index: 20, kind: input, shape index: {}]
  %s21 = inlined_call_operand.hbm [shape: f32[8,16], index: 21, kind: output, shape index: {0}]
  %s22 = inlined_call_operand.hbm [shape: f32[8,32], index: 22, kind: output, shape index: {1}]
  %23 = xla_tuple %s21, %s22
  %s24 = sld [smem:[#allocation0]]
  $region142: #{tpu_custom_call.1} parent=0
    _
  %s26 = ssub.s32 1, %s24
  %s27 = scalar_select 0, %s26, %s24
  $region1: #{tpu_custom_call.1} parent=0
    #allocation2 [shape = 'u8[8192]{0}', space=vmem, size = 0x2000, scoped, tag = 'input window, operand 1, single buffered']
    #allocation3 [shape = 's32[1]{0}', space=sflag, size = 0x4, scoped, tag = 'scoped memory for tpu_custom_call.1']
    #allocation4 [shape = 's32[1]{0}', space=sflag, size = 0x4, scoped, tag = 'scoped memory for tpu_custom_call.1']
    #allocation5 [shape = 'u8[512]{0}', space=vmem, size = 0x400, scoped, tag = 'input window, operand 3, single buffered']
    #allocation6 [shape = 's32[1]{0}', space=sflag, size = 0x4, scoped, tag = 'scoped memory for tpu_custom_call.1']
    #allocation7 [shape = 'u8[16384]{0}', space=vmem, size = 0x4000, scoped, tag = 'input window, operand 5, single buffered']
    #allocation8 [shape = 'u8[512]{0}', space=vmem, size = 0x400, scoped, tag = 'input window, operand 6, single buffered']
    #allocation9 [shape = 's32[1]{0}', space=sflag, size = 0x4, scoped, tag = 'scoped memory for tpu_custom_call.1']
    #allocation10 [shape = 'u8[4096]{0}', space=vmem, size = 0x1000, scoped, tag = 'input window, operand 7, single buffered']
    #allocation11 [shape = 'u8[4096]{0}', space=vmem, size = 0x1000, scoped, tag = 'input window, operand 8, single buffered']
    #allocation12 [shape = 's32[1]{0}', space=sflag, size = 0x4, scoped, tag = 'scoped memory for tpu_custom_call.1']
    #allocation13 [shape = 'u8[512]{0}', space=vmem, size = 0x400, scoped, tag = 'input window, operand 10, single buffered']
    #allocation14 [shape = 'u8[512]{0}', space=vmem, size = 0x400, scoped, tag = 'input window, operand 12, single buffered']
    #allocation15 [shape = 's32[1]{0}', space=sflag, size = 0x4, scoped, tag = 'scoped memory for tpu_custom_call.1']
    #allocation16 [shape = 'u8[8192]{0}', space=vmem, size = 0x2000, scoped, tag = 'input window, operand 13, single buffered']
    #allocation17 [shape = 'u8[512]{0}', space=vmem, size = 0x400, scoped, tag = 'input window, operand 16, single buffered']
    #allocation18 [shape = 's32[1]{0}', space=sflag, size = 0x4, scoped, tag = 'scoped memory for tpu_custom_call.1']
    #allocation19 [shape = 'u8[4096]{0}', space=vmem, size = 0x1000, scoped, tag = 'output window, operand 0, single buffered']
    #allocation20 [shape = 'u8[4096]{0}', space=vmem, size = 0x1000, scoped, tag = 'output window, operand 1, single buffered']
    #allocation21 [shape = 's32[1]{0}', space=sflag, size = 0x4, scoped, tag = 'scoped memory for tpu_custom_call.1']
    %28 = vsyncpa [#allocation3], 0
    %29 = vsyncpa [#allocation6], 0
    %30 = vsyncpa [#allocation9], 0
    %31 = vsyncpa [#allocation12], 0
    %32 = vsyncpa [#allocation15], 0
    %33 = vsyncpa [#allocation18], 0
    %34 = vsyncpa [#allocation4], 0
    %35 = vsyncpa [#allocation21], 0
    // Predicated region
    $region2: #{tpu_custom_call.1} parent=1 // pred_check
      _
    $region3: #{tpu_custom_call.1} parent=1 // pred_check_branch
      %37 = sbr.rel (0) target = $region5
    $region4: #{tpu_custom_call.1} parent=1 // pred_region
      _
    $region5: #{tpu_custom_call.1} parent=1 // pred_fallthru
      _
    // Predicated region
    $region6: #{tpu_custom_call.1} parent=1 // pred_check
      _
    $region7: #{tpu_custom_call.1} parent=1 // pred_check_branch
      %39 = sbr.rel (0) target = $region9
    $region8: #{tpu_custom_call.1} parent=1 // pred_region
      %s41 = ssub.s32 256, 256
      %42 = vsyncadd [#allocation3], %s41
      %s43 = sshll.u32 [#allocation2], 4
      %s44 = int_to_ptr.vmem [resolvable:$true] %s43
      %49 = dma.hbm_to_vmem [thread:$0]  %s1, 256, %s44, [#allocation3], 128, 128, 8
    $region9: #{tpu_custom_call.1} parent=1 // pred_fallthru
      _
    // Predicated region
    $region10: #{tpu_custom_call.1} parent=1 // pred_check
      _
    $region11: #{tpu_custom_call.1} parent=1 // pred_check_branch
      %51 = sbr.rel (0) target = $region13
    $region12: #{tpu_custom_call.1} parent=1 // pred_region
      _
    $region13: #{tpu_custom_call.1} parent=1 // pred_fallthru
      _
    // Predicated region
    $region14: #{tpu_custom_call.1} parent=1 // pred_check
      _
    $region15: #{tpu_custom_call.1} parent=1 // pred_check_branch
      %53 = sbr.rel (0) target = $region17
    $region16: #{tpu_custom_call.1} parent=1 // pred_region
      %s55 = ssub.s32 16, 16
      %56 = vsyncadd [#allocation6], %s55
      %s58 = sshll.u32 [#allocation5], 4
      %s59 = int_to_ptr.vmem [resolvable:$true] %s58
      %61 = dma.hbm_to_vmem [thread:$0]  %s3, 16, %s59, [#allocation6]
    $region17: #{tpu_custom_call.1} parent=1 // pred_fallthru
      _
    // Predicated region
    $region18: #{tpu_custom_call.1} parent=1 // pred_check
      _
    $region19: #{tpu_custom_call.1} parent=1 // pred_check_branch
      %63 = sbr.rel (0) target = $region21
    $region20: #{tpu_custom_call.1} parent=1 // pred_region
      _
    $region21: #{tpu_custom_call.1} parent=1 // pred_fallthru
      _
    // Predicated region
    $region22: #{tpu_custom_call.1} parent=1 // pred_check
      _
    $region23: #{tpu_custom_call.1} parent=1 // pred_check_branch
      %65 = sbr.rel (0) target = $region25
    $region24: #{tpu_custom_call.1} parent=1 // pred_region
      %s67 = ssub.s32 512, 512
      %68 = vsyncadd [#allocation6], %s67
      %s69 = sshll.u32 [#allocation7], 4
      %s70 = int_to_ptr.vmem [resolvable:$true] %s69
      %75 = dma.hbm_to_vmem [thread:$0]  %s5, 512, %s70, [#allocation6], 128, 128, 8
    $region25: #{tpu_custom_call.1} parent=1 // pred_fallthru
      _
    // Predicated region
    $region26: #{tpu_custom_call.1} parent=1 // pred_check
      _
    $region27: #{tpu_custom_call.1} parent=1 // pred_check_branch
      %77 = sbr.rel (0) target = $region29
    $region28: #{tpu_custom_call.1} parent=1 // pred_region
      %s79 = ssub.s32 16, 16
      %80 = vsyncadd [#allocation9], %s79
      %s82 = sshll.u32 [#allocation8], 4
      %s83 = int_to_ptr.vmem [resolvable:$true] %s82
      %85 = dma.hbm_to_vmem [thread:$0]  %s6, 16, %s83, [#allocation9]
    $region29: #{tpu_custom_call.1} parent=1 // pred_fallthru
      _
    // Predicated region
    $region30: #{tpu_custom_call.1} parent=1 // pred_check
      _
    $region31: #{tpu_custom_call.1} parent=1 // pred_check_branch
      %87 = sbr.rel (0) target = $region33
    $region32: #{tpu_custom_call.1} parent=1 // pred_region
      %s89 = ssub.s32 128, 128
      %90 = vsyncadd [#allocation9], %s89
      %s92 = sshll.u32 [#allocation10], 4
      %s93 = int_to_ptr.vmem [resolvable:$true] %s92
      %95 = dma.hbm_to_vmem [thread:$0]  %s7, 128, %s93, [#allocation9]
    $region33: #{tpu_custom_call.1} parent=1 // pred_fallthru
      _
    // Predicated region
    $region34: #{tpu_custom_call.1} parent=1 // pred_check
      _
    $region35: #{tpu_custom_call.1} parent=1 // pred_check_branch
      %97 = sbr.rel (0) target = $region37
    $region36: #{tpu_custom_call.1} parent=1 // pred_region
      %s99 = ssub.s32 128, 128
      %100 = vsyncadd [#allocation12], %s99
      %s102 = sshll.u32 [#allocation11], 4
      %s103 = int_to_ptr.vmem [resolvable:$true] %s102
      %105 = dma.hbm_to_vmem [thread:$0]  %s8, 128, %s103, [#allocation12]
    $region37: #{tpu_custom_call.1} parent=1 // pred_fallthru
      _
    // Predicated region
    $region38: #{tpu_custom_call.1} parent=1 // pred_check
      _
    $region39: #{tpu_custom_call.1} parent=1 // pred_check_branch
      %107 = sbr.rel (0) target = $region41
    $region40: #{tpu_custom_call.1} parent=1 // pred_region
      _
    $region41: #{tpu_custom_call.1} parent=1 // pred_fallthru
      _
    // Predicated region
    $region42: #{tpu_custom_call.1} parent=1 // pred_check
      _
    $region43: #{tpu_custom_call.1} parent=1 // pred_check_branch
      %109 = sbr.rel (0) target = $region45
    $region44: #{tpu_custom_call.1} parent=1 // pred_region
      %s111 = ssub.s32 16, 16
      %112 = vsyncadd [#allocation12], %s111
      %s114 = sshll.u32 [#allocation13], 4
      %s115 = int_to_ptr.vmem [resolvable:$true] %s114
      %117 = dma.hbm_to_vmem [thread:$0]  %s10, 16, %s115, [#allocation12]
    $region45: #{tpu_custom_call.1} parent=1 // pred_fallthru
      _
    // Predicated region
    $region46: #{tpu_custom_call.1} parent=1 // pred_check
      _
    $region47: #{tpu_custom_call.1} parent=1 // pred_check_branch
      %119 = sbr.rel (0) target = $region49
    $region48: #{tpu_custom_call.1} parent=1 // pred_region
      _
    $region49: #{tpu_custom_call.1} parent=1 // pred_fallthru
      _
    // Predicated region
    $region50: #{tpu_custom_call.1} parent=1 // pred_check
      _
    $region51: #{tpu_custom_call.1} parent=1 // pred_check_branch
      %121 = sbr.rel (0) target = $region53
    $region52: #{tpu_custom_call.1} parent=1 // pred_region
      %s123 = ssub.s32 16, 16
      %124 = vsyncadd [#allocation15], %s123
      %s126 = sshll.u32 [#allocation14], 4
      %s127 = int_to_ptr.vmem [resolvable:$true] %s126
      %129 = dma.hbm_to_vmem [thread:$0]  %s12, 16, %s127, [#allocation15]
    $region53: #{tpu_custom_call.1} parent=1 // pred_fallthru
      _
    // Predicated region
    $region54: #{tpu_custom_call.1} parent=1 // pred_check
      _
    $region55: #{tpu_custom_call.1} parent=1 // pred_check_branch
      %131 = sbr.rel (0) target = $region57
    $region56: #{tpu_custom_call.1} parent=1 // pred_region
      %s133 = ssub.s32 256, 256
      %134 = vsyncadd [#allocation15], %s133
      %s135 = sshll.u32 [#allocation16], 4
      %s136 = int_to_ptr.vmem [resolvable:$true] %s135
      %141 = dma.hbm_to_vmem [thread:$0]  %s13, 256, %s136, [#allocation15], 128, 128, 8
    $region57: #{tpu_custom_call.1} parent=1 // pred_fallthru
      _
    // Predicated region
    $region58: #{tpu_custom_call.1} parent=1 // pred_check
      _
    $region59: #{tpu_custom_call.1} parent=1 // pred_check_branch
      %143 = sbr.rel (0) target = $region61
    $region60: #{tpu_custom_call.1} parent=1 // pred_region
      _
    $region61: #{tpu_custom_call.1} parent=1 // pred_fallthru
      _
    // Predicated region
    $region62: #{tpu_custom_call.1} parent=1 // pred_check
      _
    $region63: #{tpu_custom_call.1} parent=1 // pred_check_branch
      %145 = sbr.rel (0) target = $region65
    $region64: #{tpu_custom_call.1} parent=1 // pred_region
      _
    $region65: #{tpu_custom_call.1} parent=1 // pred_fallthru
      _
    // Predicated region
    $region66: #{tpu_custom_call.1} parent=1 // pred_check
      _
    $region67: #{tpu_custom_call.1} parent=1 // pred_check_branch
      %147 = sbr.rel (0) target = $region69
    $region68: #{tpu_custom_call.1} parent=1 // pred_region
      %s149 = ssub.s32 16, 16
      %150 = vsyncadd [#allocation18], %s149
      %s152 = sshll.u32 [#allocation17], 4
      %s153 = int_to_ptr.vmem [resolvable:$true] %s152
      %155 = dma.hbm_to_vmem [thread:$0]  %s16, 16, %s153, [#allocation18]
    $region69: #{tpu_custom_call.1} parent=1 // pred_fallthru
      _
    // Predicated region
    $region70: #{tpu_custom_call.1} parent=1 // pred_check
      _
    $region71: #{tpu_custom_call.1} parent=1 // pred_check_branch
      %157 = sbr.rel (0) target = $region73
    $region72: #{tpu_custom_call.1} parent=1 // pred_region
      _
    $region73: #{tpu_custom_call.1} parent=1 // pred_fallthru
      _
    // Predicated region
    $region74: #{tpu_custom_call.1} parent=1 // pred_check
      _
    $region75: #{tpu_custom_call.1} parent=1 // pred_check_branch
      %159 = sbr.rel (0) target = $region77
    $region76: #{tpu_custom_call.1} parent=1 // pred_region
      _
    $region77: #{tpu_custom_call.1} parent=1 // pred_fallthru
      _
    // Predicated region
    $region78: #{tpu_custom_call.1} parent=1 // pred_check
      _
    $region79: #{tpu_custom_call.1} parent=1 // pred_check_branch
      %161 = sbr.rel (0) target = $region81
    $region80: #{tpu_custom_call.1} parent=1 // pred_region
      _
    $region81: #{tpu_custom_call.1} parent=1 // pred_fallthru
      _
    // Predicated region
    $region82: #{tpu_custom_call.1} parent=1 // pred_check
      _
    $region83: #{tpu_custom_call.1} parent=1 // pred_check_branch
      %163 = sbr.rel (0) target = $region85
    $region84: #{tpu_custom_call.1} parent=1 // pred_region
      _
    $region85: #{tpu_custom_call.1} parent=1 // pred_fallthru
      _
    // Predicated region
    $region86: #{tpu_custom_call.1} parent=1 // pred_check
      _
    $region87: #{tpu_custom_call.1} parent=1 // pred_check_branch
      %165 = sbr.rel (0) target = $region89
    $region88: #{tpu_custom_call.1} parent=1 // pred_region
      %166 = dma.done [#allocation3], 256
    $region89: #{tpu_custom_call.1} parent=1 // pred_fallthru
      _
    // Predicated region
    $region90: #{tpu_custom_call.1} parent=1 // pred_check
      _
    $region91: #{tpu_custom_call.1} parent=1 // pred_check_branch
      %168 = sbr.rel (0) target = $region93
    $region92: #{tpu_custom_call.1} parent=1 // pred_region
      %169 = dma.done [#allocation6], 16
    $region93: #{tpu_custom_call.1} parent=1 // pred_fallthru
      _
    // Predicated region
    $region94: #{tpu_custom_call.1} parent=1 // pred_check
      _
    $region95: #{tpu_custom_call.1} parent=1 // pred_check_branch
      %171 = sbr.rel (0) target = $region97
    $region96: #{tpu_custom_call.1} parent=1 // pred_region
      %172 = dma.done [#allocation6], 512
    $region97: #{tpu_custom_call.1} parent=1 // pred_fallthru
      _
    // Predicated region
    $region98: #{tpu_custom_call.1} parent=1 // pred_check
      _
    $region99: #{tpu_custom_call.1} parent=1 // pred_check_branch
      %174 = sbr.rel (0) target = $region101
    $region100: #{tpu_custom_call.1} parent=1 // pred_region
      %175 = dma.done [#allocation9], 16
    $region101: #{tpu_custom_call.1} parent=1 // pred_fallthru
      _
    // Predicated region
    $region102: #{tpu_custom_call.1} parent=1 // pred_check
      _
    $region103: #{tpu_custom_call.1} parent=1 // pred_check_branch
      %177 = sbr.rel (0) target = $region105
    $region104: #{tpu_custom_call.1} parent=1 // pred_region
      %178 = dma.done [#allocation9], 128
    $region105: #{tpu_custom_call.1} parent=1 // pred_fallthru
      _
    // Predicated region
    $region106: #{tpu_custom_call.1} parent=1 // pred_check
      _
    $region107: #{tpu_custom_call.1} parent=1 // pred_check_branch
      %180 = sbr.rel (0) target = $region109
    $region108: #{tpu_custom_call.1} parent=1 // pred_region
      %181 = dma.done [#allocation12], 128
    $region109: #{tpu_custom_call.1} parent=1 // pred_fallthru
      _
    // Predicated region
    $region110: #{tpu_custom_call.1} parent=1 // pred_check
      _
    $region111: #{tpu_custom_call.1} parent=1 // pred_check_branch
      %183 = sbr.rel (0) target = $region113
    $region112: #{tpu_custom_call.1} parent=1 // pred_region
      %184 = dma.done [#allocation12], 16
    $region113: #{tpu_custom_call.1} parent=1 // pred_fallthru
      _
    // Predicated region
    $region114: #{tpu_custom_call.1} parent=1 // pred_check
      _
    $region115: #{tpu_custom_call.1} parent=1 // pred_check_branch
      %186 = sbr.rel (0) target = $region117
    $region116: #{tpu_custom_call.1} parent=1 // pred_region
      %187 = dma.done [#allocation15], 16
    $region117: #{tpu_custom_call.1} parent=1 // pred_fallthru
      _
    // Predicated region
    $region118: #{tpu_custom_call.1} parent=1 // pred_check
      _
    $region119: #{tpu_custom_call.1} parent=1 // pred_check_branch
      %189 = sbr.rel (0) target = $region121
    $region120: #{tpu_custom_call.1} parent=1 // pred_region
      %190 = dma.done [#allocation15], 256
    $region121: #{tpu_custom_call.1} parent=1 // pred_fallthru
      _
    // Predicated region
    $region122: #{tpu_custom_call.1} parent=1 // pred_check
      _
    $region123: #{tpu_custom_call.1} parent=1 // pred_check_branch
      %192 = sbr.rel (0) target = $region125
    $region124: #{tpu_custom_call.1} parent=1 // pred_region
      %193 = dma.done [#allocation18], 16
    $region125: #{tpu_custom_call.1} parent=1 // pred_fallthru
      _
    %v194 = vld [vmem:[%s2] sm:$0xff]
    %v195 = vld [vmem:[%s2 + $0x8] sm:$0xff]
    %v196 = vld [vmem:[%s2 + $0x10] sm:$0xff]
    %v197 = vld [vmem:[%s2 + $0x18] sm:$0xff]
    %v198 = vld [vmem:[#allocation7] sm:$0xff]
    %v199 = vld [vmem:[#allocation7 + $0x8] sm:$0xff]
    %v200 = vld [vmem:[#allocation7 + $0x10] sm:$0xff]
    %v201 = vld [vmem:[#allocation7 + $0x18] sm:$0xff]
    %v202 = vld [vmem:[%s0] sm:$0xff]
    %v203 = vld [vmem:[%s0 + $0x8] sm:$0xff]
    %v204 = vld [vmem:[%s0 + $0x10] sm:$0xff]
    %v205 = vld [vmem:[%s0 + $0x18] sm:$0xff]
    %v206 = vld [vmem:[%s0 + $0x20] sm:$0xff]
    %v207 = vld [vmem:[%s0 + $0x28] sm:$0xff]
    %v208 = vld [vmem:[%s0 + $0x30] sm:$0xff]
    %v209 = vld [vmem:[%s0 + $0x38] sm:$0xff]
    %v210 = vld [vmem:[#allocation2] sm:$0xff]
    %v211 = vld [vmem:[#allocation2 + $0x8] sm:$0xff]
    %v212 = vld [vmem:[#allocation5] sm:$0x1]
    %v214 = vlaneseq
    %v215 = vshrl.u32 %v214, 7
    %v216 = vsub.s32 0, %v215
    %v217 = vrot.slane %v212, %v216
    %vm219 = vcmask 130048
    %v221 = vsel %vm219, %v202, 0
    %v224 = vsel %vm219, %v203, 0
    %v227 = vsel %vm219, %v204, 0
    %v230 = vsel %vm219, %v205, 0
    %v233 = vsel %vm219, %v206, 0
    %v236 = vsel %vm219, %v207, 0
    %v239 = vsel %vm219, %v208, 0
    %v242 = vsel %vm219, %v209, 0
    %244 = vmatprep.subr.mxu0 0.0
    %245 = vmatpush1.msra.mxu0 %v210
    %246 = vmatprep.subr.mxu0 0.0
    %247 = vmatpush1.msra.mxu0 %v211
    %248 = vmatprep.subr.mxu0 0.0
    %249 = vmatpush1.msra.mxu0 0.0
    %250 = vmatprep.subr.mxu0 0.0
    %251 = vmatpush1.msra.mxu0 0.0
    %252 = vmatprep.subr.mxu0 0.0
    %253 = vmatpush1.msra.mxu0 0.0
    %254 = vmatprep.subr.mxu0 0.0
    %255 = vmatpush1.msra.mxu0 0.0
    %256 = vmatprep.subr.mxu0 0.0
    %257 = vmatpush1.msra.mxu0 0.0
    %258 = vmatprep.subr.mxu0 0.0
    %259 = vmatpush1.msra.mxu0 0.0
    %260 = vmatprep.subr.mxu0 0.0
    %261 = vmatpush1.msra.mxu0 0.0
    %262 = vmatprep.subr.mxu0 0.0
    %263 = vmatpush1.msra.mxu0 0.0
    %264 = vmatprep.subr.mxu0 0.0
    %265 = vmatpush1.msra.mxu0 0.0
    %266 = vmatprep.subr.mxu0 0.0
    %267 = vmatpush1.msra.mxu0 0.0
    %268 = vmatprep.subr.mxu0 0.0
    %269 = vmatpush1.msra.mxu0 0.0
    %270 = vmatprep.subr.mxu0 0.0
    %271 = vmatpush1.msra.mxu0 0.0
    %272 = vmatprep.subr.mxu0 0.0
    %273 = vmatpush1.msra.mxu0 0.0
    %274 = vmatprep.subr.mxu0 0.0
    %275 = vmatpush1.msra.mxu0 0.0
    %276 = vmatprep.subr.mxu0 0.0
    %277 = vmatpush1.msra.mxu0 0.0
    %278 = vmatprep.subr.mxu0 0.0
    %279 = vmatpush1.msra.mxu0 0.0
    %280 = vmatprep.subr.mxu0 0.0
    %281 = vmatpush1.msra.mxu0 0.0
    %282 = vmatprep.subr.mxu0 0.0
    %283 = vmatpush1.msra.mxu0 0.0
    %284 = vmatprep.subr.mxu0 0.0
    %285 = vmatpush1.msra.mxu0 0.0
    %286 = vmatprep.subr.mxu0 0.0
    %287 = vmatpush1.msra.mxu0 0.0
    %288 = vmatprep.subr.mxu0 0.0
    %289 = vmatpush1.msra.mxu0 0.0
    %290 = vmatprep.subr.mxu0 0.0
    %291 = vmatpush1.msra.mxu0 0.0
    %292 = vmatprep.subr.mxu0 0.0
    %293 = vmatpush1.msra.mxu0 0.0
    %294 = vmatprep.subr.mxu0 0.0
    %295 = vmatpush1.msra.mxu0 0.0
    %296 = vmatprep.subr.mxu0 0.0
    %297 = vmatpush1.msra.mxu0 0.0
    %298 = vmatprep.subr.mxu0 0.0
    %299 = vmatpush1.msra.mxu0 0.0
    %300 = vmatprep.subr.mxu0 0.0
    %301 = vmatpush1.msra.mxu0 0.0
    %302 = vmatprep.subr.mxu0 0.0
    %303 = vmatpush1.msra.mxu0 0.0
    %304 = vmatprep.subr.mxu0 0.0
    %305 = vmatpush1.msra.mxu0 0.0
    %306 = vmatprep.subr.mxu0 0.0
    %307 = vmatpush1.msra.mxu0 0.0
    %308 = vmatprep.mubr.f32.mxu0 0.0
    %309 = vmatmul.mubr.f32.gmra.mrb[0].mxu0 %v221
    %v310 = vpop.f32.mrb[0].mxu0
    %v311 = vadd.f32 %v217, %v310
    %v312 = vpop.f32.mrb[0].mxu0
    %313 = vmatprep.mubr.f32.mxu0 0.0
    %314 = vmatmul.mubr.f32.gmra.mrb[0].mxu0 %v224
    %v315 = vpop.f32.mrb[0].mxu0
    %v316 = vadd.f32 %v217, %v315
    %v317 = vpop.f32.mrb[0].mxu0
    %318 = vmatprep.mubr.f32.mxu0 0.0
    %319 = vmatmul.mubr.f32.gmra.mrb[0].mxu0 %v227
    %v320 = vpop.f32.mrb[0].mxu0
    %v321 = vadd.f32 %v217, %v320
    %v322 = vpop.f32.mrb[0].mxu0
    %323 = vmatprep.mubr.f32.mxu0 0.0
    %324 = vmatmul.mubr.f32.gmra.mrb[0].mxu0 %v230
    %v325 = vpop.f32.mrb[0].mxu0
    %v326 = vadd.f32 %v217, %v325
    %v327 = vpop.f32.mrb[0].mxu0
    %328 = vmatprep.mubr.f32.mxu0 0.0
    %329 = vmatmul.mubr.f32.gmra.mrb[0].mxu0 %v233
    %v330 = vpop.f32.mrb[0].mxu0
    %v331 = vadd.f32 %v217, %v330
    %v332 = vpop.f32.mrb[0].mxu0
    %333 = vmatprep.mubr.f32.mxu0 0.0
    %334 = vmatmul.mubr.f32.gmra.mrb[0].mxu0 %v236
    %v335 = vpop.f32.mrb[0].mxu0
    %v336 = vadd.f32 %v217, %v335
    %v337 = vpop.f32.mrb[0].mxu0
    %338 = vmatprep.mubr.f32.mxu0 0.0
    %339 = vmatmul.mubr.f32.gmra.mrb[0].mxu0 %v239
    %v340 = vpop.f32.mrb[0].mxu0
    %v341 = vadd.f32 %v217, %v340
    %v342 = vpop.f32.mrb[0].mxu0
    %343 = vmatprep.mubr.f32.mxu0 0.0
    %344 = vmatmul.mubr.f32.gmra.mrb[0].mxu0 %v242
    %v345 = vpop.f32.mrb[0].mxu0
    %v346 = vadd.f32 %v217, %v345
    %v347 = vpop.f32.mrb[0].mxu0
    %348 = vdwg.mxu0
    %vm349 = vcmask 261120
    %v351 = vsel %vm349, 0.0, 0
    %353 = vmatprep.subr.mxu0 0.0
    %354 = vmatpush1.msra.mxu0 %v194
    %355 = vmatprep.subr.mxu0 0.0
    %356 = vmatpush1.msra.mxu0 %v195
    %357 = vmatprep.subr.mxu0 0.0
    %358 = vmatpush1.msra.mxu0 %v196
    %359 = vmatprep.subr.mxu0 0.0
    %360 = vmatpush1.msra.mxu0 %v197
    %361 = vmatprep.subr.mxu0 0.0
    %362 = vmatpush1.msra.mxu0 0.0
    %363 = vmatprep.subr.mxu0 0.0
    %364 = vmatpush1.msra.mxu0 0.0
    %365 = vmatprep.subr.mxu0 0.0
    %366 = vmatpush1.msra.mxu0 0.0
    %367 = vmatprep.subr.mxu0 0.0
    %368 = vmatpush1.msra.mxu0 0.0
    %369 = vmatprep.subr.mxu0 0.0
    %370 = vmatpush1.msra.mxu0 0.0
    %371 = vmatprep.subr.mxu0 0.0
    %372 = vmatpush1.msra.mxu0 0.0
    %373 = vmatprep.subr.mxu0 0.0
    %374 = vmatpush1.msra.mxu0 0.0
    %375 = vmatprep.subr.mxu0 0.0
    %376 = vmatpush1.msra.mxu0 0.0
    %377 = vmatprep.subr.mxu0 0.0
    %378 = vmatpush1.msra.mxu0 0.0
    %379 = vmatprep.subr.mxu0 0.0
    %380 = vmatpush1.msra.mxu0 0.0
    %381 = vmatprep.subr.mxu0 0.0
    %382 = vmatpush1.msra.mxu0 0.0
    %383 = vmatprep.subr.mxu0 0.0
    %384 = vmatpush1.msra.mxu0 0.0
    %385 = vmatprep.subr.mxu0 0.0
    %386 = vmatpush1.msra.mxu0 0.0
    %387 = vmatprep.subr.mxu0 0.0
    %388 = vmatpush1.msra.mxu0 0.0
    %389 = vmatprep.subr.mxu0 0.0
    %390 = vmatpush1.msra.mxu0 0.0
    %391 = vmatprep.subr.mxu0 0.0
    %392 = vmatpush1.msra.mxu0 0.0
    %393 = vmatprep.subr.mxu0 0.0
    %394 = vmatpush1.msra.mxu0 0.0
    %395 = vmatprep.subr.mxu0 0.0
    %396 = vmatpush1.msra.mxu0 0.0
    %397 = vmatprep.subr.mxu0 0.0
    %398 = vmatpush1.msra.mxu0 0.0
    %399 = vmatprep.subr.mxu0 0.0
    %400 = vmatpush1.msra.mxu0 0.0
    %401 = vmatprep.subr.mxu0 0.0
    %402 = vmatpush1.msra.mxu0 0.0
    %403 = vmatprep.subr.mxu0 0.0
    %404 = vmatpush1.msra.mxu0 0.0
    %405 = vmatprep.subr.mxu0 0.0
    %406 = vmatpush1.msra.mxu0 0.0
    %407 = vmatprep.subr.mxu0 0.0
    %408 = vmatpush1.msra.mxu0 0.0
    %409 = vmatprep.subr.mxu0 0.0
    %410 = vmatpush1.msra.mxu0 0.0
    %411 = vmatprep.subr.mxu0 0.0
    %412 = vmatpush1.msra.mxu0 0.0
    %413 = vmatprep.subr.mxu0 0.0
    %414 = vmatpush1.msra.mxu0 0.0
    %415 = vmatprep.subr.mxu0 0.0
    %416 = vmatpush1.msra.mxu0 0.0
    %417 = vmatprep.mubr.f32.mxu0 0.0
    %418 = vmatmul.mubr.f32.gmra.mrb[0].mxu0 %v351
    %v419 = vpop.f32.mrb[0].mxu0
    %v420 = vadd.f32 0.0, %v419
    %v421 = vpop.f32.mrb[0].mxu0
    %422 = vdwg.mxu0
    %v423 = vadd.f32 %v311, %v420
    %v424 = vxor.u32 %v423, 2147483648
    %v425 = vmul.f32 %v424, 1.442695
    %v426 = vpow.pop %v425
    %v427 = vadd.f32 %v426, 1.0
    %v428 = vrcp.pop %v427
    %v429 = vmul.f32 1.0, %v428
    %v430 = vtanh.pop %v423
    %v431 = vmul.f32 %v429, 0.0
    %433 = vrot.lane.b32.xlu0 %v430, 32
    %v434 = vpop.permute.xlu0 %433
    %v436 = vmul.f32 %v429, %v434
    %438 = vrot.lane.b32.xlu0 %v436, 32
    %v439 = vpop.permute.xlu0 %438
    %v441 = vadd.f32 %v431, %v439
    %v442 = vtanh.pop %v441
    %444 = vrot.lane.b32.xlu0 %v442, 32
    %v445 = vpop.permute.xlu0 %444
    %v447 = vmul.f32 %v429, %v445
    %449 = vrot.lane.b32.xlu0 %v447, 64
    %v450 = vpop.permute.xlu0 %449
    %v451 = vsel %vm349, %v450, 0
    %453 = vmatprep.subr.mxu0 0.0
    %454 = vmatpush1.msra.mxu0 %v194
    %455 = vmatprep.subr.mxu0 0.0
    %456 = vmatpush1.msra.mxu0 %v195
    %457 = vmatprep.subr.mxu0 0.0
    %458 = vmatpush1.msra.mxu0 %v196
    %459 = vmatprep.subr.mxu0 0.0
    %460 = vmatpush1.msra.mxu0 %v197
    %461 = vmatprep.subr.mxu0 0.0
    %462 = vmatpush1.msra.mxu0 0.0
    %463 = vmatprep.subr.mxu0 0.0
    %464 = vmatpush1.msra.mxu0 0.0
    %465 = vmatprep.subr.mxu0 0.0
    %466 = vmatpush1.msra.mxu0 0.0
    %467 = vmatprep.subr.mxu0 0.0
    %468 = vmatpush1.msra.mxu0 0.0
    %469 = vmatprep.subr.mxu0 0.0
    %470 = vmatpush1.msra.mxu0 0.0
    %471 = vmatprep.subr.mxu0 0.0
    %472 = vmatpush1.msra.mxu0 0.0
    %473 = vmatprep.subr.mxu0 0.0
    %474 = vmatpush1.msra.mxu0 0.0
    %475 = vmatprep.subr.mxu0 0.0
    %476 = vmatpush1.msra.mxu0 0.0
    %477 = vmatprep.subr.mxu0 0.0
    %478 = vmatpush1.msra.mxu0 0.0
    %479 = vmatprep.subr.mxu0 0.0
    %480 = vmatpush1.msra.mxu0 0.0
    %481 = vmatprep.subr.mxu0 0.0
    %482 = vmatpush1.msra.mxu0 0.0
    %483 = vmatprep.subr.mxu0 0.0
    %484 = vmatpush1.msra.mxu0 0.0
    %485 = vmatprep.subr.mxu0 0.0
    %486 = vmatpush1.msra.mxu0 0.0
    %487 = vmatprep.subr.mxu0 0.0
    %488 = vmatpush1.msra.mxu0 0.0
    %489 = vmatprep.subr.mxu0 0.0
    %490 = vmatpush1.msra.mxu0 0.0
    %491 = vmatprep.subr.mxu0 0.0
    %492 = vmatpush1.msra.mxu0 0.0
    %493 = vmatprep.subr.mxu0 0.0
    %494 = vmatpush1.msra.mxu0 0.0
    %495 = vmatprep.subr.mxu0 0.0
    %496 = vmatpush1.msra.mxu0 0.0
    %497 = vmatprep.subr.mxu0 0.0
    %498 = vmatpush1.msra.mxu0 0.0
    %499 = vmatprep.subr.mxu0 0.0
    %500 = vmatpush1.msra.mxu0 0.0
    %501 = vmatprep.subr.mxu0 0.0
    %502 = vmatpush1.msra.mxu0 0.0
    %503 = vmatprep.subr.mxu0 0.0
    %504 = vmatpush1.msra.mxu0 0.0
    %505 = vmatprep.subr.mxu0 0.0
    %506 = vmatpush1.msra.mxu0 0.0
    %507 = vmatprep.subr.mxu0 0.0
    %508 = vmatpush1.msra.mxu0 0.0
    %509 = vmatprep.subr.mxu0 0.0
    %510 = vmatpush1.msra.mxu0 0.0
    %511 = vmatprep.subr.mxu0 0.0
    %512 = vmatpush1.msra.mxu0 0.0
    %513 = vmatprep.subr.mxu0 0.0
    %514 = vmatpush1.msra.mxu0 0.0
    %515 = vmatprep.subr.mxu0 0.0
    %516 = vmatpush1.msra.mxu0 0.0
    %517 = vmatprep.mubr.f32.mxu0 0.0
    %518 = vmatmul.mubr.f32.gmra.mrb[0].mxu0 %v451
    %v519 = vpop.f32.mrb[0].mxu0
    %v520 = vadd.f32 0.0, %v519
    %v521 = vpop.f32.mrb[0].mxu0
    %522 = vdwg.mxu0
    %v523 = vadd.f32 %v316, %v520
    %v524 = vxor.u32 %v523, 2147483648
    %v525 = vmul.f32 %v524, 1.442695
    %v526 = vpow.pop %v525
    %v527 = vadd.f32 %v526, 1.0
    %v528 = vrcp.pop %v527
    %v529 = vmul.f32 1.0, %v528
    %v530 = vtanh.pop %v523
    %v531 = vmul.f32 %v529, %v441
    %533 = vrot.lane.b32.xlu0 %v530, 32
    %v534 = vpop.permute.xlu0 %533
    %v536 = vmul.f32 %v529, %v534
    %538 = vrot.lane.b32.xlu0 %v536, 32
    %v539 = vpop.permute.xlu0 %538
    %v541 = vadd.f32 %v531, %v539
    %v542 = vtanh.pop %v541
    %544 = vrot.lane.b32.xlu0 %v542, 32
    %v545 = vpop.permute.xlu0 %544
    %v547 = vmul.f32 %v529, %v545
    %549 = vrot.lane.b32.xlu0 %v547, 64
    %v550 = vpop.permute.xlu0 %549
    %v551 = vsel %vm349, %v550, 0
    %553 = vmatprep.subr.mxu0 0.0
    %554 = vmatpush1.msra.mxu0 %v194
    %555 = vmatprep.subr.mxu0 0.0
    %556 = vmatpush1.msra.mxu0 %v195
    %557 = vmatprep.subr.mxu0 0.0
    %558 = vmatpush1.msra.mxu0 %v196
    %559 = vmatprep.subr.mxu0 0.0
    %560 = vmatpush1.msra.mxu0 %v197
    %561 = vmatprep.subr.mxu0 0.0
    %562 = vmatpush1.msra.mxu0 0.0
    %563 = vmatprep.subr.mxu0 0.0
    %564 = vmatpush1.msra.mxu0 0.0
    %565 = vmatprep.subr.mxu0 0.0
    %566 = vmatpush1.msra.mxu0 0.0
    %567 = vmatprep.subr.mxu0 0.0
    %568 = vmatpush1.msra.mxu0 0.0
    %569 = vmatprep.subr.mxu0 0.0
    %570 = vmatpush1.msra.mxu0 0.0
    %571 = vmatprep.subr.mxu0 0.0
    %572 = vmatpush1.msra.mxu0 0.0
    %573 = vmatprep.subr.mxu0 0.0
    %574 = vmatpush1.msra.mxu0 0.0
    %575 = vmatprep.subr.mxu0 0.0
    %576 = vmatpush1.msra.mxu0 0.0
    %577 = vmatprep.subr.mxu0 0.0
    %578 = vmatpush1.msra.mxu0 0.0
    %579 = vmatprep.subr.mxu0 0.0
    %580 = vmatpush1.msra.mxu0 0.0
    %581 = vmatprep.subr.mxu0 0.0
    %582 = vmatpush1.msra.mxu0 0.0
    %583 = vmatprep.subr.mxu0 0.0
    %584 = vmatpush1.msra.mxu0 0.0
    %585 = vmatprep.subr.mxu0 0.0
    %586 = vmatpush1.msra.mxu0 0.0
    %587 = vmatprep.subr.mxu0 0.0
    %588 = vmatpush1.msra.mxu0 0.0
    %589 = vmatprep.subr.mxu0 0.0
    %590 = vmatpush1.msra.mxu0 0.0
    %591 = vmatprep.subr.mxu0 0.0
    %592 = vmatpush1.msra.mxu0 0.0
    %593 = vmatprep.subr.mxu0 0.0
    %594 = vmatpush1.msra.mxu0 0.0
    %595 = vmatprep.subr.mxu0 0.0
    %596 = vmatpush1.msra.mxu0 0.0
    %597 = vmatprep.subr.mxu0 0.0
    %598 = vmatpush1.msra.mxu0 0.0
    %599 = vmatprep.subr.mxu0 0.0
    %600 = vmatpush1.msra.mxu0 0.0
    %601 = vmatprep.subr.mxu0 0.0
    %602 = vmatpush1.msra.mxu0 0.0
    %603 = vmatprep.subr.mxu0 0.0
    %604 = vmatpush1.msra.mxu0 0.0
    %605 = vmatprep.subr.mxu0 0.0
    %606 = vmatpush1.msra.mxu0 0.0
    %607 = vmatprep.subr.mxu0 0.0
    %608 = vmatpush1.msra.mxu0 0.0
    %609 = vmatprep.subr.mxu0 0.0
    %610 = vmatpush1.msra.mxu0 0.0
    %611 = vmatprep.subr.mxu0 0.0
    %612 = vmatpush1.msra.mxu0 0.0
    %613 = vmatprep.subr.mxu0 0.0
    %614 = vmatpush1.msra.mxu0 0.0
    %615 = vmatprep.subr.mxu0 0.0
    %616 = vmatpush1.msra.mxu0 0.0
    %617 = vmatprep.mubr.f32.mxu0 0.0
    %618 = vmatmul.mubr.f32.gmra.mrb[0].mxu0 %v551
    %v619 = vpop.f32.mrb[0].mxu0
    %v620 = vadd.f32 0.0, %v619
    %v621 = vpop.f32.mrb[0].mxu0
    %622 = vdwg.mxu0
    %v623 = vadd.f32 %v321, %v620
    %v624 = vxor.u32 %v623, 2147483648
    %v625 = vmul.f32 %v624, 1.442695
    %v626 = vpow.pop %v625
    %v627 = vadd.f32 %v626, 1.0
    %v628 = vrcp.pop %v627
    %v629 = vmul.f32 1.0, %v628
    %v630 = vtanh.pop %v623
    %v631 = vmul.f32 %v629, %v541
    %633 = vrot.lane.b32.xlu0 %v630, 32
    %v634 = vpop.permute.xlu0 %633
    %v636 = vmul.f32 %v629, %v634
    %638 = vrot.lane.b32.xlu0 %v636, 32
    %v639 = vpop.permute.xlu0 %638
    %v641 = vadd.f32 %v631, %v639
    %v642 = vtanh.pop %v641
    %644 = vrot.lane.b32.xlu0 %v642, 32
    %v645 = vpop.permute.xlu0 %644
    %v647 = vmul.f32 %v629, %v645
    %649 = vrot.lane.b32.xlu0 %v647, 64
    %v650 = vpop.permute.xlu0 %649
    %v651 = vsel %vm349, %v650, 0
    %653 = vmatprep.subr.mxu0 0.0
    %654 = vmatpush1.msra.mxu0 %v194
    %655 = vmatprep.subr.mxu0 0.0
    %656 = vmatpush1.msra.mxu0 %v195
    %657 = vmatprep.subr.mxu0 0.0
    %658 = vmatpush1.msra.mxu0 %v196
    %659 = vmatprep.subr.mxu0 0.0
    %660 = vmatpush1.msra.mxu0 %v197
    %661 = vmatprep.subr.mxu0 0.0
    %662 = vmatpush1.msra.mxu0 0.0
    %663 = vmatprep.subr.mxu0 0.0
    %664 = vmatpush1.msra.mxu0 0.0
    %665 = vmatprep.subr.mxu0 0.0
    %666 = vmatpush1.msra.mxu0 0.0
    %667 = vmatprep.subr.mxu0 0.0
    %668 = vmatpush1.msra.mxu0 0.0
    %669 = vmatprep.subr.mxu0 0.0
    %670 = vmatpush1.msra.mxu0 0.0
    %671 = vmatprep.subr.mxu0 0.0
    %672 = vmatpush1.msra.mxu0 0.0
    %673 = vmatprep.subr.mxu0 0.0
    %674 = vmatpush1.msra.mxu0 0.0
    %675 = vmatprep.subr.mxu0 0.0
    %676 = vmatpush1.msra.mxu0 0.0
    %677 = vmatprep.subr.mxu0 0.0
    %678 = vmatpush1.msra.mxu0 0.0
    %679 = vmatprep.subr.mxu0 0.0
    %680 = vmatpush1.msra.mxu0 0.0
    %681 = vmatprep.subr.mxu0 0.0
    %682 = vmatpush1.msra.mxu0 0.0
    %683 = vmatprep.subr.mxu0 0.0
    %684 = vmatpush1.msra.mxu0 0.0
    %685 = vmatprep.subr.mxu0 0.0
    %686 = vmatpush1.msra.mxu0 0.0
    %687 = vmatprep.subr.mxu0 0.0
    %688 = vmatpush1.msra.mxu0 0.0
    %689 = vmatprep.subr.mxu0 0.0
    %690 = vmatpush1.msra.mxu0 0.0
    %691 = vmatprep.subr.mxu0 0.0
    %692 = vmatpush1.msra.mxu0 0.0
    %693 = vmatprep.subr.mxu0 0.0
    %694 = vmatpush1.msra.mxu0 0.0
    %695 = vmatprep.subr.mxu0 0.0
    %696 = vmatpush1.msra.mxu0 0.0
    %697 = vmatprep.subr.mxu0 0.0
    %698 = vmatpush1.msra.mxu0 0.0
    %699 = vmatprep.subr.mxu0 0.0
    %700 = vmatpush1.msra.mxu0 0.0
    %701 = vmatprep.subr.mxu0 0.0
    %702 = vmatpush1.msra.mxu0 0.0
    %703 = vmatprep.subr.mxu0 0.0
    %704 = vmatpush1.msra.mxu0 0.0
    %705 = vmatprep.subr.mxu0 0.0
    %706 = vmatpush1.msra.mxu0 0.0
    %707 = vmatprep.subr.mxu0 0.0
    %708 = vmatpush1.msra.mxu0 0.0
    %709 = vmatprep.subr.mxu0 0.0
    %710 = vmatpush1.msra.mxu0 0.0
    %711 = vmatprep.subr.mxu0 0.0
    %712 = vmatpush1.msra.mxu0 0.0
    %713 = vmatprep.subr.mxu0 0.0
    %714 = vmatpush1.msra.mxu0 0.0
    %715 = vmatprep.subr.mxu0 0.0
    %716 = vmatpush1.msra.mxu0 0.0
    %717 = vmatprep.mubr.f32.mxu0 0.0
    %718 = vmatmul.mubr.f32.gmra.mrb[0].mxu0 %v651
    %v719 = vpop.f32.mrb[0].mxu0
    %v720 = vadd.f32 0.0, %v719
    %v721 = vpop.f32.mrb[0].mxu0
    %722 = vdwg.mxu0
    %v723 = vadd.f32 %v326, %v720
    %v724 = vxor.u32 %v723, 2147483648
    %v725 = vmul.f32 %v724, 1.442695
    %v726 = vpow.pop %v725
    %v727 = vadd.f32 %v726, 1.0
    %v728 = vrcp.pop %v727
    %v729 = vmul.f32 1.0, %v728
    %v730 = vtanh.pop %v723
    %v731 = vmul.f32 %v729, %v641
    %733 = vrot.lane.b32.xlu0 %v730, 32
    %v734 = vpop.permute.xlu0 %733
    %v736 = vmul.f32 %v729, %v734
    %738 = vrot.lane.b32.xlu0 %v736, 32
    %v739 = vpop.permute.xlu0 %738
    %v741 = vadd.f32 %v731, %v739
    %v742 = vtanh.pop %v741
    %744 = vrot.lane.b32.xlu0 %v742, 32
    %v745 = vpop.permute.xlu0 %744
    %v747 = vmul.f32 %v729, %v745
    %749 = vrot.lane.b32.xlu0 %v747, 64
    %v750 = vpop.permute.xlu0 %749
    %v751 = vsel %vm349, %v750, 0
    %753 = vmatprep.subr.mxu0 0.0
    %754 = vmatpush1.msra.mxu0 %v194
    %755 = vmatprep.subr.mxu0 0.0
    %756 = vmatpush1.msra.mxu0 %v195
    %757 = vmatprep.subr.mxu0 0.0
    %758 = vmatpush1.msra.mxu0 %v196
    %759 = vmatprep.subr.mxu0 0.0
    %760 = vmatpush1.msra.mxu0 %v197
    %761 = vmatprep.subr.mxu0 0.0
    %762 = vmatpush1.msra.mxu0 0.0
    %763 = vmatprep.subr.mxu0 0.0
    %764 = vmatpush1.msra.mxu0 0.0
    %765 = vmatprep.subr.mxu0 0.0
    %766 = vmatpush1.msra.mxu0 0.0
    %767 = vmatprep.subr.mxu0 0.0
    %768 = vmatpush1.msra.mxu0 0.0
    %769 = vmatprep.subr.mxu0 0.0
    %770 = vmatpush1.msra.mxu0 0.0
    %771 = vmatprep.subr.mxu0 0.0
    %772 = vmatpush1.msra.mxu0 0.0
    %773 = vmatprep.subr.mxu0 0.0
    %774 = vmatpush1.msra.mxu0 0.0
    %775 = vmatprep.subr.mxu0 0.0
    %776 = vmatpush1.msra.mxu0 0.0
    %777 = vmatprep.subr.mxu0 0.0
    %778 = vmatpush1.msra.mxu0 0.0
    %779 = vmatprep.subr.mxu0 0.0
    %780 = vmatpush1.msra.mxu0 0.0
    %781 = vmatprep.subr.mxu0 0.0
    %782 = vmatpush1.msra.mxu0 0.0
    %783 = vmatprep.subr.mxu0 0.0
    %784 = vmatpush1.msra.mxu0 0.0
    %785 = vmatprep.subr.mxu0 0.0
    %786 = vmatpush1.msra.mxu0 0.0
    %787 = vmatprep.subr.mxu0 0.0
    %788 = vmatpush1.msra.mxu0 0.0
    %789 = vmatprep.subr.mxu0 0.0
    %790 = vmatpush1.msra.mxu0 0.0
    %791 = vmatprep.subr.mxu0 0.0
    %792 = vmatpush1.msra.mxu0 0.0
    %793 = vmatprep.subr.mxu0 0.0
    %794 = vmatpush1.msra.mxu0 0.0
    %795 = vmatprep.subr.mxu0 0.0
    %796 = vmatpush1.msra.mxu0 0.0
    %797 = vmatprep.subr.mxu0 0.0
    %798 = vmatpush1.msra.mxu0 0.0
    %799 = vmatprep.subr.mxu0 0.0
    %800 = vmatpush1.msra.mxu0 0.0
    %801 = vmatprep.subr.mxu0 0.0
    %802 = vmatpush1.msra.mxu0 0.0
    %803 = vmatprep.subr.mxu0 0.0
    %804 = vmatpush1.msra.mxu0 0.0
    %805 = vmatprep.subr.mxu0 0.0
    %806 = vmatpush1.msra.mxu0 0.0
    %807 = vmatprep.subr.mxu0 0.0
    %808 = vmatpush1.msra.mxu0 0.0
    %809 = vmatprep.subr.mxu0 0.0
    %810 = vmatpush1.msra.mxu0 0.0
    %811 = vmatprep.subr.mxu0 0.0
    %812 = vmatpush1.msra.mxu0 0.0
    %813 = vmatprep.subr.mxu0 0.0
    %814 = vmatpush1.msra.mxu0 0.0
    %815 = vmatprep.subr.mxu0 0.0
    %816 = vmatpush1.msra.mxu0 0.0
    %817 = vmatprep.mubr.f32.mxu0 0.0
    %818 = vmatmul.mubr.f32.gmra.mrb[0].mxu0 %v751
    %v819 = vpop.f32.mrb[0].mxu0
    %v820 = vadd.f32 0.0, %v819
    %v821 = vpop.f32.mrb[0].mxu0
    %822 = vdwg.mxu0
    %v823 = vadd.f32 %v331, %v820
    %v824 = vxor.u32 %v823, 2147483648
    %v825 = vmul.f32 %v824, 1.442695
    %v826 = vpow.pop %v825
    %v827 = vadd.f32 %v826, 1.0
    %v828 = vrcp.pop %v827
    %v829 = vmul.f32 1.0, %v828
    %v830 = vtanh.pop %v823
    %v831 = vmul.f32 %v829, %v741
    %833 = vrot.lane.b32.xlu0 %v830, 32
    %v834 = vpop.permute.xlu0 %833
    %v836 = vmul.f32 %v829, %v834
    %838 = vrot.lane.b32.xlu0 %v836, 32
    %v839 = vpop.permute.xlu0 %838
    %v841 = vadd.f32 %v831, %v839
    %v842 = vtanh.pop %v841
    %844 = vrot.lane.b32.xlu0 %v842, 32
    %v845 = vpop.permute.xlu0 %844
    %v847 = vmul.f32 %v829, %v845
    %849 = vrot.lane.b32.xlu0 %v847, 64
    %v850 = vpop.permute.xlu0 %849
    %v851 = vsel %vm349, %v850, 0
    %853 = vmatprep.subr.mxu0 0.0
    %854 = vmatpush1.msra.mxu0 %v194
    %855 = vmatprep.subr.mxu0 0.0
    %856 = vmatpush1.msra.mxu0 %v195
    %857 = vmatprep.subr.mxu0 0.0
    %858 = vmatpush1.msra.mxu0 %v196
    %859 = vmatprep.subr.mxu0 0.0
    %860 = vmatpush1.msra.mxu0 %v197
    %861 = vmatprep.subr.mxu0 0.0
    %862 = vmatpush1.msra.mxu0 0.0
    %863 = vmatprep.subr.mxu0 0.0
    %864 = vmatpush1.msra.mxu0 0.0
    %865 = vmatprep.subr.mxu0 0.0
    %866 = vmatpush1.msra.mxu0 0.0
    %867 = vmatprep.subr.mxu0 0.0
    %868 = vmatpush1.msra.mxu0 0.0
    %869 = vmatprep.subr.mxu0 0.0
    %870 = vmatpush1.msra.mxu0 0.0
    %871 = vmatprep.subr.mxu0 0.0
    %872 = vmatpush1.msra.mxu0 0.0
    %873 = vmatprep.subr.mxu0 0.0
    %874 = vmatpush1.msra.mxu0 0.0
    %875 = vmatprep.subr.mxu0 0.0
    %876 = vmatpush1.msra.mxu0 0.0
    %877 = vmatprep.subr.mxu0 0.0
    %878 = vmatpush1.msra.mxu0 0.0
    %879 = vmatprep.subr.mxu0 0.0
    %880 = vmatpush1.msra.mxu0 0.0
    %881 = vmatprep.subr.mxu0 0.0
    %882 = vmatpush1.msra.mxu0 0.0
    %883 = vmatprep.subr.mxu0 0.0
    %884 = vmatpush1.msra.mxu0 0.0
    %885 = vmatprep.subr.mxu0 0.0
    %886 = vmatpush1.msra.mxu0 0.0
    %887 = vmatprep.subr.mxu0 0.0
    %888 = vmatpush1.msra.mxu0 0.0
    %889 = vmatprep.subr.mxu0 0.0
    %890 = vmatpush1.msra.mxu0 0.0
    %891 = vmatprep.subr.mxu0 0.0
    %892 = vmatpush1.msra.mxu0 0.0
    %893 = vmatprep.subr.mxu0 0.0
    %894 = vmatpush1.msra.mxu0 0.0
    %895 = vmatprep.subr.mxu0 0.0
    %896 = vmatpush1.msra.mxu0 0.0
    %897 = vmatprep.subr.mxu0 0.0
    %898 = vmatpush1.msra.mxu0 0.0
    %899 = vmatprep.subr.mxu0 0.0
    %900 = vmatpush1.msra.mxu0 0.0
    %901 = vmatprep.subr.mxu0 0.0
    %902 = vmatpush1.msra.mxu0 0.0
    %903 = vmatprep.subr.mxu0 0.0
    %904 = vmatpush1.msra.mxu0 0.0
    %905 = vmatprep.subr.mxu0 0.0
    %906 = vmatpush1.msra.mxu0 0.0
    %907 = vmatprep.subr.mxu0 0.0
    %908 = vmatpush1.msra.mxu0 0.0
    %909 = vmatprep.subr.mxu0 0.0
    %910 = vmatpush1.msra.mxu0 0.0
    %911 = vmatprep.subr.mxu0 0.0
    %912 = vmatpush1.msra.mxu0 0.0
    %913 = vmatprep.subr.mxu0 0.0
    %914 = vmatpush1.msra.mxu0 0.0
    %915 = vmatprep.subr.mxu0 0.0
    %916 = vmatpush1.msra.mxu0 0.0
    %917 = vmatprep.mubr.f32.mxu0 0.0
    %918 = vmatmul.mubr.f32.gmra.mrb[0].mxu0 %v851
    %v919 = vpop.f32.mrb[0].mxu0
    %v920 = vadd.f32 0.0, %v919
    %v921 = vpop.f32.mrb[0].mxu0
    %922 = vdwg.mxu0
    %v923 = vadd.f32 %v336, %v920
    %v924 = vxor.u32 %v923, 2147483648
    %v925 = vmul.f32 %v924, 1.442695
    %v926 = vpow.pop %v925
    %v927 = vadd.f32 %v926, 1.0
    %v928 = vrcp.pop %v927
    %v929 = vmul.f32 1.0, %v928
    %v930 = vtanh.pop %v923
    %v931 = vmul.f32 %v929, %v841
    %933 = vrot.lane.b32.xlu0 %v930, 32
    %v934 = vpop.permute.xlu0 %933
    %v936 = vmul.f32 %v929, %v934
    %938 = vrot.lane.b32.xlu0 %v936, 32
    %v939 = vpop.permute.xlu0 %938
    %v941 = vadd.f32 %v931, %v939
    %v942 = vtanh.pop %v941
    %944 = vrot.lane.b32.xlu0 %v942, 32
    %v945 = vpop.permute.xlu0 %944
    %v947 = vmul.f32 %v929, %v945
    %949 = vrot.lane.b32.xlu0 %v947, 64
    %v950 = vpop.permute.xlu0 %949
    %v951 = vsel %vm349, %v950, 0
    %953 = vmatprep.subr.mxu0 0.0
    %954 = vmatpush1.msra.mxu0 %v194
    %955 = vmatprep.subr.mxu0 0.0
    %956 = vmatpush1.msra.mxu0 %v195
    %957 = vmatprep.subr.mxu0 0.0
    %958 = vmatpush1.msra.mxu0 %v196
    %959 = vmatprep.subr.mxu0 0.0
    %960 = vmatpush1.msra.mxu0 %v197
    %961 = vmatprep.subr.mxu0 0.0
    %962 = vmatpush1.msra.mxu0 0.0
    %963 = vmatprep.subr.mxu0 0.0
    %964 = vmatpush1.msra.mxu0 0.0
    %965 = vmatprep.subr.mxu0 0.0
    %966 = vmatpush1.msra.mxu0 0.0
    %967 = vmatprep.subr.mxu0 0.0
    %968 = vmatpush1.msra.mxu0 0.0
    %969 = vmatprep.subr.mxu0 0.0
    %970 = vmatpush1.msra.mxu0 0.0
    %971 = vmatprep.subr.mxu0 0.0
    %972 = vmatpush1.msra.mxu0 0.0
    %973 = vmatprep.subr.mxu0 0.0
    %974 = vmatpush1.msra.mxu0 0.0
    %975 = vmatprep.subr.mxu0 0.0
    %976 = vmatpush1.msra.mxu0 0.0
    %977 = vmatprep.subr.mxu0 0.0
    %978 = vmatpush1.msra.mxu0 0.0
    %979 = vmatprep.subr.mxu0 0.0
    %980 = vmatpush1.msra.mxu0 0.0
    %981 = vmatprep.subr.mxu0 0.0
    %982 = vmatpush1.msra.mxu0 0.0
    %983 = vmatprep.subr.mxu0 0.0
    %984 = vmatpush1.msra.mxu0 0.0
    %985 = vmatprep.subr.mxu0 0.0
    %986 = vmatpush1.msra.mxu0 0.0
    %987 = vmatprep.subr.mxu0 0.0
    %988 = vmatpush1.msra.mxu0 0.0
    %989 = vmatprep.subr.mxu0 0.0
    %990 = vmatpush1.msra.mxu0 0.0
    %991 = vmatprep.subr.mxu0 0.0
    %992 = vmatpush1.msra.mxu0 0.0
    %993 = vmatprep.subr.mxu0 0.0
    %994 = vmatpush1.msra.mxu0 0.0
    %995 = vmatprep.subr.mxu0 0.0
    %996 = vmatpush1.msra.mxu0 0.0
    %997 = vmatprep.subr.mxu0 0.0
    %998 = vmatpush1.msra.mxu0 0.0
    %999 = vmatprep.subr.mxu0 0.0
    %1000 = vmatpush1.msra.mxu0 0.0
    %1001 = vmatprep.subr.mxu0 0.0
    %1002 = vmatpush1.msra.mxu0 0.0
    %1003 = vmatprep.subr.mxu0 0.0
    %1004 = vmatpush1.msra.mxu0 0.0
    %1005 = vmatprep.subr.mxu0 0.0
    %1006 = vmatpush1.msra.mxu0 0.0
    %1007 = vmatprep.subr.mxu0 0.0
    %1008 = vmatpush1.msra.mxu0 0.0
    %1009 = vmatprep.subr.mxu0 0.0
    %1010 = vmatpush1.msra.mxu0 0.0
    %1011 = vmatprep.subr.mxu0 0.0
    %1012 = vmatpush1.msra.mxu0 0.0
    %1013 = vmatprep.subr.mxu0 0.0
    %1014 = vmatpush1.msra.mxu0 0.0
    %1015 = vmatprep.subr.mxu0 0.0
    %1016 = vmatpush1.msra.mxu0 0.0
    %1017 = vmatprep.mubr.f32.mxu0 0.0
    %1018 = vmatmul.mubr.f32.gmra.mrb[0].mxu0 %v951
    %v1019 = vpop.f32.mrb[0].mxu0
    %v1020 = vadd.f32 0.0, %v1019
    %v1021 = vpop.f32.mrb[0].mxu0
    %1022 = vdwg.mxu0
    %v1023 = vadd.f32 %v341, %v1020
    %v1024 = vxor.u32 %v1023, 2147483648
    %v1025 = vmul.f32 %v1024, 1.442695
    %v1026 = vpow.pop %v1025
    %v1027 = vadd.f32 %v1026, 1.0
    %v1028 = vrcp.pop %v1027
    %v1029 = vmul.f32 1.0, %v1028
    %v1030 = vtanh.pop %v1023
    %v1031 = vmul.f32 %v1029, %v941
    %1033 = vrot.lane.b32.xlu0 %v1030, 32
    %v1034 = vpop.permute.xlu0 %1033
    %v1036 = vmul.f32 %v1029, %v1034
    %1038 = vrot.lane.b32.xlu0 %v1036, 32
    %v1039 = vpop.permute.xlu0 %1038
    %v1041 = vadd.f32 %v1031, %v1039
    %v1042 = vtanh.pop %v1041
    %1044 = vrot.lane.b32.xlu0 %v1042, 32
    %v1045 = vpop.permute.xlu0 %1044
    %v1047 = vmul.f32 %v1029, %v1045
    %1049 = vrot.lane.b32.xlu0 %v1047, 64
    %v1050 = vpop.permute.xlu0 %1049
    %v1051 = vsel %vm349, %v1050, 0
    %1053 = vmatprep.subr.mxu0 0.0
    %1054 = vmatpush1.msra.mxu0 %v194
    %1055 = vmatprep.subr.mxu0 0.0
    %1056 = vmatpush1.msra.mxu0 %v195
    %1057 = vmatprep.subr.mxu0 0.0
    %1058 = vmatpush1.msra.mxu0 %v196
    %1059 = vmatprep.subr.mxu0 0.0
    %1060 = vmatpush1.msra.mxu0 %v197
    %1061 = vmatprep.subr.mxu0 0.0
    %1062 = vmatpush1.msra.mxu0 0.0
    %1063 = vmatprep.subr.mxu0 0.0
    %1064 = vmatpush1.msra.mxu0 0.0
    %1065 = vmatprep.subr.mxu0 0.0
    %1066 = vmatpush1.msra.mxu0 0.0
    %1067 = vmatprep.subr.mxu0 0.0
    %1068 = vmatpush1.msra.mxu0 0.0
    %1069 = vmatprep.subr.mxu0 0.0
    %1070 = vmatpush1.msra.mxu0 0.0
    %1071 = vmatprep.subr.mxu0 0.0
    %1072 = vmatpush1.msra.mxu0 0.0
    %1073 = vmatprep.subr.mxu0 0.0
    %1074 = vmatpush1.msra.mxu0 0.0
    %1075 = vmatprep.subr.mxu0 0.0
    %1076 = vmatpush1.msra.mxu0 0.0
    %1077 = vmatprep.subr.mxu0 0.0
    %1078 = vmatpush1.msra.mxu0 0.0
    %1079 = vmatprep.subr.mxu0 0.0
    %1080 = vmatpush1.msra.mxu0 0.0
    %1081 = vmatprep.subr.mxu0 0.0
    %1082 = vmatpush1.msra.mxu0 0.0
    %1083 = vmatprep.subr.mxu0 0.0
    %1084 = vmatpush1.msra.mxu0 0.0
    %1085 = vmatprep.subr.mxu0 0.0
    %1086 = vmatpush1.msra.mxu0 0.0
    %1087 = vmatprep.subr.mxu0 0.0
    %1088 = vmatpush1.msra.mxu0 0.0
    %1089 = vmatprep.subr.mxu0 0.0
    %1090 = vmatpush1.msra.mxu0 0.0
    %1091 = vmatprep.subr.mxu0 0.0
    %1092 = vmatpush1.msra.mxu0 0.0
    %1093 = vmatprep.subr.mxu0 0.0
    %1094 = vmatpush1.msra.mxu0 0.0
    %1095 = vmatprep.subr.mxu0 0.0
    %1096 = vmatpush1.msra.mxu0 0.0
    %1097 = vmatprep.subr.mxu0 0.0
    %1098 = vmatpush1.msra.mxu0 0.0
    %1099 = vmatprep.subr.mxu0 0.0
    %1100 = vmatpush1.msra.mxu0 0.0
    %1101 = vmatprep.subr.mxu0 0.0
    %1102 = vmatpush1.msra.mxu0 0.0
    %1103 = vmatprep.subr.mxu0 0.0
    %1104 = vmatpush1.msra.mxu0 0.0
    %1105 = vmatprep.subr.mxu0 0.0
    %1106 = vmatpush1.msra.mxu0 0.0
    %1107 = vmatprep.subr.mxu0 0.0
    %1108 = vmatpush1.msra.mxu0 0.0
    %1109 = vmatprep.subr.mxu0 0.0
    %1110 = vmatpush1.msra.mxu0 0.0
    %1111 = vmatprep.subr.mxu0 0.0
    %1112 = vmatpush1.msra.mxu0 0.0
    %1113 = vmatprep.subr.mxu0 0.0
    %1114 = vmatpush1.msra.mxu0 0.0
    %1115 = vmatprep.subr.mxu0 0.0
    %1116 = vmatpush1.msra.mxu0 0.0
    %1117 = vmatprep.mubr.f32.mxu0 0.0
    %1118 = vmatmul.mubr.f32.gmra.mrb[0].mxu0 %v1051
    %v1119 = vpop.f32.mrb[0].mxu0
    %v1120 = vadd.f32 0.0, %v1119
    %v1121 = vpop.f32.mrb[0].mxu0
    %1122 = vdwg.mxu0
    %v1123 = vadd.f32 %v346, %v1120
    %v1124 = vxor.u32 %v1123, 2147483648
    %v1125 = vmul.f32 %v1124, 1.442695
    %v1126 = vpow.pop %v1125
    %v1127 = vadd.f32 %v1126, 1.0
    %v1128 = vrcp.pop %v1127
    %v1129 = vmul.f32 1.0, %v1128
    %v1130 = vtanh.pop %v1123
    %v1131 = vmul.f32 %v1129, %v1041
    %1133 = vrot.lane.b32.xlu0 %v1130, 32
    %v1134 = vpop.permute.xlu0 %1133
    %v1136 = vmul.f32 %v1129, %v1134
    %1138 = vrot.lane.b32.xlu0 %v1136, 32
    %v1139 = vpop.permute.xlu0 %1138
    %v1141 = vadd.f32 %v1131, %v1139
    %v1142 = vtanh.pop %v1141
    %1144 = vrot.lane.b32.xlu0 %v1142, 32
    %v1145 = vpop.permute.xlu0 %1144
    %v1147 = vmul.f32 %v1129, %v1145
    %v1148 = vld [vmem:[%s4] sm:$0xff]
    %v1149 = vld [vmem:[%s4 + $0x8] sm:$0xff]
    %v1150 = vld [vmem:[%s4 + $0x10] sm:$0xff]
    %v1151 = vld [vmem:[%s4 + $0x18] sm:$0xff]
    %v1152 = vld [vmem:[#allocation8] sm:$0x1]
    %v1154 = vlaneseq
    %v1155 = vshrl.u32 %v1154, 7
    %v1156 = vsub.s32 0, %v1155
    %v1157 = vrot.slane %v1152, %v1156
    %1160 = vrot.lane.b32.xlu0 %v1147, 64
    %v1161 = vpop.permute.xlu0 %1160
    %v1162 = vsel %vm349, %v1161, 0
    %1164 = vmatprep.subr.mxu0 0.0
    %1165 = vmatpush1.msra.mxu0 %v1148
    %1166 = vmatprep.subr.mxu0 0.0
    %1167 = vmatpush1.msra.mxu0 %v1149
    %1168 = vmatprep.subr.mxu0 0.0
    %1169 = vmatpush1.msra.mxu0 %v1150
    %1170 = vmatprep.subr.mxu0 0.0
    %1171 = vmatpush1.msra.mxu0 %v1151
    %1172 = vmatprep.subr.mxu0 0.0
    %1173 = vmatpush1.msra.mxu0 0.0
    %1174 = vmatprep.subr.mxu0 0.0
    %1175 = vmatpush1.msra.mxu0 0.0
    %1176 = vmatprep.subr.mxu0 0.0
    %1177 = vmatpush1.msra.mxu0 0.0
    %1178 = vmatprep.subr.mxu0 0.0
    %1179 = vmatpush1.msra.mxu0 0.0
    %1180 = vmatprep.subr.mxu0 0.0
    %1181 = vmatpush1.msra.mxu0 0.0
    %1182 = vmatprep.subr.mxu0 0.0
    %1183 = vmatpush1.msra.mxu0 0.0
    %1184 = vmatprep.subr.mxu0 0.0
    %1185 = vmatpush1.msra.mxu0 0.0
    %1186 = vmatprep.subr.mxu0 0.0
    %1187 = vmatpush1.msra.mxu0 0.0
    %1188 = vmatprep.subr.mxu0 0.0
    %1189 = vmatpush1.msra.mxu0 0.0
    %1190 = vmatprep.subr.mxu0 0.0
    %1191 = vmatpush1.msra.mxu0 0.0
    %1192 = vmatprep.subr.mxu0 0.0
    %1193 = vmatpush1.msra.mxu0 0.0
    %1194 = vmatprep.subr.mxu0 0.0
    %1195 = vmatpush1.msra.mxu0 0.0
    %1196 = vmatprep.subr.mxu0 0.0
    %1197 = vmatpush1.msra.mxu0 0.0
    %1198 = vmatprep.subr.mxu0 0.0
    %1199 = vmatpush1.msra.mxu0 0.0
    %1200 = vmatprep.subr.mxu0 0.0
    %1201 = vmatpush1.msra.mxu0 0.0
    %1202 = vmatprep.subr.mxu0 0.0
    %1203 = vmatpush1.msra.mxu0 0.0
    %1204 = vmatprep.subr.mxu0 0.0
    %1205 = vmatpush1.msra.mxu0 0.0
    %1206 = vmatprep.subr.mxu0 0.0
    %1207 = vmatpush1.msra.mxu0 0.0
    %1208 = vmatprep.subr.mxu0 0.0
    %1209 = vmatpush1.msra.mxu0 0.0
    %1210 = vmatprep.subr.mxu0 0.0
    %1211 = vmatpush1.msra.mxu0 0.0
    %1212 = vmatprep.subr.mxu0 0.0
    %1213 = vmatpush1.msra.mxu0 0.0
    %1214 = vmatprep.subr.mxu0 0.0
    %1215 = vmatpush1.msra.mxu0 0.0
    %1216 = vmatprep.subr.mxu0 0.0
    %1217 = vmatpush1.msra.mxu0 0.0
    %1218 = vmatprep.subr.mxu0 0.0
    %1219 = vmatpush1.msra.mxu0 0.0
    %1220 = vmatprep.subr.mxu0 0.0
    %1221 = vmatpush1.msra.mxu0 0.0
    %1222 = vmatprep.subr.mxu0 0.0
    %1223 = vmatpush1.msra.mxu0 0.0
    %1224 = vmatprep.subr.mxu0 0.0
    %1225 = vmatpush1.msra.mxu0 0.0
    %1226 = vmatprep.subr.mxu0 0.0
    %1227 = vmatpush1.msra.mxu0 0.0
    %1228 = vmatprep.mubr.f32.mxu0 0.0
    %1229 = vmatmul.mubr.f32.gmra.mrb[0].mxu0 %v451
    %v1230 = vpop.f32.mrb[0].mxu0
    %v1231 = vadd.f32 %v1157, %v1230
    %v1232 = vpop.f32.mrb[0].mxu0
    %1233 = vmatprep.mubr.f32.mxu0 0.0
    %1234 = vmatmul.mubr.f32.gmra.mrb[0].mxu0 %v551
    %v1235 = vpop.f32.mrb[0].mxu0
    %v1236 = vadd.f32 %v1157, %v1235
    %v1237 = vpop.f32.mrb[0].mxu0
    %1238 = vmatprep.mubr.f32.mxu0 0.0
    %1239 = vmatmul.mubr.f32.gmra.mrb[0].mxu0 %v651
    %v1240 = vpop.f32.mrb[0].mxu0
    %v1241 = vadd.f32 %v1157, %v1240
    %v1242 = vpop.f32.mrb[0].mxu0
    %1243 = vmatprep.mubr.f32.mxu0 0.0
    %1244 = vmatmul.mubr.f32.gmra.mrb[0].mxu0 %v751
    %v1245 = vpop.f32.mrb[0].mxu0
    %v1246 = vadd.f32 %v1157, %v1245
    %v1247 = vpop.f32.mrb[0].mxu0
    %1248 = vmatprep.mubr.f32.mxu0 0.0
    %1249 = vmatmul.mubr.f32.gmra.mrb[0].mxu0 %v851
    %v1250 = vpop.f32.mrb[0].mxu0
    %v1251 = vadd.f32 %v1157, %v1250
    %v1252 = vpop.f32.mrb[0].mxu0
    %1253 = vmatprep.mubr.f32.mxu0 0.0
    %1254 = vmatmul.mubr.f32.gmra.mrb[0].mxu0 %v951
    %v1255 = vpop.f32.mrb[0].mxu0
    %v1256 = vadd.f32 %v1157, %v1255
    %v1257 = vpop.f32.mrb[0].mxu0
    %1258 = vmatprep.mubr.f32.mxu0 0.0
    %1259 = vmatmul.mubr.f32.gmra.mrb[0].mxu0 %v1051
    %v1260 = vpop.f32.mrb[0].mxu0
    %v1261 = vadd.f32 %v1157, %v1260
    %v1262 = vpop.f32.mrb[0].mxu0
    %1263 = vmatprep.mubr.f32.mxu0 0.0
    %1264 = vmatmul.mubr.f32.gmra.mrb[0].mxu0 %v1162
    %v1265 = vpop.f32.mrb[0].mxu0
    %v1266 = vadd.f32 %v1157, %v1265
    %v1267 = vpop.f32.mrb[0].mxu0
    %1268 = vdwg.mxu0
    %1269 = vmatprep.subr.mxu0 0.0
    %1270 = vmatpush1.msra.mxu0 %v198
    %1271 = vmatprep.subr.mxu0 0.0
    %1272 = vmatpush1.msra.mxu0 %v199
    %1273 = vmatprep.subr.mxu0 0.0
    %1274 = vmatpush1.msra.mxu0 %v200
    %1275 = vmatprep.subr.mxu0 0.0
    %1276 = vmatpush1.msra.mxu0 %v201
    %1277 = vmatprep.subr.mxu0 0.0
    %1278 = vmatpush1.msra.mxu0 0.0
    %1279 = vmatprep.subr.mxu0 0.0
    %1280 = vmatpush1.msra.mxu0 0.0
    %1281 = vmatprep.subr.mxu0 0.0
    %1282 = vmatpush1.msra.mxu0 0.0
    %1283 = vmatprep.subr.mxu0 0.0
    %1284 = vmatpush1.msra.mxu0 0.0
    %1285 = vmatprep.subr.mxu0 0.0
    %1286 = vmatpush1.msra.mxu0 0.0
    %1287 = vmatprep.subr.mxu0 0.0
    %1288 = vmatpush1.msra.mxu0 0.0
    %1289 = vmatprep.subr.mxu0 0.0
    %1290 = vmatpush1.msra.mxu0 0.0
    %1291 = vmatprep.subr.mxu0 0.0
    %1292 = vmatpush1.msra.mxu0 0.0
    %1293 = vmatprep.subr.mxu0 0.0
    %1294 = vmatpush1.msra.mxu0 0.0
    %1295 = vmatprep.subr.mxu0 0.0
    %1296 = vmatpush1.msra.mxu0 0.0
    %1297 = vmatprep.subr.mxu0 0.0
    %1298 = vmatpush1.msra.mxu0 0.0
    %1299 = vmatprep.subr.mxu0 0.0
    %1300 = vmatpush1.msra.mxu0 0.0
    %1301 = vmatprep.subr.mxu0 0.0
    %1302 = vmatpush1.msra.mxu0 0.0
    %1303 = vmatprep.subr.mxu0 0.0
    %1304 = vmatpush1.msra.mxu0 0.0
    %1305 = vmatprep.subr.mxu0 0.0
    %1306 = vmatpush1.msra.mxu0 0.0
    %1307 = vmatprep.subr.mxu0 0.0
    %1308 = vmatpush1.msra.mxu0 0.0
    %1309 = vmatprep.subr.mxu0 0.0
    %1310 = vmatpush1.msra.mxu0 0.0
    %1311 = vmatprep.subr.mxu0 0.0
    %1312 = vmatpush1.msra.mxu0 0.0
    %1313 = vmatprep.subr.mxu0 0.0
    %1314 = vmatpush1.msra.mxu0 0.0
    %1315 = vmatprep.subr.mxu0 0.0
    %1316 = vmatpush1.msra.mxu0 0.0
    %1317 = vmatprep.subr.mxu0 0.0
    %1318 = vmatpush1.msra.mxu0 0.0
    %1319 = vmatprep.subr.mxu0 0.0
    %1320 = vmatpush1.msra.mxu0 0.0
    %1321 = vmatprep.subr.mxu0 0.0
    %1322 = vmatpush1.msra.mxu0 0.0
    %1323 = vmatprep.subr.mxu0 0.0
    %1324 = vmatpush1.msra.mxu0 0.0
    %1325 = vmatprep.subr.mxu0 0.0
    %1326 = vmatpush1.msra.mxu0 0.0
    %1327 = vmatprep.subr.mxu0 0.0
    %1328 = vmatpush1.msra.mxu0 0.0
    %1329 = vmatprep.subr.mxu0 0.0
    %1330 = vmatpush1.msra.mxu0 0.0
    %1331 = vmatprep.subr.mxu0 0.0
    %1332 = vmatpush1.msra.mxu0 0.0
    %1333 = vmatprep.mubr.f32.mxu0 0.0
    %1334 = vmatmul.mubr.f32.gmra.mrb[0].mxu0 %v351
    %v1335 = vpop.f32.mrb[0].mxu0
    %v1336 = vadd.f32 0.0, %v1335
    %v1337 = vpop.f32.mrb[0].mxu0
    %1338 = vdwg.mxu0
    %v1339 = vadd.f32 %v1231, %v1336
    %v1340 = vxor.u32 %v1339, 2147483648
    %v1341 = vmul.f32 %v1340, 1.442695
    %v1342 = vpow.pop %v1341
    %v1343 = vadd.f32 %v1342, 1.0
    %v1344 = vrcp.pop %v1343
    %v1345 = vmul.f32 1.0, %v1344
    %v1346 = vtanh.pop %v1339
    %v1347 = vmul.f32 %v1345, 0.0
    %1349 = vrot.lane.b32.xlu0 %v1346, 32
    %v1350 = vpop.permute.xlu0 %1349
    %v1352 = vmul.f32 %v1345, %v1350
    %1354 = vrot.lane.b32.xlu0 %v1352, 32
    %v1355 = vpop.permute.xlu0 %1354
    %v1357 = vadd.f32 %v1347, %v1355
    %v1358 = vtanh.pop %v1357
    %1360 = vrot.lane.b32.xlu0 %v1358, 32
    %v1361 = vpop.permute.xlu0 %1360
    %v1363 = vmul.f32 %v1345, %v1361
    %1365 = vrot.lane.b32.xlu0 %v1363, 64
    %v1366 = vpop.permute.xlu0 %1365
    %v1367 = vsel %vm349, %v1366, 0
    %1369 = vmatprep.subr.mxu0 0.0
    %1370 = vmatpush1.msra.mxu0 %v198
    %1371 = vmatprep.subr.mxu0 0.0
    %1372 = vmatpush1.msra.mxu0 %v199
    %1373 = vmatprep.subr.mxu0 0.0
    %1374 = vmatpush1.msra.mxu0 %v200
    %1375 = vmatprep.subr.mxu0 0.0
    %1376 = vmatpush1.msra.mxu0 %v201
    %1377 = vmatprep.subr.mxu0 0.0
    %1378 = vmatpush1.msra.mxu0 0.0
    %1379 = vmatprep.subr.mxu0 0.0
    %1380 = vmatpush1.msra.mxu0 0.0
    %1381 = vmatprep.subr.mxu0 0.0
    %1382 = vmatpush1.msra.mxu0 0.0
    %1383 = vmatprep.subr.mxu0 0.0
    %1384 = vmatpush1.msra.mxu0 0.0
    %1385 = vmatprep.subr.mxu0 0.0
    %1386 = vmatpush1.msra.mxu0 0.0
    %1387 = vmatprep.subr.mxu0 0.0
    %1388 = vmatpush1.msra.mxu0 0.0
    %1389 = vmatprep.subr.mxu0 0.0
    %1390 = vmatpush1.msra.mxu0 0.0
    %1391 = vmatprep.subr.mxu0 0.0
    %1392 = vmatpush1.msra.mxu0 0.0
    %1393 = vmatprep.subr.mxu0 0.0
    %1394 = vmatpush1.msra.mxu0 0.0
    %1395 = vmatprep.subr.mxu0 0.0
    %1396 = vmatpush1.msra.mxu0 0.0
    %1397 = vmatprep.subr.mxu0 0.0
    %1398 = vmatpush1.msra.mxu0 0.0
    %1399 = vmatprep.subr.mxu0 0.0
    %1400 = vmatpush1.msra.mxu0 0.0
    %1401 = vmatprep.subr.mxu0 0.0
    %1402 = vmatpush1.msra.mxu0 0.0
    %1403 = vmatprep.subr.mxu0 0.0
    %1404 = vmatpush1.msra.mxu0 0.0
    %1405 = vmatprep.subr.mxu0 0.0
    %1406 = vmatpush1.msra.mxu0 0.0
    %1407 = vmatprep.subr.mxu0 0.0
    %1408 = vmatpush1.msra.mxu0 0.0
    %1409 = vmatprep.subr.mxu0 0.0
    %1410 = vmatpush1.msra.mxu0 0.0
    %1411 = vmatprep.subr.mxu0 0.0
    %1412 = vmatpush1.msra.mxu0 0.0
    %1413 = vmatprep.subr.mxu0 0.0
    %1414 = vmatpush1.msra.mxu0 0.0
    %1415 = vmatprep.subr.mxu0 0.0
    %1416 = vmatpush1.msra.mxu0 0.0
    %1417 = vmatprep.subr.mxu0 0.0
    %1418 = vmatpush1.msra.mxu0 0.0
    %1419 = vmatprep.subr.mxu0 0.0
    %1420 = vmatpush1.msra.mxu0 0.0
    %1421 = vmatprep.subr.mxu0 0.0
    %1422 = vmatpush1.msra.mxu0 0.0
    %1423 = vmatprep.subr.mxu0 0.0
    %1424 = vmatpush1.msra.mxu0 0.0
    %1425 = vmatprep.subr.mxu0 0.0
    %1426 = vmatpush1.msra.mxu0 0.0
    %1427 = vmatprep.subr.mxu0 0.0
    %1428 = vmatpush1.msra.mxu0 0.0
    %1429 = vmatprep.subr.mxu0 0.0
    %1430 = vmatpush1.msra.mxu0 0.0
    %1431 = vmatprep.subr.mxu0 0.0
    %1432 = vmatpush1.msra.mxu0 0.0
    %1433 = vmatprep.mubr.f32.mxu0 0.0
    %1434 = vmatmul.mubr.f32.gmra.mrb[0].mxu0 %v1367
    %v1435 = vpop.f32.mrb[0].mxu0
    %v1436 = vadd.f32 0.0, %v1435
    %v1437 = vpop.f32.mrb[0].mxu0
    %1438 = vdwg.mxu0
    %v1439 = vadd.f32 %v1236, %v1436
    %v1440 = vxor.u32 %v1439, 2147483648
    %v1441 = vmul.f32 %v1440, 1.442695
    %v1442 = vpow.pop %v1441
    %v1443 = vadd.f32 %v1442, 1.0
    %v1444 = vrcp.pop %v1443
    %v1445 = vmul.f32 1.0, %v1444
    %v1446 = vtanh.pop %v1439
    %v1447 = vmul.f32 %v1445, %v1357
    %1449 = vrot.lane.b32.xlu0 %v1446, 32
    %v1450 = vpop.permute.xlu0 %1449
    %v1452 = vmul.f32 %v1445, %v1450
    %1454 = vrot.lane.b32.xlu0 %v1452, 32
    %v1455 = vpop.permute.xlu0 %1454
    %v1457 = vadd.f32 %v1447, %v1455
    %v1458 = vtanh.pop %v1457
    %1460 = vrot.lane.b32.xlu0 %v1458, 32
    %v1461 = vpop.permute.xlu0 %1460
    %v1463 = vmul.f32 %v1445, %v1461
    %1465 = vrot.lane.b32.xlu0 %v1463, 64
    %v1466 = vpop.permute.xlu0 %1465
    %v1467 = vsel %vm349, %v1466, 0
    %1469 = vmatprep.subr.mxu0 0.0
    %1470 = vmatpush1.msra.mxu0 %v198
    %1471 = vmatprep.subr.mxu0 0.0
    %1472 = vmatpush1.msra.mxu0 %v199
    %1473 = vmatprep.subr.mxu0 0.0
    %1474 = vmatpush1.msra.mxu0 %v200
    %1475 = vmatprep.subr.mxu0 0.0
    %1476 = vmatpush1.msra.mxu0 %v201
    %1477 = vmatprep.subr.mxu0 0.0
    %1478 = vmatpush1.msra.mxu0 0.0
    %1479 = vmatprep.subr.mxu0 0.0
    %1480 = vmatpush1.msra.mxu0 0.0
    %1481 = vmatprep.subr.mxu0 0.0
    %1482 = vmatpush1.msra.mxu0 0.0
    %1483 = vmatprep.subr.mxu0 0.0
    %1484 = vmatpush1.msra.mxu0 0.0
    %1485 = vmatprep.subr.mxu0 0.0
    %1486 = vmatpush1.msra.mxu0 0.0
    %1487 = vmatprep.subr.mxu0 0.0
    %1488 = vmatpush1.msra.mxu0 0.0
    %1489 = vmatprep.subr.mxu0 0.0
    %1490 = vmatpush1.msra.mxu0 0.0
    %1491 = vmatprep.subr.mxu0 0.0
    %1492 = vmatpush1.msra.mxu0 0.0
    %1493 = vmatprep.subr.mxu0 0.0
    %1494 = vmatpush1.msra.mxu0 0.0
    %1495 = vmatprep.subr.mxu0 0.0
    %1496 = vmatpush1.msra.mxu0 0.0
    %1497 = vmatprep.subr.mxu0 0.0
    %1498 = vmatpush1.msra.mxu0 0.0
    %1499 = vmatprep.subr.mxu0 0.0
    %1500 = vmatpush1.msra.mxu0 0.0
    %1501 = vmatprep.subr.mxu0 0.0
    %1502 = vmatpush1.msra.mxu0 0.0
    %1503 = vmatprep.subr.mxu0 0.0
    %1504 = vmatpush1.msra.mxu0 0.0
    %1505 = vmatprep.subr.mxu0 0.0
    %1506 = vmatpush1.msra.mxu0 0.0
    %1507 = vmatprep.subr.mxu0 0.0
    %1508 = vmatpush1.msra.mxu0 0.0
    %1509 = vmatprep.subr.mxu0 0.0
    %1510 = vmatpush1.msra.mxu0 0.0
    %1511 = vmatprep.subr.mxu0 0.0
    %1512 = vmatpush1.msra.mxu0 0.0
    %1513 = vmatprep.subr.mxu0 0.0
    %1514 = vmatpush1.msra.mxu0 0.0
    %1515 = vmatprep.subr.mxu0 0.0
    %1516 = vmatpush1.msra.mxu0 0.0
    %1517 = vmatprep.subr.mxu0 0.0
    %1518 = vmatpush1.msra.mxu0 0.0
    %1519 = vmatprep.subr.mxu0 0.0
    %1520 = vmatpush1.msra.mxu0 0.0
    %1521 = vmatprep.subr.mxu0 0.0
    %1522 = vmatpush1.msra.mxu0 0.0
    %1523 = vmatprep.subr.mxu0 0.0
    %1524 = vmatpush1.msra.mxu0 0.0
    %1525 = vmatprep.subr.mxu0 0.0
    %1526 = vmatpush1.msra.mxu0 0.0
    %1527 = vmatprep.subr.mxu0 0.0
    %1528 = vmatpush1.msra.mxu0 0.0
    %1529 = vmatprep.subr.mxu0 0.0
    %1530 = vmatpush1.msra.mxu0 0.0
    %1531 = vmatprep.subr.mxu0 0.0
    %1532 = vmatpush1.msra.mxu0 0.0
    %1533 = vmatprep.mubr.f32.mxu0 0.0
    %1534 = vmatmul.mubr.f32.gmra.mrb[0].mxu0 %v1467
    %v1535 = vpop.f32.mrb[0].mxu0
    %v1536 = vadd.f32 0.0, %v1535
    %v1537 = vpop.f32.mrb[0].mxu0
    %1538 = vdwg.mxu0
    %v1539 = vadd.f32 %v1241, %v1536
    %v1540 = vxor.u32 %v1539, 2147483648
    %v1541 = vmul.f32 %v1540, 1.442695
    %v1542 = vpow.pop %v1541
    %v1543 = vadd.f32 %v1542, 1.0
    %v1544 = vrcp.pop %v1543
    %v1545 = vmul.f32 1.0, %v1544
    %v1546 = vtanh.pop %v1539
    %v1547 = vmul.f32 %v1545, %v1457
    %1549 = vrot.lane.b32.xlu0 %v1546, 32
    %v1550 = vpop.permute.xlu0 %1549
    %v1552 = vmul.f32 %v1545, %v1550
    %1554 = vrot.lane.b32.xlu0 %v1552, 32
    %v1555 = vpop.permute.xlu0 %1554
    %v1557 = vadd.f32 %v1547, %v1555
    %v1558 = vtanh.pop %v1557
    %1560 = vrot.lane.b32.xlu0 %v1558, 32
    %v1561 = vpop.permute.xlu0 %1560
    %v1563 = vmul.f32 %v1545, %v1561
    %1565 = vrot.lane.b32.xlu0 %v1563, 64
    %v1566 = vpop.permute.xlu0 %1565
    %v1567 = vsel %vm349, %v1566, 0
    %1569 = vmatprep.subr.mxu0 0.0
    %1570 = vmatpush1.msra.mxu0 %v198
    %1571 = vmatprep.subr.mxu0 0.0
    %1572 = vmatpush1.msra.mxu0 %v199
    %1573 = vmatprep.subr.mxu0 0.0
    %1574 = vmatpush1.msra.mxu0 %v200
    %1575 = vmatprep.subr.mxu0 0.0
    %1576 = vmatpush1.msra.mxu0 %v201
    %1577 = vmatprep.subr.mxu0 0.0
    %1578 = vmatpush1.msra.mxu0 0.0
    %1579 = vmatprep.subr.mxu0 0.0
    %1580 = vmatpush1.msra.mxu0 0.0
    %1581 = vmatprep.subr.mxu0 0.0
    %1582 = vmatpush1.msra.mxu0 0.0
    %1583 = vmatprep.subr.mxu0 0.0
    %1584 = vmatpush1.msra.mxu0 0.0
    %1585 = vmatprep.subr.mxu0 0.0
    %1586 = vmatpush1.msra.mxu0 0.0
    %1587 = vmatprep.subr.mxu0 0.0
    %1588 = vmatpush1.msra.mxu0 0.0
    %1589 = vmatprep.subr.mxu0 0.0
    %1590 = vmatpush1.msra.mxu0 0.0
    %1591 = vmatprep.subr.mxu0 0.0
    %1592 = vmatpush1.msra.mxu0 0.0
    %1593 = vmatprep.subr.mxu0 0.0
    %1594 = vmatpush1.msra.mxu0 0.0
    %1595 = vmatprep.subr.mxu0 0.0
    %1596 = vmatpush1.msra.mxu0 0.0
    %1597 = vmatprep.subr.mxu0 0.0
    %1598 = vmatpush1.msra.mxu0 0.0
    %1599 = vmatprep.subr.mxu0 0.0
    %1600 = vmatpush1.msra.mxu0 0.0
    %1601 = vmatprep.subr.mxu0 0.0
    %1602 = vmatpush1.msra.mxu0 0.0
    %1603 = vmatprep.subr.mxu0 0.0
    %1604 = vmatpush1.msra.mxu0 0.0
    %1605 = vmatprep.subr.mxu0 0.0
    %1606 = vmatpush1.msra.mxu0 0.0
    %1607 = vmatprep.subr.mxu0 0.0
    %1608 = vmatpush1.msra.mxu0 0.0
    %1609 = vmatprep.subr.mxu0 0.0
    %1610 = vmatpush1.msra.mxu0 0.0
    %1611 = vmatprep.subr.mxu0 0.0
    %1612 = vmatpush1.msra.mxu0 0.0
    %1613 = vmatprep.subr.mxu0 0.0
    %1614 = vmatpush1.msra.mxu0 0.0
    %1615 = vmatprep.subr.mxu0 0.0
    %1616 = vmatpush1.msra.mxu0 0.0
    %1617 = vmatprep.subr.mxu0 0.0
    %1618 = vmatpush1.msra.mxu0 0.0
    %1619 = vmatprep.subr.mxu0 0.0
    %1620 = vmatpush1.msra.mxu0 0.0
    %1621 = vmatprep.subr.mxu0 0.0
    %1622 = vmatpush1.msra.mxu0 0.0
    %1623 = vmatprep.subr.mxu0 0.0
    %1624 = vmatpush1.msra.mxu0 0.0
    %1625 = vmatprep.subr.mxu0 0.0
    %1626 = vmatpush1.msra.mxu0 0.0
    %1627 = vmatprep.subr.mxu0 0.0
    %1628 = vmatpush1.msra.mxu0 0.0
    %1629 = vmatprep.subr.mxu0 0.0
    %1630 = vmatpush1.msra.mxu0 0.0
    %1631 = vmatprep.subr.mxu0 0.0
    %1632 = vmatpush1.msra.mxu0 0.0
    %1633 = vmatprep.mubr.f32.mxu0 0.0
    %1634 = vmatmul.mubr.f32.gmra.mrb[0].mxu0 %v1567
    %v1635 = vpop.f32.mrb[0].mxu0
    %v1636 = vadd.f32 0.0, %v1635
    %v1637 = vpop.f32.mrb[0].mxu0
    %1638 = vdwg.mxu0
    %v1639 = vadd.f32 %v1246, %v1636
    %v1640 = vxor.u32 %v1639, 2147483648
    %v1641 = vmul.f32 %v1640, 1.442695
    %v1642 = vpow.pop %v1641
    %v1643 = vadd.f32 %v1642, 1.0
    %v1644 = vrcp.pop %v1643
    %v1645 = vmul.f32 1.0, %v1644
    %v1646 = vtanh.pop %v1639
    %v1647 = vmul.f32 %v1645, %v1557
    %1649 = vrot.lane.b32.xlu0 %v1646, 32
    %v1650 = vpop.permute.xlu0 %1649
    %v1652 = vmul.f32 %v1645, %v1650
    %1654 = vrot.lane.b32.xlu0 %v1652, 32
    %v1655 = vpop.permute.xlu0 %1654
    %v1657 = vadd.f32 %v1647, %v1655
    %v1658 = vtanh.pop %v1657
    %1660 = vrot.lane.b32.xlu0 %v1658, 32
    %v1661 = vpop.permute.xlu0 %1660
    %v1663 = vmul.f32 %v1645, %v1661
    %1665 = vrot.lane.b32.xlu0 %v1663, 64
    %v1666 = vpop.permute.xlu0 %1665
    %v1667 = vsel %vm349, %v1666, 0
    %1669 = vmatprep.subr.mxu0 0.0
    %1670 = vmatpush1.msra.mxu0 %v198
    %1671 = vmatprep.subr.mxu0 0.0
    %1672 = vmatpush1.msra.mxu0 %v199
    %1673 = vmatprep.subr.mxu0 0.0
    %1674 = vmatpush1.msra.mxu0 %v200
    %1675 = vmatprep.subr.mxu0 0.0
    %1676 = vmatpush1.msra.mxu0 %v201
    %1677 = vmatprep.subr.mxu0 0.0
    %1678 = vmatpush1.msra.mxu0 0.0
    %1679 = vmatprep.subr.mxu0 0.0
    %1680 = vmatpush1.msra.mxu0 0.0
    %1681 = vmatprep.subr.mxu0 0.0
    %1682 = vmatpush1.msra.mxu0 0.0
    %1683 = vmatprep.subr.mxu0 0.0
    %1684 = vmatpush1.msra.mxu0 0.0
    %1685 = vmatprep.subr.mxu0 0.0
    %1686 = vmatpush1.msra.mxu0 0.0
    %1687 = vmatprep.subr.mxu0 0.0
    %1688 = vmatpush1.msra.mxu0 0.0
    %1689 = vmatprep.subr.mxu0 0.0
    %1690 = vmatpush1.msra.mxu0 0.0
    %1691 = vmatprep.subr.mxu0 0.0
    %1692 = vmatpush1.msra.mxu0 0.0
    %1693 = vmatprep.subr.mxu0 0.0
    %1694 = vmatpush1.msra.mxu0 0.0
    %1695 = vmatprep.subr.mxu0 0.0
    %1696 = vmatpush1.msra.mxu0 0.0
    %1697 = vmatprep.subr.mxu0 0.0
    %1698 = vmatpush1.msra.mxu0 0.0
    %1699 = vmatprep.subr.mxu0 0.0
    %1700 = vmatpush1.msra.mxu0 0.0
    %1701 = vmatprep.subr.mxu0 0.0
    %1702 = vmatpush1.msra.mxu0 0.0
    %1703 = vmatprep.subr.mxu0 0.0
    %1704 = vmatpush1.msra.mxu0 0.0
    %1705 = vmatprep.subr.mxu0 0.0
    %1706 = vmatpush1.msra.mxu0 0.0
    %1707 = vmatprep.subr.mxu0 0.0
    %1708 = vmatpush1.msra.mxu0 0.0
    %1709 = vmatprep.subr.mxu0 0.0
    %1710 = vmatpush1.msra.mxu0 0.0
    %1711 = vmatprep.subr.mxu0 0.0
    %1712 = vmatpush1.msra.mxu0 0.0
    %1713 = vmatprep.subr.mxu0 0.0
    %1714 = vmatpush1.msra.mxu0 0.0
    %1715 = vmatprep.subr.mxu0 0.0
    %1716 = vmatpush1.msra.mxu0 0.0
    %1717 = vmatprep.subr.mxu0 0.0
    %1718 = vmatpush1.msra.mxu0 0.0
    %1719 = vmatprep.subr.mxu0 0.0
    %1720 = vmatpush1.msra.mxu0 0.0
    %1721 = vmatprep.subr.mxu0 0.0
    %1722 = vmatpush1.msra.mxu0 0.0
    %1723 = vmatprep.subr.mxu0 0.0
    %1724 = vmatpush1.msra.mxu0 0.0
    %1725 = vmatprep.subr.mxu0 0.0
    %1726 = vmatpush1.msra.mxu0 0.0
    %1727 = vmatprep.subr.mxu0 0.0
    %1728 = vmatpush1.msra.mxu0 0.0
    %1729 = vmatprep.subr.mxu0 0.0
    %1730 = vmatpush1.msra.mxu0 0.0
    %1731 = vmatprep.subr.mxu0 0.0
    %1732 = vmatpush1.msra.mxu0 0.0
    %1733 = vmatprep.mubr.f32.mxu0 0.0
    %1734 = vmatmul.mubr.f32.gmra.mrb[0].mxu0 %v1667
    %v1735 = vpop.f32.mrb[0].mxu0
    %v1736 = vadd.f32 0.0, %v1735
    %v1737 = vpop.f32.mrb[0].mxu0
    %1738 = vdwg.mxu0
    %v1739 = vadd.f32 %v1251, %v1736
    %v1740 = vxor.u32 %v1739, 2147483648
    %v1741 = vmul.f32 %v1740, 1.442695
    %v1742 = vpow.pop %v1741
    %v1743 = vadd.f32 %v1742, 1.0
    %v1744 = vrcp.pop %v1743
    %v1745 = vmul.f32 1.0, %v1744
    %v1746 = vtanh.pop %v1739
    %v1747 = vmul.f32 %v1745, %v1657
    %1749 = vrot.lane.b32.xlu0 %v1746, 32
    %v1750 = vpop.permute.xlu0 %1749
    %v1752 = vmul.f32 %v1745, %v1750
    %1754 = vrot.lane.b32.xlu0 %v1752, 32
    %v1755 = vpop.permute.xlu0 %1754
    %v1757 = vadd.f32 %v1747, %v1755
    %v1758 = vtanh.pop %v1757
    %1760 = vrot.lane.b32.xlu0 %v1758, 32
    %v1761 = vpop.permute.xlu0 %1760
    %v1763 = vmul.f32 %v1745, %v1761
    %1765 = vrot.lane.b32.xlu0 %v1763, 64
    %v1766 = vpop.permute.xlu0 %1765
    %v1767 = vsel %vm349, %v1766, 0
    %1769 = vmatprep.subr.mxu0 0.0
    %1770 = vmatpush1.msra.mxu0 %v198
    %1771 = vmatprep.subr.mxu0 0.0
    %1772 = vmatpush1.msra.mxu0 %v199
    %1773 = vmatprep.subr.mxu0 0.0
    %1774 = vmatpush1.msra.mxu0 %v200
    %1775 = vmatprep.subr.mxu0 0.0
    %1776 = vmatpush1.msra.mxu0 %v201
    %1777 = vmatprep.subr.mxu0 0.0
    %1778 = vmatpush1.msra.mxu0 0.0
    %1779 = vmatprep.subr.mxu0 0.0
    %1780 = vmatpush1.msra.mxu0 0.0
    %1781 = vmatprep.subr.mxu0 0.0
    %1782 = vmatpush1.msra.mxu0 0.0
    %1783 = vmatprep.subr.mxu0 0.0
    %1784 = vmatpush1.msra.mxu0 0.0
    %1785 = vmatprep.subr.mxu0 0.0
    %1786 = vmatpush1.msra.mxu0 0.0
    %1787 = vmatprep.subr.mxu0 0.0
    %1788 = vmatpush1.msra.mxu0 0.0
    %1789 = vmatprep.subr.mxu0 0.0
    %1790 = vmatpush1.msra.mxu0 0.0
    %1791 = vmatprep.subr.mxu0 0.0
    %1792 = vmatpush1.msra.mxu0 0.0
    %1793 = vmatprep.subr.mxu0 0.0
    %1794 = vmatpush1.msra.mxu0 0.0
    %1795 = vmatprep.subr.mxu0 0.0
    %1796 = vmatpush1.msra.mxu0 0.0
    %1797 = vmatprep.subr.mxu0 0.0
    %1798 = vmatpush1.msra.mxu0 0.0
    %1799 = vmatprep.subr.mxu0 0.0
    %1800 = vmatpush1.msra.mxu0 0.0
    %1801 = vmatprep.subr.mxu0 0.0
    %1802 = vmatpush1.msra.mxu0 0.0
    %1803 = vmatprep.subr.mxu0 0.0
    %1804 = vmatpush1.msra.mxu0 0.0
    %1805 = vmatprep.subr.mxu0 0.0
    %1806 = vmatpush1.msra.mxu0 0.0
    %1807 = vmatprep.subr.mxu0 0.0
    %1808 = vmatpush1.msra.mxu0 0.0
    %1809 = vmatprep.subr.mxu0 0.0
    %1810 = vmatpush1.msra.mxu0 0.0
    %1811 = vmatprep.subr.mxu0 0.0
    %1812 = vmatpush1.msra.mxu0 0.0
    %1813 = vmatprep.subr.mxu0 0.0
    %1814 = vmatpush1.msra.mxu0 0.0
    %1815 = vmatprep.subr.mxu0 0.0
    %1816 = vmatpush1.msra.mxu0 0.0
    %1817 = vmatprep.subr.mxu0 0.0
    %1818 = vmatpush1.msra.mxu0 0.0
    %1819 = vmatprep.subr.mxu0 0.0
    %1820 = vmatpush1.msra.mxu0 0.0
    %1821 = vmatprep.subr.mxu0 0.0
    %1822 = vmatpush1.msra.mxu0 0.0
    %1823 = vmatprep.subr.mxu0 0.0
    %1824 = vmatpush1.msra.mxu0 0.0
    %1825 = vmatprep.subr.mxu0 0.0
    %1826 = vmatpush1.msra.mxu0 0.0
    %1827 = vmatprep.subr.mxu0 0.0
    %1828 = vmatpush1.msra.mxu0 0.0
    %1829 = vmatprep.subr.mxu0 0.0
    %1830 = vmatpush1.msra.mxu0 0.0
    %1831 = vmatprep.subr.mxu0 0.0
    %1832 = vmatpush1.msra.mxu0 0.0
    %1833 = vmatprep.mubr.f32.mxu0 0.0
    %1834 = vmatmul.mubr.f32.gmra.mrb[0].mxu0 %v1767
    %v1835 = vpop.f32.mrb[0].mxu0
    %v1836 = vadd.f32 0.0, %v1835
    %v1837 = vpop.f32.mrb[0].mxu0
    %1838 = vdwg.mxu0
    %v1839 = vadd.f32 %v1256, %v1836
    %v1840 = vxor.u32 %v1839, 2147483648
    %v1841 = vmul.f32 %v1840, 1.442695
    %v1842 = vpow.pop %v1841
    %v1843 = vadd.f32 %v1842, 1.0
    %v1844 = vrcp.pop %v1843
    %v1845 = vmul.f32 1.0, %v1844
    %v1846 = vtanh.pop %v1839
    %v1847 = vmul.f32 %v1845, %v1757
    %1849 = vrot.lane.b32.xlu0 %v1846, 32
    %v1850 = vpop.permute.xlu0 %1849
    %v1852 = vmul.f32 %v1845, %v1850
    %1854 = vrot.lane.b32.xlu0 %v1852, 32
    %v1855 = vpop.permute.xlu0 %1854
    %v1857 = vadd.f32 %v1847, %v1855
    %v1858 = vtanh.pop %v1857
    %1860 = vrot.lane.b32.xlu0 %v1858, 32
    %v1861 = vpop.permute.xlu0 %1860
    %v1863 = vmul.f32 %v1845, %v1861
    %1865 = vrot.lane.b32.xlu0 %v1863, 64
    %v1866 = vpop.permute.xlu0 %1865
    %v1867 = vsel %vm349, %v1866, 0
    %1869 = vmatprep.subr.mxu0 0.0
    %1870 = vmatpush1.msra.mxu0 %v198
    %1871 = vmatprep.subr.mxu0 0.0
    %1872 = vmatpush1.msra.mxu0 %v199
    %1873 = vmatprep.subr.mxu0 0.0
    %1874 = vmatpush1.msra.mxu0 %v200
    %1875 = vmatprep.subr.mxu0 0.0
    %1876 = vmatpush1.msra.mxu0 %v201
    %1877 = vmatprep.subr.mxu0 0.0
    %1878 = vmatpush1.msra.mxu0 0.0
    %1879 = vmatprep.subr.mxu0 0.0
    %1880 = vmatpush1.msra.mxu0 0.0
    %1881 = vmatprep.subr.mxu0 0.0
    %1882 = vmatpush1.msra.mxu0 0.0
    %1883 = vmatprep.subr.mxu0 0.0
    %1884 = vmatpush1.msra.mxu0 0.0
    %1885 = vmatprep.subr.mxu0 0.0
    %1886 = vmatpush1.msra.mxu0 0.0
    %1887 = vmatprep.subr.mxu0 0.0
    %1888 = vmatpush1.msra.mxu0 0.0
    %1889 = vmatprep.subr.mxu0 0.0
    %1890 = vmatpush1.msra.mxu0 0.0
    %1891 = vmatprep.subr.mxu0 0.0
    %1892 = vmatpush1.msra.mxu0 0.0
    %1893 = vmatprep.subr.mxu0 0.0
    %1894 = vmatpush1.msra.mxu0 0.0
    %1895 = vmatprep.subr.mxu0 0.0
    %1896 = vmatpush1.msra.mxu0 0.0
    %1897 = vmatprep.subr.mxu0 0.0
    %1898 = vmatpush1.msra.mxu0 0.0
    %1899 = vmatprep.subr.mxu0 0.0
    %1900 = vmatpush1.msra.mxu0 0.0
    %1901 = vmatprep.subr.mxu0 0.0
    %1902 = vmatpush1.msra.mxu0 0.0
    %1903 = vmatprep.subr.mxu0 0.0
    %1904 = vmatpush1.msra.mxu0 0.0
    %1905 = vmatprep.subr.mxu0 0.0
    %1906 = vmatpush1.msra.mxu0 0.0
    %1907 = vmatprep.subr.mxu0 0.0
    %1908 = vmatpush1.msra.mxu0 0.0
    %1909 = vmatprep.subr.mxu0 0.0
    %1910 = vmatpush1.msra.mxu0 0.0
    %1911 = vmatprep.subr.mxu0 0.0
    %1912 = vmatpush1.msra.mxu0 0.0
    %1913 = vmatprep.subr.mxu0 0.0
    %1914 = vmatpush1.msra.mxu0 0.0
    %1915 = vmatprep.subr.mxu0 0.0
    %1916 = vmatpush1.msra.mxu0 0.0
    %1917 = vmatprep.subr.mxu0 0.0
    %1918 = vmatpush1.msra.mxu0 0.0
    %1919 = vmatprep.subr.mxu0 0.0
    %1920 = vmatpush1.msra.mxu0 0.0
    %1921 = vmatprep.subr.mxu0 0.0
    %1922 = vmatpush1.msra.mxu0 0.0
    %1923 = vmatprep.subr.mxu0 0.0
    %1924 = vmatpush1.msra.mxu0 0.0
    %1925 = vmatprep.subr.mxu0 0.0
    %1926 = vmatpush1.msra.mxu0 0.0
    %1927 = vmatprep.subr.mxu0 0.0
    %1928 = vmatpush1.msra.mxu0 0.0
    %1929 = vmatprep.subr.mxu0 0.0
    %1930 = vmatpush1.msra.mxu0 0.0
    %1931 = vmatprep.subr.mxu0 0.0
    %1932 = vmatpush1.msra.mxu0 0.0
    %1933 = vmatprep.mubr.f32.mxu0 0.0
    %1934 = vmatmul.mubr.f32.gmra.mrb[0].mxu0 %v1867
    %v1935 = vpop.f32.mrb[0].mxu0
    %v1936 = vadd.f32 0.0, %v1935
    %v1937 = vpop.f32.mrb[0].mxu0
    %1938 = vdwg.mxu0
    %v1939 = vadd.f32 %v1261, %v1936
    %v1940 = vxor.u32 %v1939, 2147483648
    %v1941 = vmul.f32 %v1940, 1.442695
    %v1942 = vpow.pop %v1941
    %v1943 = vadd.f32 %v1942, 1.0
    %v1944 = vrcp.pop %v1943
    %v1945 = vmul.f32 1.0, %v1944
    %v1946 = vtanh.pop %v1939
    %v1947 = vmul.f32 %v1945, %v1857
    %1949 = vrot.lane.b32.xlu0 %v1946, 32
    %v1950 = vpop.permute.xlu0 %1949
    %v1952 = vmul.f32 %v1945, %v1950
    %1954 = vrot.lane.b32.xlu0 %v1952, 32
    %v1955 = vpop.permute.xlu0 %1954
    %v1957 = vadd.f32 %v1947, %v1955
    %v1958 = vtanh.pop %v1957
    %1960 = vrot.lane.b32.xlu0 %v1958, 32
    %v1961 = vpop.permute.xlu0 %1960
    %v1963 = vmul.f32 %v1945, %v1961
    %1965 = vrot.lane.b32.xlu0 %v1963, 64
    %v1966 = vpop.permute.xlu0 %1965
    %v1967 = vsel %vm349, %v1966, 0
    %1969 = vmatprep.subr.mxu0 0.0
    %1970 = vmatpush1.msra.mxu0 %v198
    %1971 = vmatprep.subr.mxu0 0.0
    %1972 = vmatpush1.msra.mxu0 %v199
    %1973 = vmatprep.subr.mxu0 0.0
    %1974 = vmatpush1.msra.mxu0 %v200
    %1975 = vmatprep.subr.mxu0 0.0
    %1976 = vmatpush1.msra.mxu0 %v201
    %1977 = vmatprep.subr.mxu0 0.0
    %1978 = vmatpush1.msra.mxu0 0.0
    %1979 = vmatprep.subr.mxu0 0.0
    %1980 = vmatpush1.msra.mxu0 0.0
    %1981 = vmatprep.subr.mxu0 0.0
    %1982 = vmatpush1.msra.mxu0 0.0
    %1983 = vmatprep.subr.mxu0 0.0
    %1984 = vmatpush1.msra.mxu0 0.0
    %1985 = vmatprep.subr.mxu0 0.0
    %1986 = vmatpush1.msra.mxu0 0.0
    %1987 = vmatprep.subr.mxu0 0.0
    %1988 = vmatpush1.msra.mxu0 0.0
    %1989 = vmatprep.subr.mxu0 0.0
    %1990 = vmatpush1.msra.mxu0 0.0
    %1991 = vmatprep.subr.mxu0 0.0
    %1992 = vmatpush1.msra.mxu0 0.0
    %1993 = vmatprep.subr.mxu0 0.0
    %1994 = vmatpush1.msra.mxu0 0.0
    %1995 = vmatprep.subr.mxu0 0.0
    %1996 = vmatpush1.msra.mxu0 0.0
    %1997 = vmatprep.subr.mxu0 0.0
    %1998 = vmatpush1.msra.mxu0 0.0
    %1999 = vmatprep.subr.mxu0 0.0
    %2000 = vmatpush1.msra.mxu0 0.0
    %2001 = vmatprep.subr.mxu0 0.0
    %2002 = vmatpush1.msra.mxu0 0.0
    %2003 = vmatprep.subr.mxu0 0.0
    %2004 = vmatpush1.msra.mxu0 0.0
    %2005 = vmatprep.subr.mxu0 0.0
    %2006 = vmatpush1.msra.mxu0 0.0
    %2007 = vmatprep.subr.mxu0 0.0
    %2008 = vmatpush1.msra.mxu0 0.0
    %2009 = vmatprep.subr.mxu0 0.0
    %2010 = vmatpush1.msra.mxu0 0.0
    %2011 = vmatprep.subr.mxu0 0.0
    %2012 = vmatpush1.msra.mxu0 0.0
    %2013 = vmatprep.subr.mxu0 0.0
    %2014 = vmatpush1.msra.mxu0 0.0
    %2015 = vmatprep.subr.mxu0 0.0
    %2016 = vmatpush1.msra.mxu0 0.0
    %2017 = vmatprep.subr.mxu0 0.0
    %2018 = vmatpush1.msra.mxu0 0.0
    %2019 = vmatprep.subr.mxu0 0.0
    %2020 = vmatpush1.msra.mxu0 0.0
    %2021 = vmatprep.subr.mxu0 0.0
    %2022 = vmatpush1.msra.mxu0 0.0
    %2023 = vmatprep.subr.mxu0 0.0
    %2024 = vmatpush1.msra.mxu0 0.0
    %2025 = vmatprep.subr.mxu0 0.0
    %2026 = vmatpush1.msra.mxu0 0.0
    %2027 = vmatprep.subr.mxu0 0.0
    %2028 = vmatpush1.msra.mxu0 0.0
    %2029 = vmatprep.subr.mxu0 0.0
    %2030 = vmatpush1.msra.mxu0 0.0
    %2031 = vmatprep.subr.mxu0 0.0
    %2032 = vmatpush1.msra.mxu0 0.0
    %2033 = vmatprep.mubr.f32.mxu0 0.0
    %2034 = vmatmul.mubr.f32.gmra.mrb[0].mxu0 %v1967
    %v2035 = vpop.f32.mrb[0].mxu0
    %v2036 = vadd.f32 0.0, %v2035
    %v2037 = vpop.f32.mrb[0].mxu0
    %2038 = vdwg.mxu0
    %v2039 = vadd.f32 %v1266, %v2036
    %v2040 = vxor.u32 %v2039, 2147483648
    %v2041 = vmul.f32 %v2040, 1.442695
    %v2042 = vpow.pop %v2041
    %v2043 = vadd.f32 %v2042, 1.0
    %v2044 = vrcp.pop %v2043
    %v2045 = vmul.f32 1.0, %v2044
    %v2046 = vtanh.pop %v2039
    %v2047 = vmul.f32 %v2045, %v1957
    %2049 = vrot.lane.b32.xlu0 %v2046, 32
    %v2050 = vpop.permute.xlu0 %2049
    %v2052 = vmul.f32 %v2045, %v2050
    %2054 = vrot.lane.b32.xlu0 %v2052, 32
    %v2055 = vpop.permute.xlu0 %2054
    %v2057 = vadd.f32 %v2047, %v2055
    %v2058 = vtanh.pop %v2057
    %2060 = vrot.lane.b32.xlu0 %v2058, 32
    %v2061 = vpop.permute.xlu0 %2060
    %v2063 = vmul.f32 %v2045, %v2061
    %2065 = vrot.lane.b32.xlu0 %v2063, 64
    %v2066 = vpop.permute.xlu0 %2065
    %2068 = vst.msk [vmem:[#allocation20] sm:$0xff] %vm349, %v2066
    %v2069 = vld [vmem:[#allocation11] sm:$0xff]
    %v2070 = vld [vmem:[%s9] sm:$0xff]
    %v2071 = vld [vmem:[%s9 + $0x8] sm:$0xff]
    %v2072 = vld [vmem:[%s9 + $0x10] sm:$0xff]
    %v2073 = vld [vmem:[%s9 + $0x18] sm:$0xff]
    %v2074 = vld [vmem:[%s9 + $0x20] sm:$0xff]
    %v2075 = vld [vmem:[%s9 + $0x28] sm:$0xff]
    %v2076 = vld [vmem:[%s9 + $0x30] sm:$0xff]
    %v2077 = vld [vmem:[%s9 + $0x38] sm:$0xff]
    %v2078 = vld [vmem:[#allocation13] sm:$0x1]
    %v2080 = vlaneseq
    %v2081 = vshrl.u32 %v2080, 7
    %v2082 = vsub.s32 0, %v2081
    %v2083 = vrot.slane %v2078, %v2082
    %vm2085 = vcmask 523264
    %v2087 = vsel %vm2085, %v2069, 0
    %2089 = vmatprep.subr.mxu0 0.0
    %2090 = vmatpush1.msra.mxu0 %v2070
    %2091 = vmatprep.subr.mxu0 0.0
    %2092 = vmatpush1.msra.mxu0 %v2071
    %2093 = vmatprep.subr.mxu0 0.0
    %2094 = vmatpush1.msra.mxu0 %v2072
    %2095 = vmatprep.subr.mxu0 0.0
    %2096 = vmatpush1.msra.mxu0 %v2073
    %2097 = vmatprep.subr.mxu0 0.0
    %2098 = vmatpush1.msra.mxu0 %v2074
    %2099 = vmatprep.subr.mxu0 0.0
    %2100 = vmatpush1.msra.mxu0 %v2075
    %2101 = vmatprep.subr.mxu0 0.0
    %2102 = vmatpush1.msra.mxu0 %v2076
    %2103 = vmatprep.subr.mxu0 0.0
    %2104 = vmatpush1.msra.mxu0 %v2077
    %2105 = vmatprep.subr.mxu0 0.0
    %2106 = vmatpush1.msra.mxu0 0.0
    %2107 = vmatprep.subr.mxu0 0.0
    %2108 = vmatpush1.msra.mxu0 0.0
    %2109 = vmatprep.subr.mxu0 0.0
    %2110 = vmatpush1.msra.mxu0 0.0
    %2111 = vmatprep.subr.mxu0 0.0
    %2112 = vmatpush1.msra.mxu0 0.0
    %2113 = vmatprep.subr.mxu0 0.0
    %2114 = vmatpush1.msra.mxu0 0.0
    %2115 = vmatprep.subr.mxu0 0.0
    %2116 = vmatpush1.msra.mxu0 0.0
    %2117 = vmatprep.subr.mxu0 0.0
    %2118 = vmatpush1.msra.mxu0 0.0
    %2119 = vmatprep.subr.mxu0 0.0
    %2120 = vmatpush1.msra.mxu0 0.0
    %2121 = vmatprep.subr.mxu0 0.0
    %2122 = vmatpush1.msra.mxu0 0.0
    %2123 = vmatprep.subr.mxu0 0.0
    %2124 = vmatpush1.msra.mxu0 0.0
    %2125 = vmatprep.subr.mxu0 0.0
    %2126 = vmatpush1.msra.mxu0 0.0
    %2127 = vmatprep.subr.mxu0 0.0
    %2128 = vmatpush1.msra.mxu0 0.0
    %2129 = vmatprep.subr.mxu0 0.0
    %2130 = vmatpush1.msra.mxu0 0.0
    %2131 = vmatprep.subr.mxu0 0.0
    %2132 = vmatpush1.msra.mxu0 0.0
    %2133 = vmatprep.subr.mxu0 0.0
    %2134 = vmatpush1.msra.mxu0 0.0
    %2135 = vmatprep.subr.mxu0 0.0
    %2136 = vmatpush1.msra.mxu0 0.0
    %2137 = vmatprep.subr.mxu0 0.0
    %2138 = vmatpush1.msra.mxu0 0.0
    %2139 = vmatprep.subr.mxu0 0.0
    %2140 = vmatpush1.msra.mxu0 0.0
    %2141 = vmatprep.subr.mxu0 0.0
    %2142 = vmatpush1.msra.mxu0 0.0
    %2143 = vmatprep.subr.mxu0 0.0
    %2144 = vmatpush1.msra.mxu0 0.0
    %2145 = vmatprep.subr.mxu0 0.0
    %2146 = vmatpush1.msra.mxu0 0.0
    %2147 = vmatprep.subr.mxu0 0.0
    %2148 = vmatpush1.msra.mxu0 0.0
    %2149 = vmatprep.subr.mxu0 0.0
    %2150 = vmatpush1.msra.mxu0 0.0
    %2151 = vmatprep.subr.mxu0 0.0
    %2152 = vmatpush1.msra.mxu0 0.0
    %2153 = vmatprep.mubr.f32.mxu0 0.0
    %2154 = vmatmul.mubr.f32.gmra.mrb[0].mxu0 %v2087
    %v2155 = vpop.f32.mrb[0].mxu0
    %v2156 = vadd.f32 %v2083, %v2155
    %v2157 = vpop.f32.mrb[0].mxu0
    %2158 = vdwg.mxu0
    %v2159 = vxor.u32 %v2156, 2147483648
    %v2160 = vmul.f32 %v2159, 1.442695
    %v2161 = vpow.pop %v2160
    %v2162 = vadd.f32 %v2161, 1.0
    %v2163 = vrcp.pop %v2162
    %v2164 = vmul.f32 1.0, %v2163
    %v2165 = vmul.f32 %v2156, %v2164
    %v2166 = vld [vmem:[%s11] sm:$0xff]
    %v2167 = vld [vmem:[%s11 + $0x8] sm:$0xff]
    %v2168 = vld [vmem:[%s11 + $0x10] sm:$0xff]
    %v2169 = vld [vmem:[%s11 + $0x18] sm:$0xff]
    %v2170 = vld [vmem:[%s11 + $0x20] sm:$0xff]
    %v2171 = vld [vmem:[%s11 + $0x28] sm:$0xff]
    %v2172 = vld [vmem:[%s11 + $0x30] sm:$0xff]
    %v2173 = vld [vmem:[%s11 + $0x38] sm:$0xff]
    %v2174 = vld [vmem:[#allocation14] sm:$0x1]
    %v2176 = vlaneseq
    %v2177 = vshrl.u32 %v2176, 7
    %v2178 = vsub.s32 0, %v2177
    %v2179 = vrot.slane %v2174, %v2178
    %v2182 = vsel %vm2085, %v2165, 0
    %2184 = vmatprep.subr.mxu0 0.0
    %2185 = vmatpush1.msra.mxu0 %v2166
    %2186 = vmatprep.subr.mxu0 0.0
    %2187 = vmatpush1.msra.mxu0 %v2167
    %2188 = vmatprep.subr.mxu0 0.0
    %2189 = vmatpush1.msra.mxu0 %v2168
    %2190 = vmatprep.subr.mxu0 0.0
    %2191 = vmatpush1.msra.mxu0 %v2169
    %2192 = vmatprep.subr.mxu0 0.0
    %2193 = vmatpush1.msra.mxu0 %v2170
    %2194 = vmatprep.subr.mxu0 0.0
    %2195 = vmatpush1.msra.mxu0 %v2171
    %2196 = vmatprep.subr.mxu0 0.0
    %2197 = vmatpush1.msra.mxu0 %v2172
    %2198 = vmatprep.subr.mxu0 0.0
    %2199 = vmatpush1.msra.mxu0 %v2173
    %2200 = vmatprep.subr.mxu0 0.0
    %2201 = vmatpush1.msra.mxu0 0.0
    %2202 = vmatprep.subr.mxu0 0.0
    %2203 = vmatpush1.msra.mxu0 0.0
    %2204 = vmatprep.subr.mxu0 0.0
    %2205 = vmatpush1.msra.mxu0 0.0
    %2206 = vmatprep.subr.mxu0 0.0
    %2207 = vmatpush1.msra.mxu0 0.0
    %2208 = vmatprep.subr.mxu0 0.0
    %2209 = vmatpush1.msra.mxu0 0.0
    %2210 = vmatprep.subr.mxu0 0.0
    %2211 = vmatpush1.msra.mxu0 0.0
    %2212 = vmatprep.subr.mxu0 0.0
    %2213 = vmatpush1.msra.mxu0 0.0
    %2214 = vmatprep.subr.mxu0 0.0
    %2215 = vmatpush1.msra.mxu0 0.0
    %2216 = vmatprep.subr.mxu0 0.0
    %2217 = vmatpush1.msra.mxu0 0.0
    %2218 = vmatprep.subr.mxu0 0.0
    %2219 = vmatpush1.msra.mxu0 0.0
    %2220 = vmatprep.subr.mxu0 0.0
    %2221 = vmatpush1.msra.mxu0 0.0
    %2222 = vmatprep.subr.mxu0 0.0
    %2223 = vmatpush1.msra.mxu0 0.0
    %2224 = vmatprep.subr.mxu0 0.0
    %2225 = vmatpush1.msra.mxu0 0.0
    %2226 = vmatprep.subr.mxu0 0.0
    %2227 = vmatpush1.msra.mxu0 0.0
    %2228 = vmatprep.subr.mxu0 0.0
    %2229 = vmatpush1.msra.mxu0 0.0
    %2230 = vmatprep.subr.mxu0 0.0
    %2231 = vmatpush1.msra.mxu0 0.0
    %2232 = vmatprep.subr.mxu0 0.0
    %2233 = vmatpush1.msra.mxu0 0.0
    %2234 = vmatprep.subr.mxu0 0.0
    %2235 = vmatpush1.msra.mxu0 0.0
    %2236 = vmatprep.subr.mxu0 0.0
    %2237 = vmatpush1.msra.mxu0 0.0
    %2238 = vmatprep.subr.mxu0 0.0
    %2239 = vmatpush1.msra.mxu0 0.0
    %2240 = vmatprep.subr.mxu0 0.0
    %2241 = vmatpush1.msra.mxu0 0.0
    %2242 = vmatprep.subr.mxu0 0.0
    %2243 = vmatpush1.msra.mxu0 0.0
    %2244 = vmatprep.subr.mxu0 0.0
    %2245 = vmatpush1.msra.mxu0 0.0
    %2246 = vmatprep.subr.mxu0 0.0
    %2247 = vmatpush1.msra.mxu0 0.0
    %2248 = vmatprep.mubr.f32.mxu0 0.0
    %2249 = vmatmul.mubr.f32.gmra.mrb[0].mxu0 %v2182
    %v2250 = vpop.f32.mrb[0].mxu0
    %v2251 = vadd.f32 %v2179, %v2250
    %v2252 = vpop.f32.mrb[0].mxu0
    %2253 = vdwg.mxu0
    %v2254 = vld [vmem:[#allocation10] sm:$0xff]
    %v2255 = vld [vmem:[#allocation16] sm:$0xff]
    %v2256 = vld [vmem:[#allocation16 + $0x8] sm:$0xff]
    %v2257 = vld [vmem:[%s14] sm:$0xff]
    %v2258 = vld [vmem:[%s14 + $0x8] sm:$0xff]
    %v2259 = vld [vmem:[%s14 + $0x10] sm:$0xff]
    %v2260 = vld [vmem:[%s14 + $0x18] sm:$0xff]
    %v2261 = vld [vmem:[%s14 + $0x20] sm:$0xff]
    %v2262 = vld [vmem:[%s14 + $0x28] sm:$0xff]
    %v2263 = vld [vmem:[%s14 + $0x30] sm:$0xff]
    %v2264 = vld [vmem:[%s14 + $0x38] sm:$0xff]
    %v2266 = vsel %vm2085, %v2251, 0
    %2268 = vmatprep.subr.mxu0 0.0
    %2269 = vmatpush1.msra.mxu0 %v2257
    %2270 = vmatprep.subr.mxu0 0.0
    %2271 = vmatpush1.msra.mxu0 %v2258
    %2272 = vmatprep.subr.mxu0 0.0
    %2273 = vmatpush1.msra.mxu0 %v2259
    %2274 = vmatprep.subr.mxu0 0.0
    %2275 = vmatpush1.msra.mxu0 %v2260
    %2276 = vmatprep.subr.mxu0 0.0
    %2277 = vmatpush1.msra.mxu0 %v2261
    %2278 = vmatprep.subr.mxu0 0.0
    %2279 = vmatpush1.msra.mxu0 %v2262
    %2280 = vmatprep.subr.mxu0 0.0
    %2281 = vmatpush1.msra.mxu0 %v2263
    %2282 = vmatprep.subr.mxu0 0.0
    %2283 = vmatpush1.msra.mxu0 %v2264
    %2284 = vmatprep.subr.mxu0 0.0
    %2285 = vmatpush1.msra.mxu0 0.0
    %2286 = vmatprep.subr.mxu0 0.0
    %2287 = vmatpush1.msra.mxu0 0.0
    %2288 = vmatprep.subr.mxu0 0.0
    %2289 = vmatpush1.msra.mxu0 0.0
    %2290 = vmatprep.subr.mxu0 0.0
    %2291 = vmatpush1.msra.mxu0 0.0
    %2292 = vmatprep.subr.mxu0 0.0
    %2293 = vmatpush1.msra.mxu0 0.0
    %2294 = vmatprep.subr.mxu0 0.0
    %2295 = vmatpush1.msra.mxu0 0.0
    %2296 = vmatprep.subr.mxu0 0.0
    %2297 = vmatpush1.msra.mxu0 0.0
    %2298 = vmatprep.subr.mxu0 0.0
    %2299 = vmatpush1.msra.mxu0 0.0
    %2300 = vmatprep.subr.mxu0 0.0
    %2301 = vmatpush1.msra.mxu0 0.0
    %2302 = vmatprep.subr.mxu0 0.0
    %2303 = vmatpush1.msra.mxu0 0.0
    %2304 = vmatprep.subr.mxu0 0.0
    %2305 = vmatpush1.msra.mxu0 0.0
    %2306 = vmatprep.subr.mxu0 0.0
    %2307 = vmatpush1.msra.mxu0 0.0
    %2308 = vmatprep.subr.mxu0 0.0
    %2309 = vmatpush1.msra.mxu0 0.0
    %2310 = vmatprep.subr.mxu0 0.0
    %2311 = vmatpush1.msra.mxu0 0.0
    %2312 = vmatprep.subr.mxu0 0.0
    %2313 = vmatpush1.msra.mxu0 0.0
    %2314 = vmatprep.subr.mxu0 0.0
    %2315 = vmatpush1.msra.mxu0 0.0
    %2316 = vmatprep.subr.mxu0 0.0
    %2317 = vmatpush1.msra.mxu0 0.0
    %2318 = vmatprep.subr.mxu0 0.0
    %2319 = vmatpush1.msra.mxu0 0.0
    %2320 = vmatprep.subr.mxu0 0.0
    %2321 = vmatpush1.msra.mxu0 0.0
    %2322 = vmatprep.subr.mxu0 0.0
    %2323 = vmatpush1.msra.mxu0 0.0
    %2324 = vmatprep.subr.mxu0 0.0
    %2325 = vmatpush1.msra.mxu0 0.0
    %2326 = vmatprep.subr.mxu0 0.0
    %2327 = vmatpush1.msra.mxu0 0.0
    %2328 = vmatprep.subr.mxu0 0.0
    %2329 = vmatpush1.msra.mxu0 0.0
    %2330 = vmatprep.subr.mxu0 0.0
    %2331 = vmatpush1.msra.mxu0 0.0
    %2332 = vmatprep.mubr.f32.mxu0 0.0
    %2333 = vmatmul.mubr.f32.gmra.mrb[0].mxu0 %v2266
    %v2334 = vpop.f32.mrb[0].mxu0
    %v2335 = vadd.f32 0.0, %v2334
    %v2336 = vpop.f32.mrb[0].mxu0
    %2337 = vdwg.mxu0
    %v2339 = vsel %vm219, %v2254, 0
    %2341 = vmatprep.subr.mxu0 0.0
    %2342 = vmatpush1.msra.mxu0 %v2255
    %2343 = vmatprep.subr.mxu0 0.0
    %2344 = vmatpush1.msra.mxu0 %v2256
    %2345 = vmatprep.subr.mxu0 0.0
    %2346 = vmatpush1.msra.mxu0 0.0
    %2347 = vmatprep.subr.mxu0 0.0
    %2348 = vmatpush1.msra.mxu0 0.0
    %2349 = vmatprep.subr.mxu0 0.0
    %2350 = vmatpush1.msra.mxu0 0.0
    %2351 = vmatprep.subr.mxu0 0.0
    %2352 = vmatpush1.msra.mxu0 0.0
    %2353 = vmatprep.subr.mxu0 0.0
    %2354 = vmatpush1.msra.mxu0 0.0
    %2355 = vmatprep.subr.mxu0 0.0
    %2356 = vmatpush1.msra.mxu0 0.0
    %2357 = vmatprep.subr.mxu0 0.0
    %2358 = vmatpush1.msra.mxu0 0.0
    %2359 = vmatprep.subr.mxu0 0.0
    %2360 = vmatpush1.msra.mxu0 0.0
    %2361 = vmatprep.subr.mxu0 0.0
    %2362 = vmatpush1.msra.mxu0 0.0
    %2363 = vmatprep.subr.mxu0 0.0
    %2364 = vmatpush1.msra.mxu0 0.0
    %2365 = vmatprep.subr.mxu0 0.0
    %2366 = vmatpush1.msra.mxu0 0.0
    %2367 = vmatprep.subr.mxu0 0.0
    %2368 = vmatpush1.msra.mxu0 0.0
    %2369 = vmatprep.subr.mxu0 0.0
    %2370 = vmatpush1.msra.mxu0 0.0
    %2371 = vmatprep.subr.mxu0 0.0
    %2372 = vmatpush1.msra.mxu0 0.0
    %2373 = vmatprep.subr.mxu0 0.0
    %2374 = vmatpush1.msra.mxu0 0.0
    %2375 = vmatprep.subr.mxu0 0.0
    %2376 = vmatpush1.msra.mxu0 0.0
    %2377 = vmatprep.subr.mxu0 0.0
    %2378 = vmatpush1.msra.mxu0 0.0
    %2379 = vmatprep.subr.mxu0 0.0
    %2380 = vmatpush1.msra.mxu0 0.0
    %2381 = vmatprep.subr.mxu0 0.0
    %2382 = vmatpush1.msra.mxu0 0.0
    %2383 = vmatprep.subr.mxu0 0.0
    %2384 = vmatpush1.msra.mxu0 0.0
    %2385 = vmatprep.subr.mxu0 0.0
    %2386 = vmatpush1.msra.mxu0 0.0
    %2387 = vmatprep.subr.mxu0 0.0
    %2388 = vmatpush1.msra.mxu0 0.0
    %2389 = vmatprep.subr.mxu0 0.0
    %2390 = vmatpush1.msra.mxu0 0.0
    %2391 = vmatprep.subr.mxu0 0.0
    %2392 = vmatpush1.msra.mxu0 0.0
    %2393 = vmatprep.subr.mxu0 0.0
    %2394 = vmatpush1.msra.mxu0 0.0
    %2395 = vmatprep.subr.mxu0 0.0
    %2396 = vmatpush1.msra.mxu0 0.0
    %2397 = vmatprep.subr.mxu0 0.0
    %2398 = vmatpush1.msra.mxu0 0.0
    %2399 = vmatprep.subr.mxu0 0.0
    %2400 = vmatpush1.msra.mxu0 0.0
    %2401 = vmatprep.subr.mxu0 0.0
    %2402 = vmatpush1.msra.mxu0 0.0
    %2403 = vmatprep.subr.mxu0 0.0
    %2404 = vmatpush1.msra.mxu0 0.0
    %2405 = vmatprep.mubr.f32.mxu0 0.0
    %2406 = vmatmul.mubr.f32.gmra.mrb[0].mxu0 %v2339
    %v2407 = vpop.f32.mrb[0].mxu0
    %v2408 = vadd.f32 %v2335, %v2407
    %v2409 = vpop.f32.mrb[0].mxu0
    %2410 = vdwg.mxu0
    %v2411 = vld [vmem:[%s15] sm:$0xff]
    %v2412 = vld [vmem:[%s15 + $0x8] sm:$0xff]
    %v2413 = vld [vmem:[%s15 + $0x10] sm:$0xff]
    %v2414 = vld [vmem:[%s15 + $0x18] sm:$0xff]
    %v2415 = vsel %vm349, %v2066, 0
    %2417 = vmatprep.subr.mxu0 0.0
    %2418 = vmatpush1.msra.mxu0 %v2411
    %2419 = vmatprep.subr.mxu0 0.0
    %2420 = vmatpush1.msra.mxu0 %v2412
    %2421 = vmatprep.subr.mxu0 0.0
    %2422 = vmatpush1.msra.mxu0 %v2413
    %2423 = vmatprep.subr.mxu0 0.0
    %2424 = vmatpush1.msra.mxu0 %v2414
    %2425 = vmatprep.subr.mxu0 0.0
    %2426 = vmatpush1.msra.mxu0 0.0
    %2427 = vmatprep.subr.mxu0 0.0
    %2428 = vmatpush1.msra.mxu0 0.0
    %2429 = vmatprep.subr.mxu0 0.0
    %2430 = vmatpush1.msra.mxu0 0.0
    %2431 = vmatprep.subr.mxu0 0.0
    %2432 = vmatpush1.msra.mxu0 0.0
    %2433 = vmatprep.subr.mxu0 0.0
    %2434 = vmatpush1.msra.mxu0 0.0
    %2435 = vmatprep.subr.mxu0 0.0
    %2436 = vmatpush1.msra.mxu0 0.0
    %2437 = vmatprep.subr.mxu0 0.0
    %2438 = vmatpush1.msra.mxu0 0.0
    %2439 = vmatprep.subr.mxu0 0.0
    %2440 = vmatpush1.msra.mxu0 0.0
    %2441 = vmatprep.subr.mxu0 0.0
    %2442 = vmatpush1.msra.mxu0 0.0
    %2443 = vmatprep.subr.mxu0 0.0
    %2444 = vmatpush1.msra.mxu0 0.0
    %2445 = vmatprep.subr.mxu0 0.0
    %2446 = vmatpush1.msra.mxu0 0.0
    %2447 = vmatprep.subr.mxu0 0.0
    %2448 = vmatpush1.msra.mxu0 0.0
    %2449 = vmatprep.subr.mxu0 0.0
    %2450 = vmatpush1.msra.mxu0 0.0
    %2451 = vmatprep.subr.mxu0 0.0
    %2452 = vmatpush1.msra.mxu0 0.0
    %2453 = vmatprep.subr.mxu0 0.0
    %2454 = vmatpush1.msra.mxu0 0.0
    %2455 = vmatprep.subr.mxu0 0.0
    %2456 = vmatpush1.msra.mxu0 0.0
    %2457 = vmatprep.subr.mxu0 0.0
    %2458 = vmatpush1.msra.mxu0 0.0
    %2459 = vmatprep.subr.mxu0 0.0
    %2460 = vmatpush1.msra.mxu0 0.0
    %2461 = vmatprep.subr.mxu0 0.0
    %2462 = vmatpush1.msra.mxu0 0.0
    %2463 = vmatprep.subr.mxu0 0.0
    %2464 = vmatpush1.msra.mxu0 0.0
    %2465 = vmatprep.subr.mxu0 0.0
    %2466 = vmatpush1.msra.mxu0 0.0
    %2467 = vmatprep.subr.mxu0 0.0
    %2468 = vmatpush1.msra.mxu0 0.0
    %2469 = vmatprep.subr.mxu0 0.0
    %2470 = vmatpush1.msra.mxu0 0.0
    %2471 = vmatprep.subr.mxu0 0.0
    %2472 = vmatpush1.msra.mxu0 0.0
    %2473 = vmatprep.subr.mxu0 0.0
    %2474 = vmatpush1.msra.mxu0 0.0
    %2475 = vmatprep.subr.mxu0 0.0
    %2476 = vmatpush1.msra.mxu0 0.0
    %2477 = vmatprep.subr.mxu0 0.0
    %2478 = vmatpush1.msra.mxu0 0.0
    %2479 = vmatprep.subr.mxu0 0.0
    %2480 = vmatpush1.msra.mxu0 0.0
    %2481 = vmatprep.mubr.f32.mxu0 0.0
    %2482 = vmatmul.mubr.f32.gmra.mrb[0].mxu0 %v2415
    %v2483 = vpop.f32.mrb[0].mxu0
    %v2484 = vadd.f32 0.0, %v2483
    %v2485 = vpop.f32.mrb[0].mxu0
    %2486 = vdwg.mxu0
    %v2487 = vadd.f32 %v2408, %v2484
    %v2488 = vld [vmem:[#allocation17] sm:$0x1]
    %v2490 = vlaneseq
    %v2491 = vshrl.u32 %v2490, 7
    %v2492 = vsub.s32 0, %v2491
    %v2493 = vrot.slane %v2488, %v2492
    %v2495 = vadd.f32 %v2487, %v2493
    %v2496 = vmax.f32 %v2495, 0.0
    %v2497 = vld [vmem:[%s17] sm:$0xff]
    %v2498 = vld [vmem:[%s17 + $0x8] sm:$0xff]
    %v2499 = vld [vmem:[%s17 + $0x10] sm:$0xff]
    %v2500 = vld [vmem:[%s17 + $0x18] sm:$0xff]
    %v2501 = vld [vmem:[%s18] sm:$0x1]
    %v2503 = vlaneseq
    %v2504 = vshrl.u32 %v2503, 7
    %v2505 = vsub.s32 0, %v2504
    %v2506 = vrot.slane %v2501, %v2505
    %v2509 = vsel %vm349, %v2496, 0
    %2511 = vmatprep.subr.mxu0 0.0
    %2512 = vmatpush1.msra.mxu0 %v2497
    %2513 = vmatprep.subr.mxu0 0.0
    %2514 = vmatpush1.msra.mxu0 %v2498
    %2515 = vmatprep.subr.mxu0 0.0
    %2516 = vmatpush1.msra.mxu0 %v2499
    %2517 = vmatprep.subr.mxu0 0.0
    %2518 = vmatpush1.msra.mxu0 %v2500
    %2519 = vmatprep.subr.mxu0 0.0
    %2520 = vmatpush1.msra.mxu0 0.0
    %2521 = vmatprep.subr.mxu0 0.0
    %2522 = vmatpush1.msra.mxu0 0.0
    %2523 = vmatprep.subr.mxu0 0.0
    %2524 = vmatpush1.msra.mxu0 0.0
    %2525 = vmatprep.subr.mxu0 0.0
    %2526 = vmatpush1.msra.mxu0 0.0
    %2527 = vmatprep.subr.mxu0 0.0
    %2528 = vmatpush1.msra.mxu0 0.0
    %2529 = vmatprep.subr.mxu0 0.0
    %2530 = vmatpush1.msra.mxu0 0.0
    %2531 = vmatprep.subr.mxu0 0.0
    %2532 = vmatpush1.msra.mxu0 0.0
    %2533 = vmatprep.subr.mxu0 0.0
    %2534 = vmatpush1.msra.mxu0 0.0
    %2535 = vmatprep.subr.mxu0 0.0
    %2536 = vmatpush1.msra.mxu0 0.0
    %2537 = vmatprep.subr.mxu0 0.0
    %2538 = vmatpush1.msra.mxu0 0.0
    %2539 = vmatprep.subr.mxu0 0.0
    %2540 = vmatpush1.msra.mxu0 0.0
    %2541 = vmatprep.subr.mxu0 0.0
    %2542 = vmatpush1.msra.mxu0 0.0
    %2543 = vmatprep.subr.mxu0 0.0
    %2544 = vmatpush1.msra.mxu0 0.0
    %2545 = vmatprep.subr.mxu0 0.0
    %2546 = vmatpush1.msra.mxu0 0.0
    %2547 = vmatprep.subr.mxu0 0.0
    %2548 = vmatpush1.msra.mxu0 0.0
    %2549 = vmatprep.subr.mxu0 0.0
    %2550 = vmatpush1.msra.mxu0 0.0
    %2551 = vmatprep.subr.mxu0 0.0
    %2552 = vmatpush1.msra.mxu0 0.0
    %2553 = vmatprep.subr.mxu0 0.0
    %2554 = vmatpush1.msra.mxu0 0.0
    %2555 = vmatprep.subr.mxu0 0.0
    %2556 = vmatpush1.msra.mxu0 0.0
    %2557 = vmatprep.subr.mxu0 0.0
    %2558 = vmatpush1.msra.mxu0 0.0
    %2559 = vmatprep.subr.mxu0 0.0
    %2560 = vmatpush1.msra.mxu0 0.0
    %2561 = vmatprep.subr.mxu0 0.0
    %2562 = vmatpush1.msra.mxu0 0.0
    %2563 = vmatprep.subr.mxu0 0.0
    %2564 = vmatpush1.msra.mxu0 0.0
    %2565 = vmatprep.subr.mxu0 0.0
    %2566 = vmatpush1.msra.mxu0 0.0
    %2567 = vmatprep.subr.mxu0 0.0
    %2568 = vmatpush1.msra.mxu0 0.0
    %2569 = vmatprep.subr.mxu0 0.0
    %2570 = vmatpush1.msra.mxu0 0.0
    %2571 = vmatprep.subr.mxu0 0.0
    %2572 = vmatpush1.msra.mxu0 0.0
    %2573 = vmatprep.subr.mxu0 0.0
    %2574 = vmatpush1.msra.mxu0 0.0
    %2575 = vmatprep.mubr.f32.mxu0 0.0
    %2576 = vmatmul.mubr.f32.gmra.mrb[0].mxu0 %v2509
    %v2577 = vpop.f32.mrb[0].mxu0
    %v2578 = vadd.f32 %v2506, %v2577
    %v2579 = vpop.f32.mrb[0].mxu0
    %2580 = vdwg.mxu0
    %v2581 = vmax.f32 %v2578, 0.0
    %v2582 = vld [vmem:[%s19] sm:$0xff]
    %v2583 = vld [vmem:[%s19 + $0x8] sm:$0xff]
    %v2584 = vld [vmem:[%s19 + $0x10] sm:$0xff]
    %v2585 = vld [vmem:[%s19 + $0x18] sm:$0xff]
    %v2586 = vld [vmem:[%s20] sm:$0x1]
    %v2588 = vlaneseq
    %v2589 = vshrl.u32 %v2588, 7
    %v2590 = vsub.s32 0, %v2589
    %v2591 = vrot.slane %v2586, %v2590
    %v2594 = vsel %vm349, %v2581, 0
    %2596 = vmatprep.subr.mxu0 0.0
    %2597 = vmatpush1.msra.mxu0 %v2582
    %2598 = vmatprep.subr.mxu0 0.0
    %2599 = vmatpush1.msra.mxu0 %v2583
    %2600 = vmatprep.subr.mxu0 0.0
    %2601 = vmatpush1.msra.mxu0 %v2584
    %2602 = vmatprep.subr.mxu0 0.0
    %2603 = vmatpush1.msra.mxu0 %v2585
    %2604 = vmatprep.subr.mxu0 0.0
    %2605 = vmatpush1.msra.mxu0 0.0
    %2606 = vmatprep.subr.mxu0 0.0
    %2607 = vmatpush1.msra.mxu0 0.0
    %2608 = vmatprep.subr.mxu0 0.0
    %2609 = vmatpush1.msra.mxu0 0.0
    %2610 = vmatprep.subr.mxu0 0.0
    %2611 = vmatpush1.msra.mxu0 0.0
    %2612 = vmatprep.subr.mxu0 0.0
    %2613 = vmatpush1.msra.mxu0 0.0
    %2614 = vmatprep.subr.mxu0 0.0
    %2615 = vmatpush1.msra.mxu0 0.0
    %2616 = vmatprep.subr.mxu0 0.0
    %2617 = vmatpush1.msra.mxu0 0.0
    %2618 = vmatprep.subr.mxu0 0.0
    %2619 = vmatpush1.msra.mxu0 0.0
    %2620 = vmatprep.subr.mxu0 0.0
    %2621 = vmatpush1.msra.mxu0 0.0
    %2622 = vmatprep.subr.mxu0 0.0
    %2623 = vmatpush1.msra.mxu0 0.0
    %2624 = vmatprep.subr.mxu0 0.0
    %2625 = vmatpush1.msra.mxu0 0.0
    %2626 = vmatprep.subr.mxu0 0.0
    %2627 = vmatpush1.msra.mxu0 0.0
    %2628 = vmatprep.subr.mxu0 0.0
    %2629 = vmatpush1.msra.mxu0 0.0
    %2630 = vmatprep.subr.mxu0 0.0
    %2631 = vmatpush1.msra.mxu0 0.0
    %2632 = vmatprep.subr.mxu0 0.0
    %2633 = vmatpush1.msra.mxu0 0.0
    %2634 = vmatprep.subr.mxu0 0.0
    %2635 = vmatpush1.msra.mxu0 0.0
    %2636 = vmatprep.subr.mxu0 0.0
    %2637 = vmatpush1.msra.mxu0 0.0
    %2638 = vmatprep.subr.mxu0 0.0
    %2639 = vmatpush1.msra.mxu0 0.0
    %2640 = vmatprep.subr.mxu0 0.0
    %2641 = vmatpush1.msra.mxu0 0.0
    %2642 = vmatprep.subr.mxu0 0.0
    %2643 = vmatpush1.msra.mxu0 0.0
    %2644 = vmatprep.subr.mxu0 0.0
    %2645 = vmatpush1.msra.mxu0 0.0
    %2646 = vmatprep.subr.mxu0 0.0
    %2647 = vmatpush1.msra.mxu0 0.0
    %2648 = vmatprep.subr.mxu0 0.0
    %2649 = vmatpush1.msra.mxu0 0.0
    %2650 = vmatprep.subr.mxu0 0.0
    %2651 = vmatpush1.msra.mxu0 0.0
    %2652 = vmatprep.subr.mxu0 0.0
    %2653 = vmatpush1.msra.mxu0 0.0
    %2654 = vmatprep.subr.mxu0 0.0
    %2655 = vmatpush1.msra.mxu0 0.0
    %2656 = vmatprep.subr.mxu0 0.0
    %2657 = vmatpush1.msra.mxu0 0.0
    %2658 = vmatprep.subr.mxu0 0.0
    %2659 = vmatpush1.msra.mxu0 0.0
    %2660 = vmatprep.mubr.f32.mxu0 0.0
    %2661 = vmatmul.mubr.f32.gmra.mrb[0].mxu0 %v2594
    %v2662 = vpop.f32.mrb[0].mxu0
    %v2663 = vadd.f32 %v2591, %v2662
    %v2664 = vpop.f32.mrb[0].mxu0
    %2665 = vdwg.mxu0
    %2666 = vst.msk [vmem:[#allocation19] sm:$0xff] %vm219, %v2663
    // Predicated region
    $region126: #{tpu_custom_call.1} parent=1 // pred_check
      _
    $region127: #{tpu_custom_call.1} parent=1 // pred_check_branch
      %2668 = sbr.rel (0) target = $region129
    $region128: #{tpu_custom_call.1} parent=1 // pred_region
      %s2670 = ssub.s32 128, 128
      %2671 = vsyncadd [#allocation4], %s2670
      %s2673 = sshll.u32 [#allocation19], 4
      %s2674 = int_to_ptr.vmem [resolvable:$true] %s2673
      %2676 = dma.vmem_to_hbm [thread:$0]  %s2674, 128, %s21, [#allocation4]
    $region129: #{tpu_custom_call.1} parent=1 // pred_fallthru
      _
    // Predicated region
    $region130: #{tpu_custom_call.1} parent=1 // pred_check
      _
    $region131: #{tpu_custom_call.1} parent=1 // pred_check_branch
      %2678 = sbr.rel (0) target = $region133
    $region132: #{tpu_custom_call.1} parent=1 // pred_region
      %s2680 = ssub.s32 128, 128
      %2681 = vsyncadd [#allocation21], %s2680
      %s2683 = sshll.u32 [#allocation20], 4
      %s2684 = int_to_ptr.vmem [resolvable:$true] %s2683
      %2686 = dma.vmem_to_hbm [thread:$0]  %s2684, 128, %s22, [#allocation21]
    $region133: #{tpu_custom_call.1} parent=1 // pred_fallthru
      _
    // Predicated region
    $region134: #{tpu_custom_call.1} parent=1 // pred_check
      _
    $region135: #{tpu_custom_call.1} parent=1 // pred_check_branch
      %2688 = sbr.rel (0) target = $region137
    $region136: #{tpu_custom_call.1} parent=1 // pred_region
      %2689 = dma.done [#allocation4], 128
    $region137: #{tpu_custom_call.1} parent=1 // pred_fallthru
      _
    // Predicated region
    $region138: #{tpu_custom_call.1} parent=1 // pred_check
      _
    $region139: #{tpu_custom_call.1} parent=1 // pred_check_branch
      %2691 = sbr.rel (0) target = $region141
    $region140: #{tpu_custom_call.1} parent=1 // pred_region
      %2692 = dma.done [#allocation21], 128
    $region141: #{tpu_custom_call.1} parent=1 // pred_fallthru
      _
    %2693 = vsyncpa [#allocation3], 1
    %2694 = vsyncpa [#allocation6], 1
    %2695 = vsyncpa [#allocation9], 1
    %2696 = vsyncpa [#allocation12], 1
    %2697 = vsyncpa [#allocation15], 1
    %2698 = vsyncpa [#allocation18], 1
    %2699 = vsyncpa [#allocation4], 1
    %2700 = vsyncpa [#allocation21], 1

</llo_original>
